<compile_context>
chip_gen: v6e
topology: v6e:2x2x1
jax: 0.10.0
libtpu: 0.0.40
codegen_flags: <defaults>
</compile_context>

<pallas_src>
import functools

import jax
import jax.numpy as jnp
from jax import lax
from jax.experimental import pallas as pl
from jax.experimental.pallas import tpu as pltpu


# ---------------------------------------------------------------------------
# helpers
# ---------------------------------------------------------------------------
def _m_tiles(M, max_tile=256):
    """Row tile for the M-tiled linear kernels (full rows if small)."""
    if M <= max_tile:
        return M, 1                       # full dim -> always a legal block
    return max_tile, pl.cdiv(M, max_tile)  # 256 is a multiple of 8


def prepare_params(raw):
    """Transpose (torch [O,K] -> [K,O]) and cast weights to bf16 ONCE,
    outside the forward; biases stay f32 as [1, O] rows."""
    def wt(w):
        return jnp.asarray(w, jnp.float32).T.astype(jnp.bfloat16)

    def b2(b):
        return jnp.asarray(b, jnp.float32)[None, :]

    return {
        "qkv_r_wt": wt(raw["qkv_r_w"]),
        "qkv_d_wt": wt(raw["qkv_d_w"]),
        "qkv_wt": wt(raw["qkv_w"]),
        "proj_r_wt": wt(raw["proj_r_w"]), "proj_r_b2": b2(raw["proj_r_b"]),
        "proj_d_wt": wt(raw["proj_d_w"]), "proj_d_b2": b2(raw["proj_d_b"]),
        "proj_wt": wt(raw["proj_w"]), "proj_b2": b2(raw["proj_b"]),
        "proj_rd_wt": wt(raw["proj_rd_w"]), "proj_rd_b2": b2(raw["proj_rd_b"]),
    }


# ---------------------------------------------------------------------------
# kernel 1: fused qkv_r / qkv_d / qkv projections (no bias)
# ---------------------------------------------------------------------------
def _qkv_kernel(x_ref, xrd_ref, wr_ref, wd_ref, w_ref,
                qkvr_ref, qkvd_ref, qkvx_ref, *, C):
    x = x_ref[...].astype(jnp.bfloat16)       # [TM, 2C]
    xrd = xrd_ref[...].astype(jnp.bfloat16)   # [TM, C]
    xr = x[:, :C]
    xd = x[:, C:]
    qkvr_ref[...] = jnp.dot(xr, wr_ref[...],
                            preferred_element_type=jnp.float32).astype(qkvr_ref.dtype)
    qkvd_ref[...] = jnp.dot(xd, wd_ref[...],
                            preferred_element_type=jnp.float32).astype(qkvd_ref.dtype)
    qkvx_ref[...] = jnp.dot(xrd, w_ref[...],
                            preferred_element_type=jnp.float32).astype(qkvx_ref.dtype)


def _qkv_projections(x2, xrd2, params, C):
    M = x2.shape[0]
    TM, nm = _m_tiles(M)
    kernel = functools.partial(_qkv_kernel, C=C)
    return pl.pallas_call(
        kernel,
        grid=(nm,),
        in_specs=[
            pl.BlockSpec((TM, 2 * C), lambda i: (i, 0)),
            pl.BlockSpec((TM, C), lambda i: (i, 0)),
            pl.BlockSpec((C, 3 * C), lambda i: (0, 0)),   # weights stay resident
            pl.BlockSpec((C, 3 * C), lambda i: (0, 0)),
            pl.BlockSpec((C, 3 * C), lambda i: (0, 0)),
        ],
        out_specs=(
            pl.BlockSpec((TM, 3 * C), lambda i: (i, 0)),
            pl.BlockSpec((TM, 3 * C), lambda i: (i, 0)),
            pl.BlockSpec((TM, 3 * C), lambda i: (i, 0)),
        ),
        out_shape=(
            jax.ShapeDtypeStruct((M, 3 * C), jnp.bfloat16),
            jax.ShapeDtypeStruct((M, 3 * C), jnp.bfloat16),
            jax.ShapeDtypeStruct((M, 3 * C), jnp.bfloat16),
        ),
        compiler_params=pltpu.CompilerParams(dimension_semantics=("parallel",)),
    )(x2, xrd2, params["qkv_r_wt"], params["qkv_d_wt"], params["qkv_wt"])


# ---------------------------------------------------------------------------
# kernel 2: fused attention + graph diffusion (one grid step = one batch elem,
#           all heads processed inside to amortize per-step overhead)
# ---------------------------------------------------------------------------
def _attention_kernel(qkvr_ref, qkvd_ref, qkvx_ref,
                      cat_r_ref, cat_d_ref, out_x_ref,
                      *, num_heads, head_dim, scale, alpha):
    C = num_heads * head_dim
    f32, bf16 = jnp.float32, jnp.bfloat16

    qkvr = qkvr_ref[0]                         # [N, 3C] bf16
    qkvd = qkvd_ref[0]
    qkvx = qkvx_ref[0]

    def softmax_rows(q, k):
        # scale folded into q; contract last dims of q and k (no [hd,N] transpose)
        qs = (q.astype(f32) * scale).astype(bf16)
        s = lax.dot_general(qs, k, (((1,), (1,)), ((), ())),
                            preferred_element_type=f32)          # [N, N] f32
        m = jnp.max(s, axis=-1, keepdims=True)
        e = jnp.exp(s - m)
        l = jnp.sum(e, axis=-1, keepdims=True)
        inv = pl.reciprocal(l, approx=True)                      # EUP slot (free-ish)
        # p and its exact row-sum (rowsum(p) == l * inv), avoiding an NxN reduce
        return e * inv, l * inv

    def mm(a, b):        # [N,N] @ [N,hd], bf16 in, f32 accumulate
        return jnp.dot(a, b, preferred_element_type=f32)

    def mm_t(a, b):      # a^T @ b via dot_general contracting leading dims
        return lax.dot_general(a, b, (((0,), (0,)), ((), ())),
                               preferred_element_type=f32)

    r_cols, rd_cols, d_cols, dr_cols, x_cols = [], [], [], [], []
    for h in range(num_heads):                 # static unroll, H is small
        o = h * head_dim
        qr, kr, vr = (qkvr[:, o:o + head_dim],
                      qkvr[:, C + o:C + o + head_dim],
                      qkvr[:, 2 * C + o:2 * C + o + head_dim])
        qd, kd, vd = (qkvd[:, o:o + head_dim],
                      qkvd[:, C + o:C + o + head_dim],
                      qkvd[:, 2 * C + o:2 * C + o + head_dim])
        qx, kx, vx = (qkvx[:, o:o + head_dim],
                      qkvx[:, C + o:C + o + head_dim],
                      qkvx[:, 2 * C + o:2 * C + o + head_dim])

        attn_r, rs_r = softmax_rows(qr, kr)    # f32 [N,N], [N,1]
        attn_d, rs_d = softmax_rows(qd, kd)
        attn_x, _ = softmax_rows(qx, kx)

        pr = attn_r.astype(bf16)               # bf16 copies feed the MXU
        pd = attn_d.astype(bf16)
        px = attn_x.astype(bf16)

        # D = diag(rowsum(W)^-0.5) from get_S (rows of a softmax sum to ~1,
        # kept for parity with the reference).
        d_r = lax.rsqrt(rs_r)                  # [N,1] f32
        d_d = lax.rsqrt(rs_d)

        out_r = mm(pr, vr)                     # attn_r @ vr
        out_d = mm(pd, vd)                     # attn_d @ vd
        out_x = mm(px, vx)                     # attn   @ v

        # Y @ v terms (Y = attn_r + attn_d), reusing out_r / out_d
        y_vd = mm(pr, vd) + out_d
        y_vr = out_r + mm(pd, vr)

        # out_rd = A_rd @ vd = a * S_r @ (S_d^T @ vd) + (1-a) * Y @ vd
        #   S_d^T @ vd = d_d * (W_d   @ (d_d * vd))
        #   S_r  @ u   = d_r * (W_r^T @ (d_r * u))
        u_rd = d_d * mm(pd, (d_d * vd).astype(bf16))
        out_rd = (alpha * (d_r * mm_t(pr, (d_r * u_rd).astype(bf16)))
                  + (1.0 - alpha) * y_vd)

        # out_dr = A_dr @ vr = a * S_d @ (S_r^T @ vr) + (1-a) * Y @ vr
        u_dr = d_r * mm(pr, (d_r * vr).astype(bf16))
        out_dr = (alpha * (d_d * mm_t(pd, (d_d * u_dr).astype(bf16)))
                  + (1.0 - alpha) * y_vr)

        r_cols.append(out_r)
        rd_cols.append(out_rd)
        d_cols.append(out_d)
        dr_cols.append(out_dr)
        x_cols.append(out_x)

    # single lane-dense, already-concatenated store per output
    cat_r_ref[0] = jnp.concatenate(r_cols + rd_cols, axis=-1).astype(cat_r_ref.dtype)
    cat_d_ref[0] = jnp.concatenate(d_cols + dr_cols, axis=-1).astype(cat_d_ref.dtype)
    out_x_ref[0] = jnp.concatenate(x_cols, axis=-1).astype(out_x_ref.dtype)


def _attention(qkvr, qkvd, qkvx, *, num_heads, head_dim, scale, alpha):
    B, N, _ = qkvr.shape
    C = num_heads * head_dim
    kernel = functools.partial(_attention_kernel, num_heads=num_heads,
                               head_dim=head_dim, scale=scale, alpha=alpha)
    in_spec = pl.BlockSpec((1, N, 3 * C), lambda b: (b, 0, 0))

    # Rough per-step VMEM budget: ~6 live NxN f32/bf16 intermediates per head
    # chain + double-buffered I/O + per-head output columns. Only raise the
    # scoped limit when needed (keeps v7x's 64 MiB part happy by default).
    est = (6 * N * N * 4
           + 2 * (3 * N * 3 * C + 2 * N * 2 * C + N * C) * 2
           + 5 * N * C * 4)
    cp = dict(dimension_semantics=("parallel",))
    if est > 32 * 1024 * 1024:
        # TODO(synk): for N beyond ~2k use a key-blocked (flash-style) softmax
        # instead of full NxN tiles (mandatory on v7x's 64 MiB VMEM).
        cp["vmem_limit_bytes"] = min(int(est * 1.5), 96 * 1024 * 1024)

    return pl.pallas_call(
        kernel,
        grid=(B,),
        in_specs=[in_spec, in_spec, in_spec],
        out_specs=(
            pl.BlockSpec((1, N, 2 * C), lambda b: (b, 0, 0)),
            pl.BlockSpec((1, N, 2 * C), lambda b: (b, 0, 0)),
            pl.BlockSpec((1, N, C), lambda b: (b, 0, 0)),
        ),
        out_shape=(
            jax.ShapeDtypeStruct((B, N, 2 * C), jnp.bfloat16),  # [out_r | out_rd]
            jax.ShapeDtypeStruct((B, N, 2 * C), jnp.bfloat16),  # [out_d | out_dr]
            jax.ShapeDtypeStruct((B, N, C), jnp.bfloat16),      # attn @ v
        ),
        compiler_params=pltpu.CompilerParams(**cp),
    )(qkvr, qkvd, qkvx)


# ---------------------------------------------------------------------------
# kernel 3: fused epilogue
#   proj_r, proj_d, proj, proj_rd and the final add all in one M-tiled kernel:
#     out = proj(out_x) + proj_rd([proj_r(cat_r) | proj_d(cat_d)])
#   The [proj_r | proj_d] concat lives only in VMEM.
# ---------------------------------------------------------------------------
def _epilogue_kernel(catr_ref, catd_ref, outx_ref,
                     wr_ref, br_ref, wd_ref, bd_ref,
                     wp_ref, bp_ref, wrd_ref, brd_ref, o_ref):
    f32 = jnp.float32
    yr = jnp.dot(catr_ref[...], wr_ref[...],
                 preferred_element_type=f32) + br_ref[...]          # [TM, C]
    yd = jnp.dot(catd_ref[...], wd_ref[...],
                 preferred_element_type=f32) + bd_ref[...]          # [TM, C]
    rd = jnp.concatenate([yr, yd], axis=-1).astype(jnp.bfloat16)    # [TM, 2C]
    y = jnp.dot(outx_ref[...], wp_ref[...], preferred_element_type=f32)
    y = y + jnp.dot(rd, wrd_ref[...], preferred_element_type=f32)
    o_ref[...] = (y + bp_ref[...] + brd_ref[...]).astype(o_ref.dtype)


def _epilogue(cat_r2, cat_d2, out_x2, params, C):
    M = cat_r2.shape[0]
    TM, nm = _m_tiles(M)
    return pl.pallas_call(
        _epilogue_kernel,
        grid=(nm,),
        in_specs=[
            pl.BlockSpec((TM, 2 * C), lambda i: (i, 0)),
            pl.BlockSpec((TM, 2 * C), lambda i: (i, 0)),
            pl.BlockSpec((TM, C), lambda i: (i, 0)),
            pl.BlockSpec((2 * C, C), lambda i: (0, 0)),   # proj_r W
            pl.BlockSpec((1, C), lambda i: (0, 0)),
            pl.BlockSpec((2 * C, C), lambda i: (0, 0)),   # proj_d W
            pl.BlockSpec((1, C), lambda i: (0, 0)),
            pl.BlockSpec((C, C), lambda i: (0, 0)),       # proj   W
            pl.BlockSpec((1, C), lambda i: (0, 0)),
            pl.BlockSpec((2 * C, C), lambda i: (0, 0)),   # proj_rd W
            pl.BlockSpec((1, C), lambda i: (0, 0)),
        ],
        out_specs=pl.BlockSpec((TM, C), lambda i: (i, 0)),
        out_shape=jax.ShapeDtypeStruct((M, C), jnp.float32),
        compiler_params=pltpu.CompilerParams(dimension_semantics=("parallel",)),
    )(cat_r2, cat_d2, out_x2,
      params["proj_r_wt"], params["proj_r_b2"],
      params["proj_d_wt"], params["proj_d_b2"],
      params["proj_wt"], params["proj_b2"],
      params["proj_rd_wt"], params["proj_rd_b2"])


# ---------------------------------------------------------------------------
# Full forward pass
# ---------------------------------------------------------------------------
def multi_attention_forward(x, xrd, params, num_heads, alpha=0.6, qk_scale=None):
    B, N, c = x.shape
    C = c // 2
    H = num_heads
    hd = C // H
    scale = float(qk_scale) if qk_scale is not None else hd ** (-0.5)

    x2 = jnp.asarray(x, jnp.float32).reshape(B * N, 2 * C)
    xrd2 = jnp.asarray(xrd, jnp.float32).reshape(B * N, C)

    # 1) fused qkv projections (bf16 outputs feed the attention kernel directly)
    qkvr2, qkvd2, qkvx2 = _qkv_projections(x2, xrd2, params, C)

    # 2) fused attention + diffusion; outputs are already head-concatenated
    #    [out_r|out_rd], [out_d|out_dr] and attn@v, all lane-dense.
    cat_r, cat_d, out_x = _attention(
        qkvr2.reshape(B, N, 3 * C),
        qkvd2.reshape(B, N, 3 * C),
        qkvx2.reshape(B, N, 3 * C),
        num_heads=H, head_dim=hd, scale=scale, alpha=alpha)

    # 3) fused epilogue: proj(out_x) + proj_rd([proj_r(cat_r) | proj_d(cat_d)])
    out2 = _epilogue(cat_r.reshape(B * N, 2 * C),
                     cat_d.reshape(B * N, 2 * C),
                     out_x.reshape(B * N, C), params, C)

    # attn_drop / proj_drop have p = 0.0 -> identity
    return out2.reshape(B, N, C)


# ---------------------------------------------------------------------------
if __name__ == "__main__":
    key = jax.random.PRNGKey(0)
    B, N, H, hd = 2, 8, 2, 8
    C = H * hd          # dim = 16
    c = 2 * C           # x channels = 32

    keys = jax.random.split(key, 13)
    x = jax.random.normal(keys[0], (B, N, c), jnp.float32)
    xrd = jax.random.normal(keys[1], (B, N, C), jnp.float32)

    def w(k, o, i):
        return jax.random.normal(k, (o, i), jnp.float32) * 0.05

    def bvec(k, o):
        return jax.random.normal(k, (o,), jnp.float32) * 0.05

    raw_params = {
        # qkv layers (qkv_bias=False -> no bias)
        "qkv_r_w": w(keys[2], 3 * C, C),
        "qkv_d_w": w(keys[3], 3 * C, C),
        "qkv_w": w(keys[4], 3 * C, C),
        # output projections
        "proj_r_w": w(keys[5], C, 2 * C), "proj_r_b": bvec(keys[6], C),
        "proj_d_w": w(keys[7], C, 2 * C), "proj_d_b": bvec(keys[8], C),
        "proj_w": w(keys[9], C, C), "proj_b": bvec(keys[10], C),
        "proj_rd_w": w(keys[11], C, 2 * C), "proj_rd_b": bvec(keys[12], C),
    }
    # weight transpose + bf16 cast happens exactly once, outside the forward
    params = prepare_params(raw_params)

    fwd = jax.jit(functools.partial(multi_attention_forward, num_heads=H))
    out = fwd(x, xrd, params)
    jax.block_until_ready(out)
    assert out.shape == (B, N, C), out.shape
    print("KERNEL_OK")
</pallas_src>

<mosaic_0001>
module attributes {stable_mosaic.version = 11 : i64} {
  func.func @_attention_kernel(%arg0: i32, %arg1: memref<1x8x48xbf16, #tpu.memory_space<vmem>>, %arg2: memref<1x8x48xbf16, #tpu.memory_space<vmem>>, %arg3: memref<1x8x48xbf16, #tpu.memory_space<vmem>>, %arg4: memref<1x8x32xbf16, #tpu.memory_space<vmem>>, %arg5: memref<1x8x32xbf16, #tpu.memory_space<vmem>>, %arg6: memref<1x8x16xbf16, #tpu.memory_space<vmem>>) attributes {dimension_semantics = [#tpu.dimension_semantics<parallel>], iteration_bounds = array<i64: 2>, scalar_prefetch = 0 : i64, scratch_operands = 0 : i64, tpu.core_type = #tpu.core_type<tc>, window_params = [{transform_indices = @transform_0, window_bounds = array<i64: 1, 8, 48>}, {transform_indices = @transform_1, window_bounds = array<i64: 1, 8, 48>}, {transform_indices = @transform_2, window_bounds = array<i64: 1, 8, 48>}, {transform_indices = @transform_3, window_bounds = array<i64: 1, 8, 32>}, {transform_indices = @transform_4, window_bounds = array<i64: 1, 8, 32>}, {transform_indices = @transform_5, window_bounds = array<i64: 1, 8, 16>}]} {
    %c0 = arith.constant 0 : index
    %c0_0 = arith.constant 0 : index
    %c0_1 = arith.constant 0 : index
    %0 = vector.load %arg1[%c0, %c0_0, %c0_1] : memref<1x8x48xbf16, #tpu.memory_space<vmem>>, vector<1x8x48xbf16>
    %1 = vector.shape_cast %0 : vector<1x8x48xbf16> to vector<8x48xbf16>
    %c0_2 = arith.constant 0 : index
    %c0_3 = arith.constant 0 : index
    %c0_4 = arith.constant 0 : index
    %2 = vector.load %arg2[%c0_2, %c0_3, %c0_4] : memref<1x8x48xbf16, #tpu.memory_space<vmem>>, vector<1x8x48xbf16>
    %3 = vector.shape_cast %2 : vector<1x8x48xbf16> to vector<8x48xbf16>
    %c0_5 = arith.constant 0 : index
    %c0_6 = arith.constant 0 : index
    %c0_7 = arith.constant 0 : index
    %4 = vector.load %arg3[%c0_5, %c0_6, %c0_7] : memref<1x8x48xbf16, #tpu.memory_space<vmem>>, vector<1x8x48xbf16>
    %5 = vector.shape_cast %4 : vector<1x8x48xbf16> to vector<8x48xbf16>
    %6 = vector.extract_strided_slice %1 {offsets = [0, 0], sizes = [8, 8], strides = [1, 1]} : vector<8x48xbf16> to vector<8x8xbf16>
    %7 = vector.extract_strided_slice %1 {offsets = [0, 16], sizes = [8, 8], strides = [1, 1]} : vector<8x48xbf16> to vector<8x8xbf16>
    %8 = vector.extract_strided_slice %1 {offsets = [0, 32], sizes = [8, 8], strides = [1, 1]} : vector<8x48xbf16> to vector<8x8xbf16>
    %9 = vector.extract_strided_slice %3 {offsets = [0, 0], sizes = [8, 8], strides = [1, 1]} : vector<8x48xbf16> to vector<8x8xbf16>
    %10 = vector.extract_strided_slice %3 {offsets = [0, 16], sizes = [8, 8], strides = [1, 1]} : vector<8x48xbf16> to vector<8x8xbf16>
    %11 = vector.extract_strided_slice %3 {offsets = [0, 32], sizes = [8, 8], strides = [1, 1]} : vector<8x48xbf16> to vector<8x8xbf16>
    %12 = vector.extract_strided_slice %5 {offsets = [0, 0], sizes = [8, 8], strides = [1, 1]} : vector<8x48xbf16> to vector<8x8xbf16>
    %13 = vector.extract_strided_slice %5 {offsets = [0, 16], sizes = [8, 8], strides = [1, 1]} : vector<8x48xbf16> to vector<8x8xbf16>
    %14 = vector.extract_strided_slice %5 {offsets = [0, 32], sizes = [8, 8], strides = [1, 1]} : vector<8x48xbf16> to vector<8x8xbf16>
    %15 = arith.extf %6 : vector<8x8xbf16> to vector<8x8xf32>
    %cst = arith.constant 0.353553385 : f32
    %16 = vector.broadcast %cst : f32 to vector<8x8xf32>
    %17 = arith.mulf %15, %16 : vector<8x8xf32>
    %18 = arith.truncf %17 : vector<8x8xf32> to vector<8x8xbf16>
    %cst_8 = arith.constant dense<0.000000e+00> : vector<8x8xf32>
    %19 = tpu.matmul %18, %7, %cst_8 {dimension_numbers = #tpu.dot_dimension_numbers<[1], [1], [0], [0], [0, 0, 1, 0], [], []>} : vector<8x8xbf16>, vector<8x8xbf16>, vector<8x8xf32> -> vector<8x8xf32>
    %cst_9 = arith.constant dense<0xFF800000> : vector<8xf32>
    %20 = vector.multi_reduction <maximumf>, %19, %cst_9 [1] : vector<8x8xf32> to vector<8xf32>
    %21 = vector.shape_cast %20 : vector<8xf32> to vector<8x1xf32>
    %22 = vector.broadcast %21 : vector<8x1xf32> to vector<8x8xf32>
    %23 = arith.subf %19, %22 : vector<8x8xf32>
    %24 = math.exp %23 : vector<8x8xf32>
    %cst_10 = arith.constant dense<0.000000e+00> : vector<8xf32>
    %25 = vector.multi_reduction <add>, %24, %cst_10 [1] : vector<8x8xf32> to vector<8xf32>
    %26 = vector.shape_cast %25 : vector<8xf32> to vector<8x1xf32>
    %27 = tpu.reciprocal %26 {approx = true} : vector<8x1xf32> -> vector<8x1xf32>
    %28 = vector.broadcast %27 : vector<8x1xf32> to vector<8x8xf32>
    %29 = arith.mulf %24, %28 : vector<8x8xf32>
    %30 = arith.mulf %26, %27 : vector<8x1xf32>
    %31 = arith.extf %9 : vector<8x8xbf16> to vector<8x8xf32>
    %cst_11 = arith.constant 0.353553385 : f32
    %32 = vector.broadcast %cst_11 : f32 to vector<8x8xf32>
    %33 = arith.mulf %31, %32 : vector<8x8xf32>
    %34 = arith.truncf %33 : vector<8x8xf32> to vector<8x8xbf16>
    %cst_12 = arith.constant dense<0.000000e+00> : vector<8x8xf32>
    %35 = tpu.matmul %34, %10, %cst_12 {dimension_numbers = #tpu.dot_dimension_numbers<[1], [1], [0], [0], [0, 0, 1, 0], [], []>} : vector<8x8xbf16>, vector<8x8xbf16>, vector<8x8xf32> -> vector<8x8xf32>
    %cst_13 = arith.constant dense<0xFF800000> : vector<8xf32>
    %36 = vector.multi_reduction <maximumf>, %35, %cst_13 [1] : vector<8x8xf32> to vector<8xf32>
    %37 = vector.shape_cast %36 : vector<8xf32> to vector<8x1xf32>
    %38 = vector.broadcast %37 : vector<8x1xf32> to vector<8x8xf32>
    %39 = arith.subf %35, %38 : vector<8x8xf32>
    %40 = math.exp %39 : vector<8x8xf32>
    %cst_14 = arith.constant dense<0.000000e+00> : vector<8xf32>
    %41 = vector.multi_reduction <add>, %40, %cst_14 [1] : vector<8x8xf32> to vector<8xf32>
    %42 = vector.shape_cast %41 : vector<8xf32> to vector<8x1xf32>
    %43 = tpu.reciprocal %42 {approx = true} : vector<8x1xf32> -> vector<8x1xf32>
    %44 = vector.broadcast %43 : vector<8x1xf32> to vector<8x8xf32>
    %45 = arith.mulf %40, %44 : vector<8x8xf32>
    %46 = arith.mulf %42, %43 : vector<8x1xf32>
    %47 = arith.extf %12 : vector<8x8xbf16> to vector<8x8xf32>
    %cst_15 = arith.constant 0.353553385 : f32
    %48 = vector.broadcast %cst_15 : f32 to vector<8x8xf32>
    %49 = arith.mulf %47, %48 : vector<8x8xf32>
    %50 = arith.truncf %49 : vector<8x8xf32> to vector<8x8xbf16>
    %cst_16 = arith.constant dense<0.000000e+00> : vector<8x8xf32>
    %51 = tpu.matmul %50, %13, %cst_16 {dimension_numbers = #tpu.dot_dimension_numbers<[1], [1], [0], [0], [0, 0, 1, 0], [], []>} : vector<8x8xbf16>, vector<8x8xbf16>, vector<8x8xf32> -> vector<8x8xf32>
    %cst_17 = arith.constant dense<0xFF800000> : vector<8xf32>
    %52 = vector.multi_reduction <maximumf>, %51, %cst_17 [1] : vector<8x8xf32> to vector<8xf32>
    %53 = vector.shape_cast %52 : vector<8xf32> to vector<8x1xf32>
    %54 = vector.broadcast %53 : vector<8x1xf32> to vector<8x8xf32>
    %55 = arith.subf %51, %54 : vector<8x8xf32>
    %56 = math.exp %55 : vector<8x8xf32>
    %cst_18 = arith.constant dense<0.000000e+00> : vector<8xf32>
    %57 = vector.multi_reduction <add>, %56, %cst_18 [1] : vector<8x8xf32> to vector<8xf32>
    %58 = vector.shape_cast %57 : vector<8xf32> to vector<8x1xf32>
    %59 = tpu.reciprocal %58 {approx = true} : vector<8x1xf32> -> vector<8x1xf32>
    %60 = vector.broadcast %59 : vector<8x1xf32> to vector<8x8xf32>
    %61 = arith.mulf %56, %60 : vector<8x8xf32>
    %62 = arith.truncf %29 : vector<8x8xf32> to vector<8x8xbf16>
    %63 = arith.truncf %45 : vector<8x8xf32> to vector<8x8xbf16>
    %64 = arith.truncf %61 : vector<8x8xf32> to vector<8x8xbf16>
    %65 = math.rsqrt %30 : vector<8x1xf32>
    %66 = math.rsqrt %46 : vector<8x1xf32>
    %cst_19 = arith.constant dense<0.000000e+00> : vector<8x8xf32>
    %67 = tpu.matmul %62, %8, %cst_19 {dimension_numbers = #tpu.dot_dimension_numbers<[1], [0], [0], [1], [0, 0, 1, 1], [], []>} : vector<8x8xbf16>, vector<8x8xbf16>, vector<8x8xf32> -> vector<8x8xf32>
    %cst_20 = arith.constant dense<0.000000e+00> : vector<8x8xf32>
    %68 = tpu.matmul %63, %11, %cst_20 {dimension_numbers = #tpu.dot_dimension_numbers<[1], [0], [0], [1], [0, 0, 1, 1], [], []>} : vector<8x8xbf16>, vector<8x8xbf16>, vector<8x8xf32> -> vector<8x8xf32>
    %cst_21 = arith.constant dense<0.000000e+00> : vector<8x8xf32>
    %69 = tpu.matmul %64, %14, %cst_21 {dimension_numbers = #tpu.dot_dimension_numbers<[1], [0], [0], [1], [0, 0, 1, 1], [], []>} : vector<8x8xbf16>, vector<8x8xbf16>, vector<8x8xf32> -> vector<8x8xf32>
    %cst_22 = arith.constant dense<0.000000e+00> : vector<8x8xf32>
    %70 = tpu.matmul %62, %11, %cst_22 {dimension_numbers = #tpu.dot_dimension_numbers<[1], [0], [0], [1], [0, 0, 1, 1], [], []>} : vector<8x8xbf16>, vector<8x8xbf16>, vector<8x8xf32> -> vector<8x8xf32>
    %71 = arith.addf %70, %68 : vector<8x8xf32>
    %cst_23 = arith.constant dense<0.000000e+00> : vector<8x8xf32>
    %72 = tpu.matmul %63, %8, %cst_23 {dimension_numbers = #tpu.dot_dimension_numbers<[1], [0], [0], [1], [0, 0, 1, 1], [], []>} : vector<8x8xbf16>, vector<8x8xbf16>, vector<8x8xf32> -> vector<8x8xf32>
    %73 = arith.addf %67, %72 : vector<8x8xf32>
    %74 = arith.extf %11 : vector<8x8xbf16> to vector<8x8xf32>
    %75 = vector.broadcast %66 : vector<8x1xf32> to vector<8x8xf32>
    %76 = arith.mulf %75, %74 : vector<8x8xf32>
    %77 = arith.truncf %76 : vector<8x8xf32> to vector<8x8xbf16>
    %cst_24 = arith.constant dense<0.000000e+00> : vector<8x8xf32>
    %78 = tpu.matmul %63, %77, %cst_24 {dimension_numbers = #tpu.dot_dimension_numbers<[1], [0], [0], [1], [0, 0, 1, 1], [], []>} : vector<8x8xbf16>, vector<8x8xbf16>, vector<8x8xf32> -> vector<8x8xf32>
    %79 = vector.broadcast %66 : vector<8x1xf32> to vector<8x8xf32>
    %80 = arith.mulf %79, %78 : vector<8x8xf32>
    %81 = vector.broadcast %65 : vector<8x1xf32> to vector<8x8xf32>
    %82 = arith.mulf %81, %80 : vector<8x8xf32>
    %83 = arith.truncf %82 : vector<8x8xf32> to vector<8x8xbf16>
    %cst_25 = arith.constant dense<0.000000e+00> : vector<8x8xf32>
    %84 = tpu.matmul %62, %83, %cst_25 {dimension_numbers = #tpu.dot_dimension_numbers<[0], [0], [1], [1], [0, 1, 1, 1], [], []>} : vector<8x8xbf16>, vector<8x8xbf16>, vector<8x8xf32> -> vector<8x8xf32>
    %85 = vector.broadcast %65 : vector<8x1xf32> to vector<8x8xf32>
    %86 = arith.mulf %85, %84 : vector<8x8xf32>
    %cst_26 = arith.constant 6.000000e-01 : f32
    %87 = vector.broadcast %cst_26 : f32 to vector<8x8xf32>
    %88 = arith.mulf %87, %86 : vector<8x8xf32>
    %cst_27 = arith.constant 4.000000e-01 : f32
    %89 = vector.broadcast %cst_27 : f32 to vector<8x8xf32>
    %90 = arith.mulf %89, %71 : vector<8x8xf32>
    %91 = arith.addf %88, %90 : vector<8x8xf32>
    %92 = arith.extf %8 : vector<8x8xbf16> to vector<8x8xf32>
    %93 = vector.broadcast %65 : vector<8x1xf32> to vector<8x8xf32>
    %94 = arith.mulf %93, %92 : vector<8x8xf32>
    %95 = arith.truncf %94 : vector<8x8xf32> to vector<8x8xbf16>
    %cst_28 = arith.constant dense<0.000000e+00> : vector<8x8xf32>
    %96 = tpu.matmul %62, %95, %cst_28 {dimension_numbers = #tpu.dot_dimension_numbers<[1], [0], [0], [1], [0, 0, 1, 1], [], []>} : vector<8x8xbf16>, vector<8x8xbf16>, vector<8x8xf32> -> vector<8x8xf32>
    %97 = vector.broadcast %65 : vector<8x1xf32> to vector<8x8xf32>
    %98 = arith.mulf %97, %96 : vector<8x8xf32>
    %99 = vector.broadcast %66 : vector<8x1xf32> to vector<8x8xf32>
    %100 = arith.mulf %99, %98 : vector<8x8xf32>
    %101 = arith.truncf %100 : vector<8x8xf32> to vector<8x8xbf16>
    %cst_29 = arith.constant dense<0.000000e+00> : vector<8x8xf32>
    %102 = tpu.matmul %63, %101, %cst_29 {dimension_numbers = #tpu.dot_dimension_numbers<[0], [0], [1], [1], [0, 1, 1, 1], [], []>} : vector<8x8xbf16>, vector<8x8xbf16>, vector<8x8xf32> -> vector<8x8xf32>
    %103 = vector.broadcast %66 : vector<8x1xf32> to vector<8x8xf32>
    %104 = arith.mulf %103, %102 : vector<8x8xf32>
    %cst_30 = arith.constant 6.000000e-01 : f32
    %105 = vector.broadcast %cst_30 : f32 to vector<8x8xf32>
    %106 = arith.mulf %105, %104 : vector<8x8xf32>
    %cst_31 = arith.constant 4.000000e-01 : f32
    %107 = vector.broadcast %cst_31 : f32 to vector<8x8xf32>
    %108 = arith.mulf %107, %73 : vector<8x8xf32>
    %109 = arith.addf %106, %108 : vector<8x8xf32>
    %110 = vector.extract_strided_slice %1 {offsets = [0, 8], sizes = [8, 8], strides = [1, 1]} : vector<8x48xbf16> to vector<8x8xbf16>
    %111 = vector.extract_strided_slice %1 {offsets = [0, 24], sizes = [8, 8], strides = [1, 1]} : vector<8x48xbf16> to vector<8x8xbf16>
    %112 = vector.extract_strided_slice %1 {offsets = [0, 40], sizes = [8, 8], strides = [1, 1]} : vector<8x48xbf16> to vector<8x8xbf16>
    %113 = vector.extract_strided_slice %3 {offsets = [0, 8], sizes = [8, 8], strides = [1, 1]} : vector<8x48xbf16> to vector<8x8xbf16>
    %114 = vector.extract_strided_slice %3 {offsets = [0, 24], sizes = [8, 8], strides = [1, 1]} : vector<8x48xbf16> to vector<8x8xbf16>
    %115 = vector.extract_strided_slice %3 {offsets = [0, 40], sizes = [8, 8], strides = [1, 1]} : vector<8x48xbf16> to vector<8x8xbf16>
    %116 = vector.extract_strided_slice %5 {offsets = [0, 8], sizes = [8, 8], strides = [1, 1]} : vector<8x48xbf16> to vector<8x8xbf16>
    %117 = vector.extract_strided_slice %5 {offsets = [0, 24], sizes = [8, 8], strides = [1, 1]} : vector<8x48xbf16> to vector<8x8xbf16>
    %118 = vector.extract_strided_slice %5 {offsets = [0, 40], sizes = [8, 8], strides = [1, 1]} : vector<8x48xbf16> to vector<8x8xbf16>
    %119 = arith.extf %110 : vector<8x8xbf16> to vector<8x8xf32>
    %cst_32 = arith.constant 0.353553385 : f32
    %120 = vector.broadcast %cst_32 : f32 to vector<8x8xf32>
    %121 = arith.mulf %119, %120 : vector<8x8xf32>
    %122 = arith.truncf %121 : vector<8x8xf32> to vector<8x8xbf16>
    %cst_33 = arith.constant dense<0.000000e+00> : vector<8x8xf32>
    %123 = tpu.matmul %122, %111, %cst_33 {dimension_numbers = #tpu.dot_dimension_numbers<[1], [1], [0], [0], [0, 0, 1, 0], [], []>} : vector<8x8xbf16>, vector<8x8xbf16>, vector<8x8xf32> -> vector<8x8xf32>
    %cst_34 = arith.constant dense<0xFF800000> : vector<8xf32>
    %124 = vector.multi_reduction <maximumf>, %123, %cst_34 [1] : vector<8x8xf32> to vector<8xf32>
    %125 = vector.shape_cast %124 : vector<8xf32> to vector<8x1xf32>
    %126 = vector.broadcast %125 : vector<8x1xf32> to vector<8x8xf32>
    %127 = arith.subf %123, %126 : vector<8x8xf32>
    %128 = math.exp %127 : vector<8x8xf32>
    %cst_35 = arith.constant dense<0.000000e+00> : vector<8xf32>
    %129 = vector.multi_reduction <add>, %128, %cst_35 [1] : vector<8x8xf32> to vector<8xf32>
    %130 = vector.shape_cast %129 : vector<8xf32> to vector<8x1xf32>
    %131 = tpu.reciprocal %130 {approx = true} : vector<8x1xf32> -> vector<8x1xf32>
    %132 = vector.broadcast %131 : vector<8x1xf32> to vector<8x8xf32>
    %133 = arith.mulf %128, %132 : vector<8x8xf32>
    %134 = arith.mulf %130, %131 : vector<8x1xf32>
    %135 = arith.extf %113 : vector<8x8xbf16> to vector<8x8xf32>
    %cst_36 = arith.constant 0.353553385 : f32
    %136 = vector.broadcast %cst_36 : f32 to vector<8x8xf32>
    %137 = arith.mulf %135, %136 : vector<8x8xf32>
    %138 = arith.truncf %137 : vector<8x8xf32> to vector<8x8xbf16>
    %cst_37 = arith.constant dense<0.000000e+00> : vector<8x8xf32>
    %139 = tpu.matmul %138, %114, %cst_37 {dimension_numbers = #tpu.dot_dimension_numbers<[1], [1], [0], [0], [0, 0, 1, 0], [], []>} : vector<8x8xbf16>, vector<8x8xbf16>, vector<8x8xf32> -> vector<8x8xf32>
    %cst_38 = arith.constant dense<0xFF800000> : vector<8xf32>
    %140 = vector.multi_reduction <maximumf>, %139, %cst_38 [1] : vector<8x8xf32> to vector<8xf32>
    %141 = vector.shape_cast %140 : vector<8xf32> to vector<8x1xf32>
    %142 = vector.broadcast %141 : vector<8x1xf32> to vector<8x8xf32>
    %143 = arith.subf %139, %142 : vector<8x8xf32>
    %144 = math.exp %143 : vector<8x8xf32>
    %cst_39 = arith.constant dense<0.000000e+00> : vector<8xf32>
    %145 = vector.multi_reduction <add>, %144, %cst_39 [1] : vector<8x8xf32> to vector<8xf32>
    %146 = vector.shape_cast %145 : vector<8xf32> to vector<8x1xf32>
    %147 = tpu.reciprocal %146 {approx = true} : vector<8x1xf32> -> vector<8x1xf32>
    %148 = vector.broadcast %147 : vector<8x1xf32> to vector<8x8xf32>
    %149 = arith.mulf %144, %148 : vector<8x8xf32>
    %150 = arith.mulf %146, %147 : vector<8x1xf32>
    %151 = arith.extf %116 : vector<8x8xbf16> to vector<8x8xf32>
    %cst_40 = arith.constant 0.353553385 : f32
    %152 = vector.broadcast %cst_40 : f32 to vector<8x8xf32>
    %153 = arith.mulf %151, %152 : vector<8x8xf32>
    %154 = arith.truncf %153 : vector<8x8xf32> to vector<8x8xbf16>
    %cst_41 = arith.constant dense<0.000000e+00> : vector<8x8xf32>
    %155 = tpu.matmul %154, %117, %cst_41 {dimension_numbers = #tpu.dot_dimension_numbers<[1], [1], [0], [0], [0, 0, 1, 0], [], []>} : vector<8x8xbf16>, vector<8x8xbf16>, vector<8x8xf32> -> vector<8x8xf32>
    %cst_42 = arith.constant dense<0xFF800000> : vector<8xf32>
    %156 = vector.multi_reduction <maximumf>, %155, %cst_42 [1] : vector<8x8xf32> to vector<8xf32>
    %157 = vector.shape_cast %156 : vector<8xf32> to vector<8x1xf32>
    %158 = vector.broadcast %157 : vector<8x1xf32> to vector<8x8xf32>
    %159 = arith.subf %155, %158 : vector<8x8xf32>
    %160 = math.exp %159 : vector<8x8xf32>
    %cst_43 = arith.constant dense<0.000000e+00> : vector<8xf32>
    %161 = vector.multi_reduction <add>, %160, %cst_43 [1] : vector<8x8xf32> to vector<8xf32>
    %162 = vector.shape_cast %161 : vector<8xf32> to vector<8x1xf32>
    %163 = tpu.reciprocal %162 {approx = true} : vector<8x1xf32> -> vector<8x1xf32>
    %164 = vector.broadcast %163 : vector<8x1xf32> to vector<8x8xf32>
    %165 = arith.mulf %160, %164 : vector<8x8xf32>
    %166 = arith.truncf %133 : vector<8x8xf32> to vector<8x8xbf16>
    %167 = arith.truncf %149 : vector<8x8xf32> to vector<8x8xbf16>
    %168 = arith.truncf %165 : vector<8x8xf32> to vector<8x8xbf16>
    %169 = math.rsqrt %134 : vector<8x1xf32>
    %170 = math.rsqrt %150 : vector<8x1xf32>
    %cst_44 = arith.constant dense<0.000000e+00> : vector<8x8xf32>
    %171 = tpu.matmul %166, %112, %cst_44 {dimension_numbers = #tpu.dot_dimension_numbers<[1], [0], [0], [1], [0, 0, 1, 1], [], []>} : vector<8x8xbf16>, vector<8x8xbf16>, vector<8x8xf32> -> vector<8x8xf32>
    %cst_45 = arith.constant dense<0.000000e+00> : vector<8x8xf32>
    %172 = tpu.matmul %167, %115, %cst_45 {dimension_numbers = #tpu.dot_dimension_numbers<[1], [0], [0], [1], [0, 0, 1, 1], [], []>} : vector<8x8xbf16>, vector<8x8xbf16>, vector<8x8xf32> -> vector<8x8xf32>
    %cst_46 = arith.constant dense<0.000000e+00> : vector<8x8xf32>
    %173 = tpu.matmul %168, %118, %cst_46 {dimension_numbers = #tpu.dot_dimension_numbers<[1], [0], [0], [1], [0, 0, 1, 1], [], []>} : vector<8x8xbf16>, vector<8x8xbf16>, vector<8x8xf32> -> vector<8x8xf32>
    %cst_47 = arith.constant dense<0.000000e+00> : vector<8x8xf32>
    %174 = tpu.matmul %166, %115, %cst_47 {dimension_numbers = #tpu.dot_dimension_numbers<[1], [0], [0], [1], [0, 0, 1, 1], [], []>} : vector<8x8xbf16>, vector<8x8xbf16>, vector<8x8xf32> -> vector<8x8xf32>
    %175 = arith.addf %174, %172 : vector<8x8xf32>
    %cst_48 = arith.constant dense<0.000000e+00> : vector<8x8xf32>
    %176 = tpu.matmul %167, %112, %cst_48 {dimension_numbers = #tpu.dot_dimension_numbers<[1], [0], [0], [1], [0, 0, 1, 1], [], []>} : vector<8x8xbf16>, vector<8x8xbf16>, vector<8x8xf32> -> vector<8x8xf32>
    %177 = arith.addf %171, %176 : vector<8x8xf32>
    %178 = arith.extf %115 : vector<8x8xbf16> to vector<8x8xf32>
    %179 = vector.broadcast %170 : vector<8x1xf32> to vector<8x8xf32>
    %180 = arith.mulf %179, %178 : vector<8x8xf32>
    %181 = arith.truncf %180 : vector<8x8xf32> to vector<8x8xbf16>
    %cst_49 = arith.constant dense<0.000000e+00> : vector<8x8xf32>
    %182 = tpu.matmul %167, %181, %cst_49 {dimension_numbers = #tpu.dot_dimension_numbers<[1], [0], [0], [1], [0, 0, 1, 1], [], []>} : vector<8x8xbf16>, vector<8x8xbf16>, vector<8x8xf32> -> vector<8x8xf32>
    %183 = vector.broadcast %170 : vector<8x1xf32> to vector<8x8xf32>
    %184 = arith.mulf %183, %182 : vector<8x8xf32>
    %185 = vector.broadcast %169 : vector<8x1xf32> to vector<8x8xf32>
    %186 = arith.mulf %185, %184 : vector<8x8xf32>
    %187 = arith.truncf %186 : vector<8x8xf32> to vector<8x8xbf16>
    %cst_50 = arith.constant dense<0.000000e+00> : vector<8x8xf32>
    %188 = tpu.matmul %166, %187, %cst_50 {dimension_numbers = #tpu.dot_dimension_numbers<[0], [0], [1], [1], [0, 1, 1, 1], [], []>} : vector<8x8xbf16>, vector<8x8xbf16>, vector<8x8xf32> -> vector<8x8xf32>
    %189 = vector.broadcast %169 : vector<8x1xf32> to vector<8x8xf32>
    %190 = arith.mulf %189, %188 : vector<8x8xf32>
    %cst_51 = arith.constant 6.000000e-01 : f32
    %191 = vector.broadcast %cst_51 : f32 to vector<8x8xf32>
    %192 = arith.mulf %191, %190 : vector<8x8xf32>
    %cst_52 = arith.constant 4.000000e-01 : f32
    %193 = vector.broadcast %cst_52 : f32 to vector<8x8xf32>
    %194 = arith.mulf %193, %175 : vector<8x8xf32>
    %195 = arith.addf %192, %194 : vector<8x8xf32>
    %196 = arith.extf %112 : vector<8x8xbf16> to vector<8x8xf32>
    %197 = vector.broadcast %169 : vector<8x1xf32> to vector<8x8xf32>
    %198 = arith.mulf %197, %196 : vector<8x8xf32>
    %199 = arith.truncf %198 : vector<8x8xf32> to vector<8x8xbf16>
    %cst_53 = arith.constant dense<0.000000e+00> : vector<8x8xf32>
    %200 = tpu.matmul %166, %199, %cst_53 {dimension_numbers = #tpu.dot_dimension_numbers<[1], [0], [0], [1], [0, 0, 1, 1], [], []>} : vector<8x8xbf16>, vector<8x8xbf16>, vector<8x8xf32> -> vector<8x8xf32>
    %201 = vector.broadcast %169 : vector<8x1xf32> to vector<8x8xf32>
    %202 = arith.mulf %201, %200 : vector<8x8xf32>
    %203 = vector.broadcast %170 : vector<8x1xf32> to vector<8x8xf32>
    %204 = arith.mulf %203, %202 : vector<8x8xf32>
    %205 = arith.truncf %204 : vector<8x8xf32> to vector<8x8xbf16>
    %cst_54 = arith.constant dense<0.000000e+00> : vector<8x8xf32>
    %206 = tpu.matmul %167, %205, %cst_54 {dimension_numbers = #tpu.dot_dimension_numbers<[0], [0], [1], [1], [0, 1, 1, 1], [], []>} : vector<8x8xbf16>, vector<8x8xbf16>, vector<8x8xf32> -> vector<8x8xf32>
    %207 = vector.broadcast %170 : vector<8x1xf32> to vector<8x8xf32>
    %208 = arith.mulf %207, %206 : vector<8x8xf32>
    %cst_55 = arith.constant 6.000000e-01 : f32
    %209 = vector.broadcast %cst_55 : f32 to vector<8x8xf32>
    %210 = arith.mulf %209, %208 : vector<8x8xf32>
    %cst_56 = arith.constant 4.000000e-01 : f32
    %211 = vector.broadcast %cst_56 : f32 to vector<8x8xf32>
    %212 = arith.mulf %211, %177 : vector<8x8xf32>
    %213 = arith.addf %210, %212 : vector<8x8xf32>
    %214 = tpu.concatenate %67, %171, %91, %195 in 1 : vector<8x8xf32>, vector<8x8xf32>, vector<8x8xf32>, vector<8x8xf32> -> vector<8x32xf32>
    %215 = arith.truncf %214 : vector<8x32xf32> to vector<8x32xbf16>
    %c0_57 = arith.constant 0 : index
    %c0_58 = arith.constant 0 : index
    %c0_59 = arith.constant 0 : index
    %216 = vector.load %arg4[%c0_57, %c0_58, %c0_59] : memref<1x8x32xbf16, #tpu.memory_space<vmem>>, vector<1x8x32xbf16>
    %217 = vector.shape_cast %216 : vector<1x8x32xbf16> to vector<8x32xbf16>
    %218 = vector.shape_cast %215 : vector<8x32xbf16> to vector<1x8x32xbf16>
    tpu.vector_store %arg4[%c0_57, %c0_58, %c0_59], %218 {strides = array<i32>} : memref<1x8x32xbf16, #tpu.memory_space<vmem>>, vector<1x8x32xbf16>,
    %219 = tpu.concatenate %68, %172, %109, %213 in 1 : vector<8x8xf32>, vector<8x8xf32>, vector<8x8xf32>, vector<8x8xf32> -> vector<8x32xf32>
    %220 = arith.truncf %219 : vector<8x32xf32> to vector<8x32xbf16>
    %c0_60 = arith.constant 0 : index
    %c0_61 = arith.constant 0 : index
    %c0_62 = arith.constant 0 : index
    %221 = vector.load %arg5[%c0_60, %c0_61, %c0_62] : memref<1x8x32xbf16, #tpu.memory_space<vmem>>, vector<1x8x32xbf16>
    %222 = vector.shape_cast %221 : vector<1x8x32xbf16> to vector<8x32xbf16>
    %223 = vector.shape_cast %220 : vector<8x32xbf16> to vector<1x8x32xbf16>
    tpu.vector_store %arg5[%c0_60, %c0_61, %c0_62], %223 {strides = array<i32>} : memref<1x8x32xbf16, #tpu.memory_space<vmem>>, vector<1x8x32xbf16>,
    %224 = tpu.concatenate %69, %173 in 1 : vector<8x8xf32>, vector<8x8xf32> -> vector<8x16xf32>
    %225 = arith.truncf %224 : vector<8x16xf32> to vector<8x16xbf16>
    %c0_63 = arith.constant 0 : index
    %c0_64 = arith.constant 0 : index
    %c0_65 = arith.constant 0 : index
    %226 = vector.load %arg6[%c0_63, %c0_64, %c0_65] : memref<1x8x16xbf16, #tpu.memory_space<vmem>>, vector<1x8x16xbf16>
    %227 = vector.shape_cast %226 : vector<1x8x16xbf16> to vector<8x16xbf16>
    %228 = vector.shape_cast %225 : vector<8x16xbf16> to vector<1x8x16xbf16>
    tpu.vector_store %arg6[%c0_63, %c0_64, %c0_65], %228 {strides = array<i32>} : memref<1x8x16xbf16, #tpu.memory_space<vmem>>, vector<1x8x16xbf16>,
    return
  }
  func.func @transform_0(%arg0: i32) -> (i32, i32, i32) {
    %c0_i32 = arith.constant 0 : i32
    %c0_i32_0 = arith.constant 0 : i32
    %c0_i32_1 = arith.constant 0 : i32
    return %arg0, %c0_i32, %c0_i32_0 : i32, i32, i32
  }
  func.func @transform_1(%arg0: i32) -> (i32, i32, i32) {
    %c0_i32 = arith.constant 0 : i32
    %c0_i32_0 = arith.constant 0 : i32
    %c0_i32_1 = arith.constant 0 : i32
    return %arg0, %c0_i32, %c0_i32_0 : i32, i32, i32
  }
  func.func @transform_2(%arg0: i32) -> (i32, i32, i32) {
    %c0_i32 = arith.constant 0 : i32
    %c0_i32_0 = arith.constant 0 : i32
    %c0_i32_1 = arith.constant 0 : i32
    return %arg0, %c0_i32, %c0_i32_0 : i32, i32, i32
  }
  func.func @transform_3(%arg0: i32) -> (i32, i32, i32) {
    %c0_i32 = arith.constant 0 : i32
    %c0_i32_0 = arith.constant 0 : i32
    %c0_i32_1 = arith.constant 0 : i32
    return %arg0, %c0_i32, %c0_i32_0 : i32, i32, i32
  }
  func.func @transform_4(%arg0: i32) -> (i32, i32, i32) {
    %c0_i32 = arith.constant 0 : i32
    %c0_i32_0 = arith.constant 0 : i32
    %c0_i32_1 = arith.constant 0 : i32
    return %arg0, %c0_i32, %c0_i32_0 : i32, i32, i32
  }
  func.func @transform_5(%arg0: i32) -> (i32, i32, i32) {
    %c0_i32 = arith.constant 0 : i32
    %c0_i32_0 = arith.constant 0 : i32
    %c0_i32_1 = arith.constant 0 : i32
    return %arg0, %c0_i32, %c0_i32_0 : i32, i32, i32
  }
}

module attributes {stable_mosaic.version = 11 : i64} {
  func.func @_epilogue_kernel(%arg0: i32, %arg1: memref<16x32xbf16, #tpu.memory_space<vmem>>, %arg2: memref<16x32xbf16, #tpu.memory_space<vmem>>, %arg3: memref<16x16xbf16, #tpu.memory_space<vmem>>, %arg4: memref<32x16xbf16, #tpu.memory_space<vmem>>, %arg5: memref<1x16xf32, #tpu.memory_space<vmem>>, %arg6: memref<32x16xbf16, #tpu.memory_space<vmem>>, %arg7: memref<1x16xf32, #tpu.memory_space<vmem>>, %arg8: memref<16x16xbf16, #tpu.memory_space<vmem>>, %arg9: memref<1x16xf32, #tpu.memory_space<vmem>>, %arg10: memref<32x16xbf16, #tpu.memory_space<vmem>>, %arg11: memref<1x16xf32, #tpu.memory_space<vmem>>, %arg12: memref<16x16xf32, #tpu.memory_space<vmem>>) attributes {dimension_semantics = [#tpu.dimension_semantics<parallel>], iteration_bounds = array<i64: 1>, scalar_prefetch = 0 : i64, scratch_operands = 0 : i64, tpu.core_type = #tpu.core_type<tc>, window_params = [{transform_indices = @transform_0, window_bounds = array<i64: 16, 32>}, {transform_indices = @transform_1, window_bounds = array<i64: 16, 32>}, {transform_indices = @transform_2, window_bounds = array<i64: 16, 16>}, {pipeline_mode = #tpu.pipeline_mode<synchronous>, transform_indices = @transform_3, window_bounds = array<i64: 32, 16>}, {pipeline_mode = #tpu.pipeline_mode<synchronous>, transform_indices = @transform_4, window_bounds = array<i64: 1, 16>}, {pipeline_mode = #tpu.pipeline_mode<synchronous>, transform_indices = @transform_5, window_bounds = array<i64: 32, 16>}, {pipeline_mode = #tpu.pipeline_mode<synchronous>, transform_indices = @transform_6, window_bounds = array<i64: 1, 16>}, {pipeline_mode = #tpu.pipeline_mode<synchronous>, transform_indices = @transform_7, window_bounds = array<i64: 16, 16>}, {pipeline_mode = #tpu.pipeline_mode<synchronous>, transform_indices = @transform_8, window_bounds = array<i64: 1, 16>}, {pipeline_mode = #tpu.pipeline_mode<synchronous>, transform_indices = @transform_9, window_bounds = array<i64: 32, 16>}, {pipeline_mode = #tpu.pipeline_mode<synchronous>, transform_indices = @transform_10, window_bounds = array<i64: 1, 16>}, {transform_indices = @transform_11, window_bounds = array<i64: 16, 16>}]} {
    %c0 = arith.constant 0 : index
    %c0_0 = arith.constant 0 : index
    %0 = vector.load %arg1[%c0, %c0_0] : memref<16x32xbf16, #tpu.memory_space<vmem>>, vector<16x32xbf16>
    %c0_1 = arith.constant 0 : index
    %c0_2 = arith.constant 0 : index
    %1 = vector.load %arg4[%c0_1, %c0_2] : memref<32x16xbf16, #tpu.memory_space<vmem>>, vector<32x16xbf16>
    %cst = arith.constant dense<0.000000e+00> : vector<16x16xf32>
    %2 = tpu.matmul %0, %1, %cst {dimension_numbers = #tpu.dot_dimension_numbers<[1], [0], [0], [1], [0, 0, 1, 1], [], []>} : vector<16x32xbf16>, vector<32x16xbf16>, vector<16x16xf32> -> vector<16x16xf32>
    %c0_3 = arith.constant 0 : index
    %c0_4 = arith.constant 0 : index
    %3 = vector.load %arg5[%c0_3, %c0_4] : memref<1x16xf32, #tpu.memory_space<vmem>>, vector<1x16xf32>
    %4 = vector.broadcast %3 : vector<1x16xf32> to vector<16x16xf32>
    %5 = arith.addf %2, %4 : vector<16x16xf32>
    %c0_5 = arith.constant 0 : index
    %c0_6 = arith.constant 0 : index
    %6 = vector.load %arg2[%c0_5, %c0_6] : memref<16x32xbf16, #tpu.memory_space<vmem>>, vector<16x32xbf16>
    %c0_7 = arith.constant 0 : index
    %c0_8 = arith.constant 0 : index
    %7 = vector.load %arg6[%c0_7, %c0_8] : memref<32x16xbf16, #tpu.memory_space<vmem>>, vector<32x16xbf16>
    %cst_9 = arith.constant dense<0.000000e+00> : vector<16x16xf32>
    %8 = tpu.matmul %6, %7, %cst_9 {dimension_numbers = #tpu.dot_dimension_numbers<[1], [0], [0], [1], [0, 0, 1, 1], [], []>} : vector<16x32xbf16>, vector<32x16xbf16>, vector<16x16xf32> -> vector<16x16xf32>
    %c0_10 = arith.constant 0 : index
    %c0_11 = arith.constant 0 : index
    %9 = vector.load %arg7[%c0_10, %c0_11] : memref<1x16xf32, #tpu.memory_space<vmem>>, vector<1x16xf32>
    %10 = vector.broadcast %9 : vector<1x16xf32> to vector<16x16xf32>
    %11 = arith.addf %8, %10 : vector<16x16xf32>
    %12 = tpu.concatenate %5, %11 in 1 : vector<16x16xf32>, vector<16x16xf32> -> vector<16x32xf32>
    %13 = arith.truncf %12 : vector<16x32xf32> to vector<16x32xbf16>
    %c0_12 = arith.constant 0 : index
    %c0_13 = arith.constant 0 : index
    %14 = vector.load %arg3[%c0_12, %c0_13] : memref<16x16xbf16, #tpu.memory_space<vmem>>, vector<16x16xbf16>
    %c0_14 = arith.constant 0 : index
    %c0_15 = arith.constant 0 : index
    %15 = vector.load %arg8[%c0_14, %c0_15] : memref<16x16xbf16, #tpu.memory_space<vmem>>, vector<16x16xbf16>
    %cst_16 = arith.constant dense<0.000000e+00> : vector<16x16xf32>
    %16 = tpu.matmul %14, %15, %cst_16 {dimension_numbers = #tpu.dot_dimension_numbers<[1], [0], [0], [1], [0, 0, 1, 1], [], []>} : vector<16x16xbf16>, vector<16x16xbf16>, vector<16x16xf32> -> vector<16x16xf32>
    %c0_17 = arith.constant 0 : index
    %c0_18 = arith.constant 0 : index
    %17 = vector.load %arg10[%c0_17, %c0_18] : memref<32x16xbf16, #tpu.memory_space<vmem>>, vector<32x16xbf16>
    %cst_19 = arith.constant dense<0.000000e+00> : vector<16x16xf32>
    %18 = tpu.matmul %13, %17, %cst_19 {dimension_numbers = #tpu.dot_dimension_numbers<[1], [0], [0], [1], [0, 0, 1, 1], [], []>} : vector<16x32xbf16>, vector<32x16xbf16>, vector<16x16xf32> -> vector<16x16xf32>
    %19 = arith.addf %16, %18 : vector<16x16xf32>
    %c0_20 = arith.constant 0 : index
    %c0_21 = arith.constant 0 : index
    %20 = vector.load %arg9[%c0_20, %c0_21] : memref<1x16xf32, #tpu.memory_space<vmem>>, vector<1x16xf32>
    %21 = vector.broadcast %20 : vector<1x16xf32> to vector<16x16xf32>
    %22 = arith.addf %19, %21 : vector<16x16xf32>
    %c0_22 = arith.constant 0 : index
    %c0_23 = arith.constant 0 : index
    %23 = vector.load %arg11[%c0_22, %c0_23] : memref<1x16xf32, #tpu.memory_space<vmem>>, vector<1x16xf32>
    %24 = vector.broadcast %23 : vector<1x16xf32> to vector<16x16xf32>
    %25 = arith.addf %22, %24 : vector<16x16xf32>
    %c0_24 = arith.constant 0 : index
    %c0_25 = arith.constant 0 : index
    %26 = vector.load %arg12[%c0_24, %c0_25] : memref<16x16xf32, #tpu.memory_space<vmem>>, vector<16x16xf32>
    tpu.vector_store %arg12[%c0_24, %c0_25], %25 {strides = array<i32>} : memref<16x16xf32, #tpu.memory_space<vmem>>, vector<16x16xf32>,
    return
  }
  func.func @transform_0(%arg0: i32) -> (i32, i32) {
    %c0_i32 = arith.constant 0 : i32
    %c0_i32_0 = arith.constant 0 : i32
    return %arg0, %c0_i32 : i32, i32
  }
  func.func @transform_1(%arg0: i32) -> (i32, i32) {
    %c0_i32 = arith.constant 0 : i32
    %c0_i32_0 = arith.constant 0 : i32
    return %arg0, %c0_i32 : i32, i32
  }
  func.func @transform_2(%arg0: i32) -> (i32, i32) {
    %c0_i32 = arith.constant 0 : i32
    %c0_i32_0 = arith.constant 0 : i32
    return %arg0, %c0_i32 : i32, i32
  }
  func.func @transform_3(%arg0: i32) -> (i32, i32) {
    %c0_i32 = arith.constant 0 : i32
    %c0_i32_0 = arith.constant 0 : i32
    %c0_i32_1 = arith.constant 0 : i32
    return %c0_i32, %c0_i32_0 : i32, i32
  }
  func.func @transform_4(%arg0: i32) -> (i32, i32) {
    %c0_i32 = arith.constant 0 : i32
    %c0_i32_0 = arith.constant 0 : i32
    %c0_i32_1 = arith.constant 0 : i32
    return %c0_i32, %c0_i32_0 : i32, i32
  }
  func.func @transform_5(%arg0: i32) -> (i32, i32) {
    %c0_i32 = arith.constant 0 : i32
    %c0_i32_0 = arith.constant 0 : i32
    %c0_i32_1 = arith.constant 0 : i32
    return %c0_i32, %c0_i32_0 : i32, i32
  }
  func.func @transform_6(%arg0: i32) -> (i32, i32) {
    %c0_i32 = arith.constant 0 : i32
    %c0_i32_0 = arith.constant 0 : i32
    %c0_i32_1 = arith.constant 0 : i32
    return %c0_i32, %c0_i32_0 : i32, i32
  }
  func.func @transform_7(%arg0: i32) -> (i32, i32) {
    %c0_i32 = arith.constant 0 : i32
    %c0_i32_0 = arith.constant 0 : i32
    %c0_i32_1 = arith.constant 0 : i32
    return %c0_i32, %c0_i32_0 : i32, i32
  }
  func.func @transform_8(%arg0: i32) -> (i32, i32) {
    %c0_i32 = arith.constant 0 : i32
    %c0_i32_0 = arith.constant 0 : i32
    %c0_i32_1 = arith.constant 0 : i32
    return %c0_i32, %c0_i32_0 : i32, i32
  }
  func.func @transform_9(%arg0: i32) -> (i32, i32) {
    %c0_i32 = arith.constant 0 : i32
    %c0_i32_0 = arith.constant 0 : i32
    %c0_i32_1 = arith.constant 0 : i32
    return %c0_i32, %c0_i32_0 : i32, i32
  }
  func.func @transform_10(%arg0: i32) -> (i32, i32) {
    %c0_i32 = arith.constant 0 : i32
    %c0_i32_0 = arith.constant 0 : i32
    %c0_i32_1 = arith.constant 0 : i32
    return %c0_i32, %c0_i32_0 : i32, i32
  }
  func.func @transform_11(%arg0: i32) -> (i32, i32) {
    %c0_i32 = arith.constant 0 : i32
    %c0_i32_0 = arith.constant 0 : i32
    return %arg0, %c0_i32 : i32, i32
  }
}

module attributes {stable_mosaic.version = 11 : i64} {
  func.func @_qkv_kernel(%arg0: i32, %arg1: memref<16x32xf32, #tpu.memory_space<vmem>>, %arg2: memref<16x16xf32, #tpu.memory_space<vmem>>, %arg3: memref<16x48xbf16, #tpu.memory_space<vmem>>, %arg4: memref<16x48xbf16, #tpu.memory_space<vmem>>, %arg5: memref<16x48xbf16, #tpu.memory_space<vmem>>, %arg6: memref<16x48xbf16, #tpu.memory_space<vmem>>, %arg7: memref<16x48xbf16, #tpu.memory_space<vmem>>, %arg8: memref<16x48xbf16, #tpu.memory_space<vmem>>) attributes {dimension_semantics = [#tpu.dimension_semantics<parallel>], iteration_bounds = array<i64: 1>, scalar_prefetch = 0 : i64, scratch_operands = 0 : i64, tpu.core_type = #tpu.core_type<tc>, window_params = [{transform_indices = @transform_0, window_bounds = array<i64: 16, 32>}, {transform_indices = @transform_1, window_bounds = array<i64: 16, 16>}, {pipeline_mode = #tpu.pipeline_mode<synchronous>, transform_indices = @transform_2, window_bounds = array<i64: 16, 48>}, {pipeline_mode = #tpu.pipeline_mode<synchronous>, transform_indices = @transform_3, window_bounds = array<i64: 16, 48>}, {pipeline_mode = #tpu.pipeline_mode<synchronous>, transform_indices = @transform_4, window_bounds = array<i64: 16, 48>}, {transform_indices = @transform_5, window_bounds = array<i64: 16, 48>}, {transform_indices = @transform_6, window_bounds = array<i64: 16, 48>}, {transform_indices = @transform_7, window_bounds = array<i64: 16, 48>}]} {
    %c0 = arith.constant 0 : index
    %c0_0 = arith.constant 0 : index
    %0 = vector.load %arg1[%c0, %c0_0] : memref<16x32xf32, #tpu.memory_space<vmem>>, vector<16x32xf32>
    %1 = arith.truncf %0 : vector<16x32xf32> to vector<16x32xbf16>
    %c0_1 = arith.constant 0 : index
    %c0_2 = arith.constant 0 : index
    %2 = vector.load %arg2[%c0_1, %c0_2] : memref<16x16xf32, #tpu.memory_space<vmem>>, vector<16x16xf32>
    %3 = arith.truncf %2 : vector<16x16xf32> to vector<16x16xbf16>
    %4 = vector.extract_strided_slice %1 {offsets = [0, 0], sizes = [16, 16], strides = [1, 1]} : vector<16x32xbf16> to vector<16x16xbf16>
    %5 = vector.extract_strided_slice %1 {offsets = [0, 16], sizes = [16, 16], strides = [1, 1]} : vector<16x32xbf16> to vector<16x16xbf16>
    %c0_3 = arith.constant 0 : index
    %c0_4 = arith.constant 0 : index
    %6 = vector.load %arg3[%c0_3, %c0_4] : memref<16x48xbf16, #tpu.memory_space<vmem>>, vector<16x48xbf16>
    %cst = arith.constant dense<0.000000e+00> : vector<16x48xf32>
    %7 = tpu.matmul %4, %6, %cst {dimension_numbers = #tpu.dot_dimension_numbers<[1], [0], [0], [1], [0, 0, 1, 1], [], []>} : vector<16x16xbf16>, vector<16x48xbf16>, vector<16x48xf32> -> vector<16x48xf32>
    %8 = arith.truncf %7 : vector<16x48xf32> to vector<16x48xbf16>
    %c0_5 = arith.constant 0 : index
    %c0_6 = arith.constant 0 : index
    %9 = vector.load %arg6[%c0_5, %c0_6] : memref<16x48xbf16, #tpu.memory_space<vmem>>, vector<16x48xbf16>
    tpu.vector_store %arg6[%c0_5, %c0_6], %8 {strides = array<i32>} : memref<16x48xbf16, #tpu.memory_space<vmem>>, vector<16x48xbf16>,
    %c0_7 = arith.constant 0 : index
    %c0_8 = arith.constant 0 : index
    %10 = vector.load %arg4[%c0_7, %c0_8] : memref<16x48xbf16, #tpu.memory_space<vmem>>, vector<16x48xbf16>
    %cst_9 = arith.constant dense<0.000000e+00> : vector<16x48xf32>
    %11 = tpu.matmul %5, %10, %cst_9 {dimension_numbers = #tpu.dot_dimension_numbers<[1], [0], [0], [1], [0, 0, 1, 1], [], []>} : vector<16x16xbf16>, vector<16x48xbf16>, vector<16x48xf32> -> vector<16x48xf32>
    %12 = arith.truncf %11 : vector<16x48xf32> to vector<16x48xbf16>
    %c0_10 = arith.constant 0 : index
    %c0_11 = arith.constant 0 : index
    %13 = vector.load %arg7[%c0_10, %c0_11] : memref<16x48xbf16, #tpu.memory_space<vmem>>, vector<16x48xbf16>
    tpu.vector_store %arg7[%c0_10, %c0_11], %12 {strides = array<i32>} : memref<16x48xbf16, #tpu.memory_space<vmem>>, vector<16x48xbf16>,
    %c0_12 = arith.constant 0 : index
    %c0_13 = arith.constant 0 : index
    %14 = vector.load %arg5[%c0_12, %c0_13] : memref<16x48xbf16, #tpu.memory_space<vmem>>, vector<16x48xbf16>
    %cst_14 = arith.constant dense<0.000000e+00> : vector<16x48xf32>
    %15 = tpu.matmul %3, %14, %cst_14 {dimension_numbers = #tpu.dot_dimension_numbers<[1], [0], [0], [1], [0, 0, 1, 1], [], []>} : vector<16x16xbf16>, vector<16x48xbf16>, vector<16x48xf32> -> vector<16x48xf32>
    %16 = arith.truncf %15 : vector<16x48xf32> to vector<16x48xbf16>
    %c0_15 = arith.constant 0 : index
    %c0_16 = arith.constant 0 : index
    %17 = vector.load %arg8[%c0_15, %c0_16] : memref<16x48xbf16, #tpu.memory_space<vmem>>, vector<16x48xbf16>
    tpu.vector_store %arg8[%c0_15, %c0_16], %16 {strides = array<i32>} : memref<16x48xbf16, #tpu.memory_space<vmem>>, vector<16x48xbf16>,
    return
  }
  func.func @transform_0(%arg0: i32) -> (i32, i32) {
    %c0_i32 = arith.constant 0 : i32
    %c0_i32_0 = arith.constant 0 : i32
    return %arg0, %c0_i32 : i32, i32
  }
  func.func @transform_1(%arg0: i32) -> (i32, i32) {
    %c0_i32 = arith.constant 0 : i32
    %c0_i32_0 = arith.constant 0 : i32
    return %arg0, %c0_i32 : i32, i32
  }
  func.func @transform_2(%arg0: i32) -> (i32, i32) {
    %c0_i32 = arith.constant 0 : i32
    %c0_i32_0 = arith.constant 0 : i32
    %c0_i32_1 = arith.constant 0 : i32
    return %c0_i32, %c0_i32_0 : i32, i32
  }
  func.func @transform_3(%arg0: i32) -> (i32, i32) {
    %c0_i32 = arith.constant 0 : i32
    %c0_i32_0 = arith.constant 0 : i32
    %c0_i32_1 = arith.constant 0 : i32
    return %c0_i32, %c0_i32_0 : i32, i32
  }
  func.func @transform_4(%arg0: i32) -> (i32, i32) {
    %c0_i32 = arith.constant 0 : i32
    %c0_i32_0 = arith.constant 0 : i32
    %c0_i32_1 = arith.constant 0 : i32
    return %c0_i32, %c0_i32_0 : i32, i32
  }
  func.func @transform_5(%arg0: i32) -> (i32, i32) {
    %c0_i32 = arith.constant 0 : i32
    %c0_i32_0 = arith.constant 0 : i32
    return %arg0, %c0_i32 : i32, i32
  }
  func.func @transform_6(%arg0: i32) -> (i32, i32) {
    %c0_i32 = arith.constant 0 : i32
    %c0_i32_0 = arith.constant 0 : i32
    return %arg0, %c0_i32 : i32, i32
  }
  func.func @transform_7(%arg0: i32) -> (i32, i32) {
    %c0_i32 = arith.constant 0 : i32
    %c0_i32_0 = arith.constant 0 : i32
    return %arg0, %c0_i32 : i32, i32
  }
}

</mosaic_0001>

<llo_original>
// kernel: multi_attention_forward.3
$region0: #{multi_attention_forward.3}
  #allocation0 [shape = 'u32[]', space=smem, size = 0x4, offset = 0x4, fixed_abs, tag = 'smem constant byte address 0x4 - core index']
  #allocation1 [shape = 'u32[144,128]{1,0:T(1,128)}', space=vmem, size = 0x12000, scoped, tag = 'internal scratch']
  %s0 = inlined_call_operand.vmem [shape: f32[16,32], index: 0, kind: input, shape index: {}]
  %s1 = inlined_call_operand.hbm [shape: f32[16,16], index: 1, kind: input, shape index: {}]
  %s2 = inlined_call_operand.vmem [shape: bf16[16,48], index: 2, kind: input, shape index: {}]
  %s3 = inlined_call_operand.hbm [shape: bf16[16,48], index: 3, kind: input, shape index: {}]
  %s4 = inlined_call_operand.hbm [shape: bf16[16,48], index: 4, kind: input, shape index: {}]
  %s5 = inlined_call_operand.vmem [shape: bf16[16,48], index: 5, kind: output, shape index: {0}]
  %s6 = inlined_call_operand.vmem [shape: bf16[16,48], index: 6, kind: output, shape index: {1}]
  %s7 = inlined_call_operand.vmem [shape: bf16[16,48], index: 7, kind: output, shape index: {2}]
  %8 = xla_tuple %s5, %s6, %s7
  %s9 = sld [smem:[#allocation0]]
  $region58: #{multi_attention_forward.3} parent=0
    _
  %s11 = ssub.s32 1, %s9
  %s12 = scalar_select 0, %s11, %s9
  $region1: #{multi_attention_forward.3} parent=0
    #allocation2 [shape = 'u8[8192]{0}', space=vmem, size = 0x2000, scoped, tag = 'input window, operand 1, single buffered']
    #allocation3 [shape = 's32[1]{0}', space=sflag, size = 0x4, scoped, tag = 'scoped memory for multi_attention_forward.3']
    #allocation4 [shape = 'u8[4096]{0}', space=vmem, size = 0x1000, scoped, tag = 'input window, operand 3, single buffered']
    #allocation5 [shape = 's32[1]{0}', space=sflag, size = 0x4, scoped, tag = 'scoped memory for multi_attention_forward.3']
    #allocation6 [shape = 'u8[4096]{0}', space=vmem, size = 0x1000, scoped, tag = 'input window, operand 4, single buffered']
    %13 = vsyncpa [#allocation3], 0
    %14 = vsyncpa [#allocation5], 0
    // Predicated region
    $region2: #{multi_attention_forward.3} parent=1 // pred_check
      _
    $region3: #{multi_attention_forward.3} parent=1 // pred_check_branch
      %16 = sbr.rel (0) target = $region5
    $region4: #{multi_attention_forward.3} parent=1 // pred_region
      _
    $region5: #{multi_attention_forward.3} parent=1 // pred_fallthru
      _
    // Predicated region
    $region6: #{multi_attention_forward.3} parent=1 // pred_check
      _
    $region7: #{multi_attention_forward.3} parent=1 // pred_check_branch
      %18 = sbr.rel (0) target = $region9
    $region8: #{multi_attention_forward.3} parent=1 // pred_region
      %s20 = ssub.s32 256, 256
      %21 = vsyncadd [#allocation3], %s20
      %s22 = sshll.u32 [#allocation2], 4
      %s23 = int_to_ptr.vmem [resolvable:$true] %s22
      %28 = dma.hbm_to_vmem [thread:$0]  %s1, 256, %s23, [#allocation3], 128, 128, 8
    $region9: #{multi_attention_forward.3} parent=1 // pred_fallthru
      _
    // Predicated region
    $region10: #{multi_attention_forward.3} parent=1 // pred_check
      _
    $region11: #{multi_attention_forward.3} parent=1 // pred_check_branch
      %30 = sbr.rel (0) target = $region13
    $region12: #{multi_attention_forward.3} parent=1 // pred_region
      _
    $region13: #{multi_attention_forward.3} parent=1 // pred_fallthru
      _
    // Predicated region
    $region14: #{multi_attention_forward.3} parent=1 // pred_check
      _
    $region15: #{multi_attention_forward.3} parent=1 // pred_check_branch
      %32 = sbr.rel (0) target = $region17
    $region16: #{multi_attention_forward.3} parent=1 // pred_region
      %s34 = ssub.s32 128, 128
      %35 = vsyncadd [#allocation5], %s34
      %s36 = sshll.u32 [#allocation4], 4
      %s37 = int_to_ptr.vmem [resolvable:$true] %s36
      %42 = dma.hbm_to_vmem [thread:$0]  %s3, 128, %s37, [#allocation5], 64, 64, 4
    $region17: #{multi_attention_forward.3} parent=1 // pred_fallthru
      _
    // Predicated region
    $region18: #{multi_attention_forward.3} parent=1 // pred_check
      _
    $region19: #{multi_attention_forward.3} parent=1 // pred_check_branch
      %44 = sbr.rel (0) target = $region21
    $region20: #{multi_attention_forward.3} parent=1 // pred_region
      %s46 = ssub.s32 128, 128
      %47 = vsyncadd [#allocation5], %s46
      %s48 = sshll.u32 [#allocation6], 4
      %s49 = int_to_ptr.vmem [resolvable:$true] %s48
      %54 = dma.hbm_to_vmem [thread:$0]  %s4, 128, %s49, [#allocation5], 64, 64, 4
    $region21: #{multi_attention_forward.3} parent=1 // pred_fallthru
      _
    // Predicated region
    $region22: #{multi_attention_forward.3} parent=1 // pred_check
      _
    $region23: #{multi_attention_forward.3} parent=1 // pred_check_branch
      %56 = sbr.rel (0) target = $region25
    $region24: #{multi_attention_forward.3} parent=1 // pred_region
      %57 = dma.done [#allocation3], 256
    $region25: #{multi_attention_forward.3} parent=1 // pred_fallthru
      _
    // Predicated region
    $region26: #{multi_attention_forward.3} parent=1 // pred_check
      _
    $region27: #{multi_attention_forward.3} parent=1 // pred_check_branch
      %59 = sbr.rel (0) target = $region29
    $region28: #{multi_attention_forward.3} parent=1 // pred_region
      %60 = dma.done [#allocation5], 128
    $region29: #{multi_attention_forward.3} parent=1 // pred_fallthru
      _
    // Predicated region
    $region30: #{multi_attention_forward.3} parent=1 // pred_check
      _
    $region31: #{multi_attention_forward.3} parent=1 // pred_check_branch
      %62 = sbr.rel (0) target = $region33
    $region32: #{multi_attention_forward.3} parent=1 // pred_region
      %63 = dma.done [#allocation5], 128
    $region33: #{multi_attention_forward.3} parent=1 // pred_fallthru
      _
    %v65 = vld [vmem:[%s0] sm:$0xff]
    %v66 = vld [vmem:[%s0 + $0x8] sm:$0xff]
    %v67 = vpack.c.bf16 %v66, %v65
    %v68 = vld [vmem:[#allocation2] sm:$0xff]
    %v69 = vld [vmem:[#allocation2 + $0x8] sm:$0xff]
    %v70 = vpack.c.bf16 %v69, %v68
    %v71 = vld [vmem:[%s2] sm:$0xf]
    %v72 = vld [vmem:[%s2 + $0x4] sm:$0xf]
    %v75 = vunpack.c.l.b16 %v71
    %v76 = vunpack.c.l.b16 %v72
    %v77 = vpack.c.b16 %v76, %v75
    %vm79 = vcmask 130048
    %v81 = vsel %vm79, %v67, 0
    %83 = vmatprep.subr.bf16.mxu0 0
    %84 = vmatpush1.bf16.msra.mxu0 0
    %85 = vmatprep.subr.bf16.mxu0 0
    %86 = vmatpush1.bf16.msra.mxu0 0
    %87 = vmatprep.subr.bf16.mxu0 0
    %88 = vmatpush1.bf16.msra.mxu0 0
    %89 = vmatprep.subr.bf16.mxu0 0
    %90 = vmatpush1.bf16.msra.mxu0 0
    %91 = vmatprep.subr.bf16.mxu0 0
    %92 = vmatpush1.bf16.msra.mxu0 0
    %93 = vmatprep.subr.bf16.mxu0 0
    %94 = vmatpush1.bf16.msra.mxu0 0
    %95 = vmatprep.subr.bf16.mxu0 0
    %96 = vmatpush1.bf16.msra.mxu0 0
    %97 = vmatprep.subr.bf16.mxu0 0
    %98 = vmatpush1.bf16.msra.mxu0 %v77
    %99 = vmatprep.subr.bf16.mxu0 0
    %100 = vmatpush2.bf16.msra.mxu0 0
    %101 = vmatprep.subr.bf16.mxu0 0
    %102 = vmatpush2.bf16.msra.mxu0 0
    %103 = vmatprep.subr.bf16.mxu0 0
    %104 = vmatpush2.bf16.msra.mxu0 0
    %105 = vmatprep.subr.bf16.mxu0 0
    %106 = vmatpush2.bf16.msra.mxu0 0
    %107 = vmatprep.subr.bf16.mxu0 0
    %108 = vmatpush2.bf16.msra.mxu0 0
    %109 = vmatprep.subr.bf16.mxu0 0
    %110 = vmatpush2.bf16.msra.mxu0 0
    %111 = vmatprep.subr.bf16.mxu0 0
    %112 = vmatpush2.bf16.msra.mxu0 0
    %113 = vmatprep.subr.bf16.mxu0 0
    %114 = vmatpush2.bf16.msra.mxu0 0
    %115 = vmatprep.mubr.bf16.mxu0 0
    %116 = vmatmul.mubr.bf16.gmra.mxu0 %v81
    %v117 = vpop.f32.mrf.mxu0
    %v118 = vadd.f32 0.0, %v117
    %v119 = vpop.f32.mrf.mxu0
    %v120 = vpop.f32.mrf.mxu0
    %v121 = vadd.f32 0.0, %v120
    %v122 = vpop.f32.mrf.mxu0
    %123 = vdwg.mxu0
    %v124 = vpack.c.bf16 %v121, %v118
    %v126 = vunpack.c.l.b16 %v124
    %v127 = vunpack.c.h.b16 %v124
    %v128 = vpack.c.b16 %v126, %v126
    %v129 = vpack.c.b16 %v127, %v127
    %vm132 = vcmask 388096
    %133 = vst.msk [vmem:[%s5] sm:$0xf] %vm132, %v128
    %134 = vst.msk [vmem:[%s5 + $0x4] sm:$0xf] %vm132, %v129
    %v135 = vld [vmem:[#allocation4] sm:$0xf]
    %v136 = vld [vmem:[#allocation4 + $0x4] sm:$0xf]
    %138 = vrot.lane.b32.xlu0 %v67, 112
    %v139 = vpop.permute.xlu0 %138
    %v142 = vunpack.c.l.b16 %v135
    %v143 = vunpack.c.l.b16 %v136
    %v144 = vpack.c.b16 %v143, %v142
    %v147 = vsel %vm79, %v139, 0
    %149 = vmatprep.subr.bf16.mxu0 0
    %150 = vmatpush1.bf16.msra.mxu0 0
    %151 = vmatprep.subr.bf16.mxu0 0
    %152 = vmatpush1.bf16.msra.mxu0 0
    %153 = vmatprep.subr.bf16.mxu0 0
    %154 = vmatpush1.bf16.msra.mxu0 0
    %155 = vmatprep.subr.bf16.mxu0 0
    %156 = vmatpush1.bf16.msra.mxu0 0
    %157 = vmatprep.subr.bf16.mxu0 0
    %158 = vmatpush1.bf16.msra.mxu0 0
    %159 = vmatprep.subr.bf16.mxu0 0
    %160 = vmatpush1.bf16.msra.mxu0 0
    %161 = vmatprep.subr.bf16.mxu0 0
    %162 = vmatpush1.bf16.msra.mxu0 0
    %163 = vmatprep.subr.bf16.mxu0 0
    %164 = vmatpush1.bf16.msra.mxu0 %v144
    %165 = vmatprep.subr.bf16.mxu0 0
    %166 = vmatpush2.bf16.msra.mxu0 0
    %167 = vmatprep.subr.bf16.mxu0 0
    %168 = vmatpush2.bf16.msra.mxu0 0
    %169 = vmatprep.subr.bf16.mxu0 0
    %170 = vmatpush2.bf16.msra.mxu0 0
    %171 = vmatprep.subr.bf16.mxu0 0
    %172 = vmatpush2.bf16.msra.mxu0 0
    %173 = vmatprep.subr.bf16.mxu0 0
    %174 = vmatpush2.bf16.msra.mxu0 0
    %175 = vmatprep.subr.bf16.mxu0 0
    %176 = vmatpush2.bf16.msra.mxu0 0
    %177 = vmatprep.subr.bf16.mxu0 0
    %178 = vmatpush2.bf16.msra.mxu0 0
    %179 = vmatprep.subr.bf16.mxu0 0
    %180 = vmatpush2.bf16.msra.mxu0 0
    %181 = vmatprep.mubr.bf16.mxu0 0
    %182 = vmatmul.mubr.bf16.gmra.mxu0 %v147
    %v183 = vpop.f32.mrf.mxu0
    %v184 = vadd.f32 0.0, %v183
    %v185 = vpop.f32.mrf.mxu0
    %v186 = vpop.f32.mrf.mxu0
    %v187 = vadd.f32 0.0, %v186
    %v188 = vpop.f32.mrf.mxu0
    %189 = vdwg.mxu0
    %v190 = vpack.c.bf16 %v187, %v184
    %v192 = vunpack.c.l.b16 %v190
    %v193 = vunpack.c.h.b16 %v190
    %v194 = vpack.c.b16 %v192, %v192
    %v195 = vpack.c.b16 %v193, %v193
    %198 = vst.msk [vmem:[%s6] sm:$0xf] %vm132, %v194
    %199 = vst.msk [vmem:[%s6 + $0x4] sm:$0xf] %vm132, %v195
    %v200 = vld [vmem:[#allocation6] sm:$0xf]
    %v201 = vld [vmem:[#allocation6 + $0x4] sm:$0xf]
    %v204 = vunpack.c.l.b16 %v200
    %v205 = vunpack.c.l.b16 %v201
    %v206 = vpack.c.b16 %v205, %v204
    %v209 = vsel %vm79, %v70, 0
    %211 = vmatprep.subr.bf16.mxu0 0
    %212 = vmatpush1.bf16.msra.mxu0 0
    %213 = vmatprep.subr.bf16.mxu0 0
    %214 = vmatpush1.bf16.msra.mxu0 0
    %215 = vmatprep.subr.bf16.mxu0 0
    %216 = vmatpush1.bf16.msra.mxu0 0
    %217 = vmatprep.subr.bf16.mxu0 0
    %218 = vmatpush1.bf16.msra.mxu0 0
    %219 = vmatprep.subr.bf16.mxu0 0
    %220 = vmatpush1.bf16.msra.mxu0 0
    %221 = vmatprep.subr.bf16.mxu0 0
    %222 = vmatpush1.bf16.msra.mxu0 0
    %223 = vmatprep.subr.bf16.mxu0 0
    %224 = vmatpush1.bf16.msra.mxu0 0
    %225 = vmatprep.subr.bf16.mxu0 0
    %226 = vmatpush1.bf16.msra.mxu0 %v206
    %227 = vmatprep.subr.bf16.mxu0 0
    %228 = vmatpush2.bf16.msra.mxu0 0
    %229 = vmatprep.subr.bf16.mxu0 0
    %230 = vmatpush2.bf16.msra.mxu0 0
    %231 = vmatprep.subr.bf16.mxu0 0
    %232 = vmatpush2.bf16.msra.mxu0 0
    %233 = vmatprep.subr.bf16.mxu0 0
    %234 = vmatpush2.bf16.msra.mxu0 0
    %235 = vmatprep.subr.bf16.mxu0 0
    %236 = vmatpush2.bf16.msra.mxu0 0
    %237 = vmatprep.subr.bf16.mxu0 0
    %238 = vmatpush2.bf16.msra.mxu0 0
    %239 = vmatprep.subr.bf16.mxu0 0
    %240 = vmatpush2.bf16.msra.mxu0 0
    %241 = vmatprep.subr.bf16.mxu0 0
    %242 = vmatpush2.bf16.msra.mxu0 0
    %243 = vmatprep.mubr.bf16.mxu0 0
    %244 = vmatmul.mubr.bf16.gmra.mxu0 %v209
    %v245 = vpop.f32.mrf.mxu0
    %v246 = vadd.f32 0.0, %v245
    %v247 = vpop.f32.mrf.mxu0
    %v248 = vpop.f32.mrf.mxu0
    %v249 = vadd.f32 0.0, %v248
    %v250 = vpop.f32.mrf.mxu0
    %251 = vdwg.mxu0
    %v252 = vpack.c.bf16 %v249, %v246
    %v254 = vunpack.c.l.b16 %v252
    %v255 = vunpack.c.h.b16 %v252
    %v256 = vpack.c.b16 %v254, %v254
    %v257 = vpack.c.b16 %v255, %v255
    %260 = vst.msk [vmem:[%s7] sm:$0xf] %vm132, %v256
    %261 = vst.msk [vmem:[%s7 + $0x4] sm:$0xf] %vm132, %v257
    // Predicated region
    $region34: #{multi_attention_forward.3} parent=1 // pred_check
      _
    $region35: #{multi_attention_forward.3} parent=1 // pred_check_branch
      %263 = sbr.rel (0) target = $region37
    $region36: #{multi_attention_forward.3} parent=1 // pred_region
      _
    $region37: #{multi_attention_forward.3} parent=1 // pred_fallthru
      _
    // Predicated region
    $region38: #{multi_attention_forward.3} parent=1 // pred_check
      _
    $region39: #{multi_attention_forward.3} parent=1 // pred_check_branch
      %265 = sbr.rel (0) target = $region41
    $region40: #{multi_attention_forward.3} parent=1 // pred_region
      _
    $region41: #{multi_attention_forward.3} parent=1 // pred_fallthru
      _
    // Predicated region
    $region42: #{multi_attention_forward.3} parent=1 // pred_check
      _
    $region43: #{multi_attention_forward.3} parent=1 // pred_check_branch
      %267 = sbr.rel (0) target = $region45
    $region44: #{multi_attention_forward.3} parent=1 // pred_region
      _
    $region45: #{multi_attention_forward.3} parent=1 // pred_fallthru
      _
    // Predicated region
    $region46: #{multi_attention_forward.3} parent=1 // pred_check
      _
    $region47: #{multi_attention_forward.3} parent=1 // pred_check_branch
      %269 = sbr.rel (0) target = $region49
    $region48: #{multi_attention_forward.3} parent=1 // pred_region
      _
    $region49: #{multi_attention_forward.3} parent=1 // pred_fallthru
      _
    // Predicated region
    $region50: #{multi_attention_forward.3} parent=1 // pred_check
      _
    $region51: #{multi_attention_forward.3} parent=1 // pred_check_branch
      %271 = sbr.rel (0) target = $region53
    $region52: #{multi_attention_forward.3} parent=1 // pred_region
      _
    $region53: #{multi_attention_forward.3} parent=1 // pred_fallthru
      _
    // Predicated region
    $region54: #{multi_attention_forward.3} parent=1 // pred_check
      _
    $region55: #{multi_attention_forward.3} parent=1 // pred_check_branch
      %273 = sbr.rel (0) target = $region57
    $region56: #{multi_attention_forward.3} parent=1 // pred_region
      _
    $region57: #{multi_attention_forward.3} parent=1 // pred_fallthru
      _
    %274 = vsyncpa [#allocation3], 1
    %275 = vsyncpa [#allocation5], 1

// kernel: multi_attention_forward.5
$region0: #{multi_attention_forward.5}
  #allocation0 [shape = 'u32[]', space=smem, size = 0x4, offset = 0x4, fixed_abs, tag = 'smem constant byte address 0x4 - core index']
  #allocation1 [shape = 'u32[144,128]{1,0:T(1,128)}', space=vmem, size = 0x12000, scoped, tag = 'internal scratch']
  %s0 = inlined_call_operand.vmem [shape: bf16[16,32], index: 0, kind: input, shape index: {}]
  %s1 = inlined_call_operand.vmem [shape: bf16[16,32], index: 1, kind: input, shape index: {}]
  %s2 = inlined_call_operand.vmem [shape: bf16[16,16], index: 2, kind: input, shape index: {}]
  %s3 = inlined_call_operand.vmem [shape: bf16[32,16], index: 3, kind: input, shape index: {}]
  %s4 = inlined_call_operand.vmem [shape: f32[1,16], index: 4, kind: input, shape index: {}]
  %s5 = inlined_call_operand.vmem [shape: bf16[32,16], index: 5, kind: input, shape index: {}]
  %s6 = inlined_call_operand.vmem [shape: f32[1,16], index: 6, kind: input, shape index: {}]
  %s7 = inlined_call_operand.vmem [shape: bf16[16,16], index: 7, kind: input, shape index: {}]
  %s8 = inlined_call_operand.vmem [shape: f32[1,16], index: 8, kind: input, shape index: {}]
  %s9 = inlined_call_operand.vmem [shape: bf16[32,16], index: 9, kind: input, shape index: {}]
  %s10 = inlined_call_operand.vmem [shape: f32[1,16], index: 10, kind: input, shape index: {}]
  %s11 = inlined_call_operand.hbm [shape: f32[16,16], index: 11, kind: output, shape index: {}]
  %s12 = sld [smem:[#allocation0]]
  $region54: #{multi_attention_forward.5} parent=0
    _
  %s14 = ssub.s32 1, %s12
  %s15 = scalar_select 0, %s14, %s12
  $region1: #{multi_attention_forward.5} parent=0
    #allocation2 [shape = 'u8[8192]{0}', space=vmem, size = 0x2000, scoped, tag = 'output window, operand 0, single buffered']
    #allocation3 [shape = 's32[1]{0}', space=sflag, size = 0x4, scoped, tag = 'scoped memory for multi_attention_forward.5']
    %16 = vsyncpa [#allocation3], 0
    // Predicated region
    $region2: #{multi_attention_forward.5} parent=1 // pred_check
      _
    $region3: #{multi_attention_forward.5} parent=1 // pred_check_branch
      %18 = sbr.rel (0) target = $region5
    $region4: #{multi_attention_forward.5} parent=1 // pred_region
      _
    $region5: #{multi_attention_forward.5} parent=1 // pred_fallthru
      _
    // Predicated region
    $region6: #{multi_attention_forward.5} parent=1 // pred_check
      _
    $region7: #{multi_attention_forward.5} parent=1 // pred_check_branch
      %20 = sbr.rel (0) target = $region9
    $region8: #{multi_attention_forward.5} parent=1 // pred_region
      _
    $region9: #{multi_attention_forward.5} parent=1 // pred_fallthru
      _
    // Predicated region
    $region10: #{multi_attention_forward.5} parent=1 // pred_check
      _
    $region11: #{multi_attention_forward.5} parent=1 // pred_check_branch
      %22 = sbr.rel (0) target = $region13
    $region12: #{multi_attention_forward.5} parent=1 // pred_region
      _
    $region13: #{multi_attention_forward.5} parent=1 // pred_fallthru
      _
    // Predicated region
    $region14: #{multi_attention_forward.5} parent=1 // pred_check
      _
    $region15: #{multi_attention_forward.5} parent=1 // pred_check_branch
      %24 = sbr.rel (0) target = $region17
    $region16: #{multi_attention_forward.5} parent=1 // pred_region
      _
    $region17: #{multi_attention_forward.5} parent=1 // pred_fallthru
      _
    // Predicated region
    $region18: #{multi_attention_forward.5} parent=1 // pred_check
      _
    $region19: #{multi_attention_forward.5} parent=1 // pred_check_branch
      %26 = sbr.rel (0) target = $region21
    $region20: #{multi_attention_forward.5} parent=1 // pred_region
      _
    $region21: #{multi_attention_forward.5} parent=1 // pred_fallthru
      _
    // Predicated region
    $region22: #{multi_attention_forward.5} parent=1 // pred_check
      _
    $region23: #{multi_attention_forward.5} parent=1 // pred_check_branch
      %28 = sbr.rel (0) target = $region25
    $region24: #{multi_attention_forward.5} parent=1 // pred_region
      _
    $region25: #{multi_attention_forward.5} parent=1 // pred_fallthru
      _
    // Predicated region
    $region26: #{multi_attention_forward.5} parent=1 // pred_check
      _
    $region27: #{multi_attention_forward.5} parent=1 // pred_check_branch
      %30 = sbr.rel (0) target = $region29
    $region28: #{multi_attention_forward.5} parent=1 // pred_region
      _
    $region29: #{multi_attention_forward.5} parent=1 // pred_fallthru
      _
    // Predicated region
    $region30: #{multi_attention_forward.5} parent=1 // pred_check
      _
    $region31: #{multi_attention_forward.5} parent=1 // pred_check_branch
      %32 = sbr.rel (0) target = $region33
    $region32: #{multi_attention_forward.5} parent=1 // pred_region
      _
    $region33: #{multi_attention_forward.5} parent=1 // pred_fallthru
      _
    // Predicated region
    $region34: #{multi_attention_forward.5} parent=1 // pred_check
      _
    $region35: #{multi_attention_forward.5} parent=1 // pred_check_branch
      %34 = sbr.rel (0) target = $region37
    $region36: #{multi_attention_forward.5} parent=1 // pred_region
      _
    $region37: #{multi_attention_forward.5} parent=1 // pred_fallthru
      _
    // Predicated region
    $region38: #{multi_attention_forward.5} parent=1 // pred_check
      _
    $region39: #{multi_attention_forward.5} parent=1 // pred_check_branch
      %36 = sbr.rel (0) target = $region41
    $region40: #{multi_attention_forward.5} parent=1 // pred_region
      _
    $region41: #{multi_attention_forward.5} parent=1 // pred_fallthru
      _
    // Predicated region
    $region42: #{multi_attention_forward.5} parent=1 // pred_check
      _
    $region43: #{multi_attention_forward.5} parent=1 // pred_check_branch
      %38 = sbr.rel (0) target = $region45
    $region44: #{multi_attention_forward.5} parent=1 // pred_region
      _
    $region45: #{multi_attention_forward.5} parent=1 // pred_fallthru
      _
    %v40 = vld [vmem:[%s0] sm:$0xf]
    %v41 = vld [vmem:[%s0 + $0x4] sm:$0xf]
    %v42 = vld [vmem:[%s3] sm:$0xf]
    %v43 = vld [vmem:[%s3 + $0x4] sm:$0xf]
    %v44 = vld [vmem:[%s3 + $0x8] sm:$0xf]
    %v45 = vld [vmem:[%s3 + $0xc] sm:$0xf]
    %v46 = vld [vmem:[%s4] sm:$0x1]
    %v48 = vlaneseq
    %v49 = vshrl.u32 %v48, 7
    %v50 = vsub.s32 0, %v49
    %v51 = vrot.slane %v46, %v50
    %v55 = vunpack.c.l.b16 %v40
    %v56 = vunpack.c.l.b16 %v41
    %v57 = vpack.c.b16 %v56, %v55
    %v62 = vunpack.c.l.b16 %v42
    %v63 = vunpack.c.l.b16 %v43
    %v64 = vunpack.c.l.b16 %v44
    %v65 = vunpack.c.l.b16 %v45
    %v66 = vpack.c.b16 %v63, %v62
    %v67 = vpack.c.b16 %v65, %v64
    %vm70 = vcmask 261120
    %v72 = vsel %vm70, %v57, 0
    %74 = vmatprep.subr.bf16.mxu0 0
    %75 = vmatpush1.bf16.msra.mxu0 0
    %76 = vmatprep.subr.bf16.mxu0 0
    %77 = vmatpush1.bf16.msra.mxu0 0
    %78 = vmatprep.subr.bf16.mxu0 0
    %79 = vmatpush1.bf16.msra.mxu0 0
    %80 = vmatprep.subr.bf16.mxu0 0
    %81 = vmatpush1.bf16.msra.mxu0 0
    %82 = vmatprep.subr.bf16.mxu0 0
    %83 = vmatpush1.bf16.msra.mxu0 0
    %84 = vmatprep.subr.bf16.mxu0 0
    %85 = vmatpush1.bf16.msra.mxu0 0
    %86 = vmatprep.subr.bf16.mxu0 0
    %87 = vmatpush1.bf16.msra.mxu0 %v67
    %88 = vmatprep.subr.bf16.mxu0 0
    %89 = vmatpush1.bf16.msra.mxu0 %v66
    %90 = vmatprep.subr.bf16.mxu0 0
    %91 = vmatpush2.bf16.msra.mxu0 0
    %92 = vmatprep.subr.bf16.mxu0 0
    %93 = vmatpush2.bf16.msra.mxu0 0
    %94 = vmatprep.subr.bf16.mxu0 0
    %95 = vmatpush2.bf16.msra.mxu0 0
    %96 = vmatprep.subr.bf16.mxu0 0
    %97 = vmatpush2.bf16.msra.mxu0 0
    %98 = vmatprep.subr.bf16.mxu0 0
    %99 = vmatpush2.bf16.msra.mxu0 0
    %100 = vmatprep.subr.bf16.mxu0 0
    %101 = vmatpush2.bf16.msra.mxu0 0
    %102 = vmatprep.subr.bf16.mxu0 0
    %103 = vmatpush2.bf16.msra.mxu0 0
    %104 = vmatprep.subr.bf16.mxu0 0
    %105 = vmatpush2.bf16.msra.mxu0 0
    %106 = vmatprep.mubr.bf16.mxu0 0
    %107 = vmatmul.mubr.bf16.gmra.mxu0 %v72
    %v108 = vpop.f32.mrf.mxu0
    %v109 = vadd.f32 %v51, %v108
    %v110 = vpop.f32.mrf.mxu0
    %v111 = vpop.f32.mrf.mxu0
    %v112 = vadd.f32 %v51, %v111
    %v113 = vpop.f32.mrf.mxu0
    %114 = vdwg.mxu0
    %v115 = vld [vmem:[%s1] sm:$0xf]
    %v116 = vld [vmem:[%s1 + $0x4] sm:$0xf]
    %v117 = vld [vmem:[%s5] sm:$0xf]
    %v118 = vld [vmem:[%s5 + $0x4] sm:$0xf]
    %v119 = vld [vmem:[%s5 + $0x8] sm:$0xf]
    %v120 = vld [vmem:[%s5 + $0xc] sm:$0xf]
    %v121 = vld [vmem:[%s6] sm:$0x1]
    %v123 = vlaneseq
    %v124 = vshrl.u32 %v123, 7
    %v125 = vsub.s32 0, %v124
    %v126 = vrot.slane %v121, %v125
    %v130 = vunpack.c.l.b16 %v115
    %v131 = vunpack.c.l.b16 %v116
    %v132 = vpack.c.b16 %v131, %v130
    %v137 = vunpack.c.l.b16 %v117
    %v138 = vunpack.c.l.b16 %v118
    %v139 = vunpack.c.l.b16 %v119
    %v140 = vunpack.c.l.b16 %v120
    %v141 = vpack.c.b16 %v138, %v137
    %v142 = vpack.c.b16 %v140, %v139
    %v146 = vsel %vm70, %v132, 0
    %148 = vmatprep.subr.bf16.mxu0 0
    %149 = vmatpush1.bf16.msra.mxu0 0
    %150 = vmatprep.subr.bf16.mxu0 0
    %151 = vmatpush1.bf16.msra.mxu0 0
    %152 = vmatprep.subr.bf16.mxu0 0
    %153 = vmatpush1.bf16.msra.mxu0 0
    %154 = vmatprep.subr.bf16.mxu0 0
    %155 = vmatpush1.bf16.msra.mxu0 0
    %156 = vmatprep.subr.bf16.mxu0 0
    %157 = vmatpush1.bf16.msra.mxu0 0
    %158 = vmatprep.subr.bf16.mxu0 0
    %159 = vmatpush1.bf16.msra.mxu0 0
    %160 = vmatprep.subr.bf16.mxu0 0
    %161 = vmatpush1.bf16.msra.mxu0 %v142
    %162 = vmatprep.subr.bf16.mxu0 0
    %163 = vmatpush1.bf16.msra.mxu0 %v141
    %164 = vmatprep.subr.bf16.mxu0 0
    %165 = vmatpush2.bf16.msra.mxu0 0
    %166 = vmatprep.subr.bf16.mxu0 0
    %167 = vmatpush2.bf16.msra.mxu0 0
    %168 = vmatprep.subr.bf16.mxu0 0
    %169 = vmatpush2.bf16.msra.mxu0 0
    %170 = vmatprep.subr.bf16.mxu0 0
    %171 = vmatpush2.bf16.msra.mxu0 0
    %172 = vmatprep.subr.bf16.mxu0 0
    %173 = vmatpush2.bf16.msra.mxu0 0
    %174 = vmatprep.subr.bf16.mxu0 0
    %175 = vmatpush2.bf16.msra.mxu0 0
    %176 = vmatprep.subr.bf16.mxu0 0
    %177 = vmatpush2.bf16.msra.mxu0 0
    %178 = vmatprep.subr.bf16.mxu0 0
    %179 = vmatpush2.bf16.msra.mxu0 0
    %180 = vmatprep.mubr.bf16.mxu0 0
    %181 = vmatmul.mubr.bf16.gmra.mxu0 %v146
    %v182 = vpop.f32.mrf.mxu0
    %v183 = vadd.f32 %v126, %v182
    %v184 = vpop.f32.mrf.mxu0
    %v185 = vpop.f32.mrf.mxu0
    %v186 = vadd.f32 %v126, %v185
    %v187 = vpop.f32.mrf.mxu0
    %188 = vdwg.mxu0
    %191 = vrot.lane.b32.xlu0 %v183, 16
    %v192 = vpop.permute.xlu0 %191
    %193 = vrot.lane.b32.xlu0 %v186, 16
    %v194 = vpop.permute.xlu0 %193
    %vm197 = vcmask 130048
    %v198 = vsel %vm197, %v109, %v192
    %v199 = vsel %vm197, %v112, %v194
    %v200 = vpack.c.bf16 %v199, %v198
    %v201 = vld [vmem:[%s2] sm:$0xf]
    %v202 = vld [vmem:[%s2 + $0x4] sm:$0xf]
    %v203 = vld [vmem:[%s7] sm:$0xf]
    %v204 = vld [vmem:[%s7 + $0x4] sm:$0xf]
    %v205 = vld [vmem:[%s9] sm:$0xf]
    %v206 = vld [vmem:[%s9 + $0x4] sm:$0xf]
    %v207 = vld [vmem:[%s9 + $0x8] sm:$0xf]
    %v208 = vld [vmem:[%s9 + $0xc] sm:$0xf]
    %v213 = vunpack.c.l.b16 %v205
    %v214 = vunpack.c.l.b16 %v206
    %v215 = vunpack.c.l.b16 %v207
    %v216 = vunpack.c.l.b16 %v208
    %v217 = vpack.c.b16 %v214, %v213
    %v218 = vpack.c.b16 %v216, %v215
    %v222 = vsel %vm70, %v200, 0
    %224 = vmatprep.subr.bf16.mxu0 0
    %225 = vmatpush1.bf16.msra.mxu0 0
    %226 = vmatprep.subr.bf16.mxu0 0
    %227 = vmatpush1.bf16.msra.mxu0 0
    %228 = vmatprep.subr.bf16.mxu0 0
    %229 = vmatpush1.bf16.msra.mxu0 0
    %230 = vmatprep.subr.bf16.mxu0 0
    %231 = vmatpush1.bf16.msra.mxu0 0
    %232 = vmatprep.subr.bf16.mxu0 0
    %233 = vmatpush1.bf16.msra.mxu0 0
    %234 = vmatprep.subr.bf16.mxu0 0
    %235 = vmatpush1.bf16.msra.mxu0 0
    %236 = vmatprep.subr.bf16.mxu0 0
    %237 = vmatpush1.bf16.msra.mxu0 %v218
    %238 = vmatprep.subr.bf16.mxu0 0
    %239 = vmatpush1.bf16.msra.mxu0 %v217
    %240 = vmatprep.subr.bf16.mxu0 0
    %241 = vmatpush2.bf16.msra.mxu0 0
    %242 = vmatprep.subr.bf16.mxu0 0
    %243 = vmatpush2.bf16.msra.mxu0 0
    %244 = vmatprep.subr.bf16.mxu0 0
    %245 = vmatpush2.bf16.msra.mxu0 0
    %246 = vmatprep.subr.bf16.mxu0 0
    %247 = vmatpush2.bf16.msra.mxu0 0
    %248 = vmatprep.subr.bf16.mxu0 0
    %249 = vmatpush2.bf16.msra.mxu0 0
    %250 = vmatprep.subr.bf16.mxu0 0
    %251 = vmatpush2.bf16.msra.mxu0 0
    %252 = vmatprep.subr.bf16.mxu0 0
    %253 = vmatpush2.bf16.msra.mxu0 0
    %254 = vmatprep.subr.bf16.mxu0 0
    %255 = vmatpush2.bf16.msra.mxu0 0
    %256 = vmatprep.mubr.bf16.mxu0 0
    %257 = vmatmul.mubr.bf16.gmra.mxu0 %v222
    %v258 = vpop.f32.mrf.mxu0
    %v259 = vadd.f32 0.0, %v258
    %v260 = vpop.f32.mrf.mxu0
    %v261 = vpop.f32.mrf.mxu0
    %v262 = vadd.f32 0.0, %v261
    %v263 = vpop.f32.mrf.mxu0
    %264 = vdwg.mxu0
    %v267 = vunpack.c.l.b16 %v201
    %v268 = vunpack.c.l.b16 %v202
    %v269 = vpack.c.b16 %v268, %v267
    %v272 = vunpack.c.l.b16 %v203
    %v273 = vunpack.c.l.b16 %v204
    %v274 = vpack.c.b16 %v273, %v272
    %v277 = vsel %vm197, %v269, 0
    %279 = vmatprep.subr.bf16.mxu0 0
    %280 = vmatpush1.bf16.msra.mxu0 0
    %281 = vmatprep.subr.bf16.mxu0 0
    %282 = vmatpush1.bf16.msra.mxu0 0
    %283 = vmatprep.subr.bf16.mxu0 0
    %284 = vmatpush1.bf16.msra.mxu0 0
    %285 = vmatprep.subr.bf16.mxu0 0
    %286 = vmatpush1.bf16.msra.mxu0 0
    %287 = vmatprep.subr.bf16.mxu0 0
    %288 = vmatpush1.bf16.msra.mxu0 0
    %289 = vmatprep.subr.bf16.mxu0 0
    %290 = vmatpush1.bf16.msra.mxu0 0
    %291 = vmatprep.subr.bf16.mxu0 0
    %292 = vmatpush1.bf16.msra.mxu0 0
    %293 = vmatprep.subr.bf16.mxu0 0
    %294 = vmatpush1.bf16.msra.mxu0 %v274
    %295 = vmatprep.subr.bf16.mxu0 0
    %296 = vmatpush2.bf16.msra.mxu0 0
    %297 = vmatprep.subr.bf16.mxu0 0
    %298 = vmatpush2.bf16.msra.mxu0 0
    %299 = vmatprep.subr.bf16.mxu0 0
    %300 = vmatpush2.bf16.msra.mxu0 0
    %301 = vmatprep.subr.bf16.mxu0 0
    %302 = vmatpush2.bf16.msra.mxu0 0
    %303 = vmatprep.subr.bf16.mxu0 0
    %304 = vmatpush2.bf16.msra.mxu0 0
    %305 = vmatprep.subr.bf16.mxu0 0
    %306 = vmatpush2.bf16.msra.mxu0 0
    %307 = vmatprep.subr.bf16.mxu0 0
    %308 = vmatpush2.bf16.msra.mxu0 0
    %309 = vmatprep.subr.bf16.mxu0 0
    %310 = vmatpush2.bf16.msra.mxu0 0
    %311 = vmatprep.mubr.bf16.mxu0 0
    %312 = vmatmul.mubr.bf16.gmra.mxu0 %v277
    %v313 = vpop.f32.mrf.mxu0
    %v314 = vadd.f32 %v259, %v313
    %v315 = vpop.f32.mrf.mxu0
    %v316 = vpop.f32.mrf.mxu0
    %v317 = vadd.f32 %v262, %v316
    %v318 = vpop.f32.mrf.mxu0
    %319 = vdwg.mxu0
    %v320 = vld [vmem:[%s8] sm:$0x1]
    %v322 = vlaneseq
    %v323 = vshrl.u32 %v322, 7
    %v324 = vsub.s32 0, %v323
    %v325 = vrot.slane %v320, %v324
    %v327 = vadd.f32 %v314, %v325
    %v328 = vadd.f32 %v317, %v325
    %v329 = vld [vmem:[%s10] sm:$0x1]
    %v331 = vlaneseq
    %v332 = vshrl.u32 %v331, 7
    %v333 = vsub.s32 0, %v332
    %v334 = vrot.slane %v329, %v333
    %v336 = vadd.f32 %v327, %v334
    %v337 = vadd.f32 %v328, %v334
    %338 = vst.msk [vmem:[#allocation2] sm:$0xff] %vm197, %v336
    %339 = vst.msk [vmem:[#allocation2 + $0x8] sm:$0xff] %vm197, %v337
    // Predicated region
    $region46: #{multi_attention_forward.5} parent=1 // pred_check
      _
    $region47: #{multi_attention_forward.5} parent=1 // pred_check_branch
      %341 = sbr.rel (0) target = $region49
    $region48: #{multi_attention_forward.5} parent=1 // pred_region
      %s343 = ssub.s32 256, 256
      %344 = vsyncadd [#allocation3], %s343
      %s345 = sshll.u32 [#allocation2], 4
      %s346 = int_to_ptr.vmem [resolvable:$true] %s345
      %351 = dma.vmem_to_hbm [thread:$0]  %s346, 256, %s11, [#allocation3], 128, 128, 8
    $region49: #{multi_attention_forward.5} parent=1 // pred_fallthru
      _
    // Predicated region
    $region50: #{multi_attention_forward.5} parent=1 // pred_check
      _
    $region51: #{multi_attention_forward.5} parent=1 // pred_check_branch
      %353 = sbr.rel (0) target = $region53
    $region52: #{multi_attention_forward.5} parent=1 // pred_region
      %354 = dma.done [#allocation3], 256
    $region53: #{multi_attention_forward.5} parent=1 // pred_fallthru
      _
    %355 = vsyncpa [#allocation3], 1

// kernel: multi_attention_forward.4
$region0: #{multi_attention_forward.4}
  #allocation0 [shape = 'u32[]', space=smem, size = 0x4, offset = 0x4, fixed_abs, tag = 'smem constant byte address 0x4 - core index']
  #allocation1 [shape = 'u32[144,128]{1,0:T(1,128)}', space=vmem, size = 0x12000, scoped, tag = 'internal scratch']
  %s0 = inlined_call_operand.vmem [shape: bf16[2,8,48], index: 0, kind: input, shape index: {}]
  %s1 = inlined_call_operand.vmem [shape: bf16[2,8,48], index: 1, kind: input, shape index: {}]
  %s2 = inlined_call_operand.vmem [shape: bf16[2,8,48], index: 2, kind: input, shape index: {}]
  %s3 = inlined_call_operand.vmem [shape: bf16[2,8,32], index: 3, kind: output, shape index: {0}]
  %s4 = inlined_call_operand.vmem [shape: bf16[2,8,32], index: 4, kind: output, shape index: {1}]
  %s5 = inlined_call_operand.vmem [shape: bf16[2,8,16], index: 5, kind: output, shape index: {2}]
  %6 = xla_tuple %s3, %s4, %s5
  %s7 = sld [smem:[#allocation0]]
  $region61: #{multi_attention_forward.4} parent=0
    _
  %s9 = ssub.s32 1, %s7
  %s10 = scalar_select 0, %s9, %s7
  loop: start=0, step=1, limit=4
  $region2: #{multi_attention_forward.4} parent=0 // loop_pre_header
    _
  $region3: #{multi_attention_forward.4} parent=0 // loop_header
    %s12 = sphi 0, %s16
    %p13 = scmp.ge.s32.totalorder %s12, 4
    %s22 = sphi 0, %s24
    %s25 = sphi 0, %s22
    %s26 = sphi 0, %s25
    %s42 = sphi 0, %s26
    %s48 = sphi 0, %s50
    %s51 = sphi 0, %s48
    %s52 = sphi 0, %s51
    %s68 = sphi 0, %s52
    %s74 = sphi 0, %s76
    %s77 = sphi 0, %s74
    %s78 = sphi 0, %s77
    %s94 = sphi 0, %s78
    %s100 = sphi 0, %s102
    %s103 = sphi 0, %s100
    %s104 = sphi 0, %s103
    %s120 = sphi 0, %s104
    %s126 = sphi 0, %s128
    %s129 = sphi 0, %s126
    %s130 = sphi 0, %s129
    %s146 = sphi 0, %s130
    %s152 = sphi 0, %s154
    %s155 = sphi 0, %s152
    %s156 = sphi 0, %s155
    %s172 = sphi 0, %s156
  $region4: #{multi_attention_forward.4} parent=0 // loop_header_branch
    %15 = sbr.rel (%p13) target = $region8
  $region5: #{multi_attention_forward.4} parent=0 // loop_body
    %s17 = ssub.s32 %s12, 1
    %s18 = ssub.s32 %s12, 2
    %s19 = sadd.s32 %s12, 1
    %s20 = ssub.s32 %s12, %s19
    %p21 = scmp.eq.s32.totalorder %s20, 0
    %s23 = sadd.s32 %s22, 1
    %s24 = scalar_select %p21, %s22, %s23
    %p27 = pneg %p21
    %p28 = scmp.eq.s32.totalorder %s12, 1
    %p29 = por %p27, %p28
    %p30 = scmp.ne.s32.totalorder %s22, %s25
    %p31 = scmp.eq.s32.totalorder %s12, 0
    %p32 = por %p30, %p31
    %p33 = scmp.ne.s32.totalorder %s22, %s25
    %p34 = scmp.eq.s32.totalorder %s17, 1
    %p35 = por %p33, %p34
    %p36 = scmp.ne.s32.totalorder %s25, %s26
    %p37 = scmp.eq.s32.totalorder %s17, 0
    %p38 = por %p36, %p37
    %p39 = scmp.ne.s32.totalorder %s25, %s26
    %p40 = scmp.eq.s32.totalorder %s18, 1
    %p41 = por %p39, %p40
    %p43 = scmp.ne.s32.totalorder %s26, %s42
    %p44 = scmp.eq.s32.totalorder %s18, 0
    %p45 = por %p43, %p44
    %s46 = ssub.s32 %s12, %s19
    %p47 = scmp.eq.s32.totalorder %s46, 0
    %s49 = sadd.s32 %s48, 1
    %s50 = scalar_select %p47, %s48, %s49
    %p53 = pneg %p47
    %p54 = scmp.eq.s32.totalorder %s12, 1
    %p55 = por %p53, %p54
    %p56 = scmp.ne.s32.totalorder %s48, %s51
    %p57 = scmp.eq.s32.totalorder %s12, 0
    %p58 = por %p56, %p57
    %p59 = scmp.ne.s32.totalorder %s48, %s51
    %p60 = scmp.eq.s32.totalorder %s17, 1
    %p61 = por %p59, %p60
    %p62 = scmp.ne.s32.totalorder %s51, %s52
    %p63 = scmp.eq.s32.totalorder %s17, 0
    %p64 = por %p62, %p63
    %p65 = scmp.ne.s32.totalorder %s51, %s52
    %p66 = scmp.eq.s32.totalorder %s18, 1
    %p67 = por %p65, %p66
    %p69 = scmp.ne.s32.totalorder %s52, %s68
    %p70 = scmp.eq.s32.totalorder %s18, 0
    %p71 = por %p69, %p70
    %s72 = ssub.s32 %s12, %s19
    %p73 = scmp.eq.s32.totalorder %s72, 0
    %s75 = sadd.s32 %s74, 1
    %s76 = scalar_select %p73, %s74, %s75
    %p79 = pneg %p73
    %p80 = scmp.eq.s32.totalorder %s12, 1
    %p81 = por %p79, %p80
    %p82 = scmp.ne.s32.totalorder %s74, %s77
    %p83 = scmp.eq.s32.totalorder %s12, 0
    %p84 = por %p82, %p83
    %p85 = scmp.ne.s32.totalorder %s74, %s77
    %p86 = scmp.eq.s32.totalorder %s17, 1
    %p87 = por %p85, %p86
    %p88 = scmp.ne.s32.totalorder %s77, %s78
    %p89 = scmp.eq.s32.totalorder %s17, 0
    %p90 = por %p88, %p89
    %p91 = scmp.ne.s32.totalorder %s77, %s78
    %p92 = scmp.eq.s32.totalorder %s18, 1
    %p93 = por %p91, %p92
    %p95 = scmp.ne.s32.totalorder %s78, %s94
    %p96 = scmp.eq.s32.totalorder %s18, 0
    %p97 = por %p95, %p96
    %s98 = ssub.s32 %s12, %s19
    %p99 = scmp.eq.s32.totalorder %s98, 0
    %s101 = sadd.s32 %s100, 1
    %s102 = scalar_select %p99, %s100, %s101
    %p105 = pneg %p99
    %p106 = scmp.eq.s32.totalorder %s12, 1
    %p107 = por %p105, %p106
    %p108 = scmp.ne.s32.totalorder %s100, %s103
    %p109 = scmp.eq.s32.totalorder %s12, 0
    %p110 = por %p108, %p109
    %p111 = scmp.ne.s32.totalorder %s100, %s103
    %p112 = scmp.eq.s32.totalorder %s17, 1
    %p113 = por %p111, %p112
    %p114 = scmp.ne.s32.totalorder %s103, %s104
    %p115 = scmp.eq.s32.totalorder %s17, 0
    %p116 = por %p114, %p115
    %p117 = scmp.ne.s32.totalorder %s103, %s104
    %p118 = scmp.eq.s32.totalorder %s18, 1
    %p119 = por %p117, %p118
    %p121 = scmp.ne.s32.totalorder %s104, %s120
    %p122 = scmp.eq.s32.totalorder %s18, 0
    %p123 = por %p121, %p122
    %s124 = ssub.s32 %s12, %s19
    %p125 = scmp.eq.s32.totalorder %s124, 0
    %s127 = sadd.s32 %s126, 1
    %s128 = scalar_select %p125, %s126, %s127
    %p131 = pneg %p125
    %p132 = scmp.eq.s32.totalorder %s12, 1
    %p133 = por %p131, %p132
    %p134 = scmp.ne.s32.totalorder %s126, %s129
    %p135 = scmp.eq.s32.totalorder %s12, 0
    %p136 = por %p134, %p135
    %p137 = scmp.ne.s32.totalorder %s126, %s129
    %p138 = scmp.eq.s32.totalorder %s17, 1
    %p139 = por %p137, %p138
    %p140 = scmp.ne.s32.totalorder %s129, %s130
    %p141 = scmp.eq.s32.totalorder %s17, 0
    %p142 = por %p140, %p141
    %p143 = scmp.ne.s32.totalorder %s129, %s130
    %p144 = scmp.eq.s32.totalorder %s18, 1
    %p145 = por %p143, %p144
    %p147 = scmp.ne.s32.totalorder %s130, %s146
    %p148 = scmp.eq.s32.totalorder %s18, 0
    %p149 = por %p147, %p148
    %s150 = ssub.s32 %s12, %s19
    %p151 = scmp.eq.s32.totalorder %s150, 0
    %s153 = sadd.s32 %s152, 1
    %s154 = scalar_select %p151, %s152, %s153
    %p157 = pneg %p151
    %p158 = scmp.eq.s32.totalorder %s12, 1
    %p159 = por %p157, %p158
    %p160 = scmp.ne.s32.totalorder %s152, %s155
    %p161 = scmp.eq.s32.totalorder %s12, 0
    %p162 = por %p160, %p161
    %p163 = scmp.ne.s32.totalorder %s152, %s155
    %p164 = scmp.eq.s32.totalorder %s17, 1
    %p165 = por %p163, %p164
    %p166 = scmp.ne.s32.totalorder %s155, %s156
    %p167 = scmp.eq.s32.totalorder %s17, 0
    %p168 = por %p166, %p167
    %p169 = scmp.ne.s32.totalorder %s155, %s156
    %p170 = scmp.eq.s32.totalorder %s18, 1
    %p171 = por %p169, %p170
    %p173 = scmp.ne.s32.totalorder %s156, %s172
    %p174 = scmp.eq.s32.totalorder %s18, 0
    %p175 = por %p173, %p174
    %p176 = scmp.le.s32.totalorder 1, %s12
    %p177 = scmp.lt.s32.totalorder %s12, 3
    %p178 = pnand %p176, %p177
    %p179 = pneg %p178
    // Predicated region
    $region9: #{multi_attention_forward.4} parent=5 // pred_check
      _
    $region10: #{multi_attention_forward.4} parent=5 // pred_check_branch
      %181 = sbr.rel (%p178) target = $region12
    $region11: #{multi_attention_forward.4} parent=5 // pred_region
      %s182 = ssub.s32 %s12, 1
    $region12: #{multi_attention_forward.4} parent=5 // pred_fallthru
      _
    %p183 = scmp.lt.s32.totalorder %s12, 2
    // Predicated region
    $region13: #{multi_attention_forward.4} parent=5 // pred_check
      %p184 = pneg %p183
    $region14: #{multi_attention_forward.4} parent=5 // pred_check_branch
      %186 = sbr.rel (%p184) target = $region16
    $region15: #{multi_attention_forward.4} parent=5 // pred_region
      // Predicated region
      $region17: #{multi_attention_forward.4} parent=15 // pred_check
        %p187 = pneg %p32
      $region18: #{multi_attention_forward.4} parent=15 // pred_check_branch
        %189 = sbr.rel (%p187) target = $region20
      $region19: #{multi_attention_forward.4} parent=15 // pred_region
        %p190 = scmp.lt.s32.totalorder %s12, 1
        %s191 = scalar_select %p190, %s12, 1
        %s192 = smul.addr %s191, 4
        %s193 = scalar_lea.vmem %s0, %s192
      $region20: #{multi_attention_forward.4} parent=15 // pred_fallthru
        _
      // Predicated region
      $region21: #{multi_attention_forward.4} parent=15 // pred_check
        %p194 = pneg %p58
      $region22: #{multi_attention_forward.4} parent=15 // pred_check_branch
        %196 = sbr.rel (%p194) target = $region24
      $region23: #{multi_attention_forward.4} parent=15 // pred_region
        %p197 = scmp.lt.s32.totalorder %s12, 1
        %s198 = scalar_select %p197, %s12, 1
        %s199 = smul.addr %s198, 4
        %s200 = scalar_lea.vmem %s1, %s199
      $region24: #{multi_attention_forward.4} parent=15 // pred_fallthru
        _
      // Predicated region
      $region25: #{multi_attention_forward.4} parent=15 // pred_check
        %p201 = pneg %p84
      $region26: #{multi_attention_forward.4} parent=15 // pred_check_branch
        %203 = sbr.rel (%p201) target = $region28
      $region27: #{multi_attention_forward.4} parent=15 // pred_region
        %p204 = scmp.lt.s32.totalorder %s12, 1
        %s205 = scalar_select %p204, %s12, 1
        %s206 = smul.addr %s205, 4
        %s207 = scalar_lea.vmem %s2, %s206
      $region28: #{multi_attention_forward.4} parent=15 // pred_fallthru
        _
    $region16: #{multi_attention_forward.4} parent=5 // pred_fallthru
      _
    %p208 = scmp.le.s32.totalorder 1, %s12
    %p209 = scmp.lt.s32.totalorder %s12, 3
    %p210 = pnand %p208, %p209
    %p211 = pneg %p210
    // Predicated region
    $region29: #{multi_attention_forward.4} parent=5 // pred_check
      _
    $region30: #{multi_attention_forward.4} parent=5 // pred_check_branch
      %213 = sbr.rel (%p210) target = $region32
    $region31: #{multi_attention_forward.4} parent=5 // pred_region
      %s214 = ssub.s32 %s12, 1
      %p215 = scmp.lt.s32.totalorder %s17, 1
      %s216 = scalar_select %p215, %s17, 1
      %s217 = smul.addr %s216, 4
      %s218 = scalar_lea.vmem %s0, %s217
      %p219 = pneg %p38
      %p220 = pneg %p35
      %p221 = scmp.lt.s32.totalorder %s17, 1
      %s222 = scalar_select %p221, %s17, 1
      %s223 = smul.addr %s222, 4
      %s224 = scalar_lea.vmem %s1, %s223
      %p225 = pneg %p64
      %p226 = pneg %p61
      %p227 = scmp.lt.s32.totalorder %s17, 1
      %s228 = scalar_select %p227, %s17, 1
      %s229 = smul.addr %s228, 4
      %s230 = scalar_lea.vmem %s2, %s229
      %p231 = pneg %p90
      %p232 = pneg %p87
      %p233 = pneg %p116
      %p234 = pneg %p113
      %p235 = scmp.lt.s32.totalorder %s17, 1
      %s236 = scalar_select %p235, %s17, 1
      %s237 = smul.addr %s236, 4
      %s238 = scalar_lea.vmem %s3, %s237
      %p239 = pneg %p142
      %p240 = pneg %p139
      %p241 = scmp.lt.s32.totalorder %s17, 1
      %s242 = scalar_select %p241, %s17, 1
      %s243 = smul.addr %s242, 4
      %s244 = scalar_lea.vmem %s4, %s243
      %p245 = pneg %p168
      %p246 = pneg %p165
      %p247 = scmp.lt.s32.totalorder %s17, 1
      %s248 = scalar_select %p247, %s17, 1
      %s249 = smul.addr %s248, 4
      %s250 = scalar_lea.vmem %s5, %s249
      %p251 = scmp.lt.s32.totalorder %s17, 1
      %s252 = scalar_select %p251, %s17, 1
      %s253 = smul.addr %s252, 4
      %s254 = scalar_lea.vmem %s0, %s253
      %p255 = scmp.lt.s32.totalorder %s17, 1
      %s256 = scalar_select %p255, %s17, 1
      %s257 = smul.addr %s256, 4
      %s258 = scalar_lea.vmem %s1, %s257
      %p259 = scmp.lt.s32.totalorder %s17, 1
      %s260 = scalar_select %p259, %s17, 1
      %s261 = smul.addr %s260, 4
      %s262 = scalar_lea.vmem %s2, %s261
      %p263 = scmp.lt.s32.totalorder %s17, 1
      %s264 = scalar_select %p263, %s17, 1
      %s265 = smul.addr %s264, 4
      %s266 = scalar_lea.vmem %s3, %s265
      %p267 = scmp.lt.s32.totalorder %s17, 1
      %s268 = scalar_select %p267, %s17, 1
      %s269 = smul.addr %s268, 4
      %s270 = scalar_lea.vmem %s4, %s269
      %p271 = scmp.lt.s32.totalorder %s17, 1
      %s272 = scalar_select %p271, %s17, 1
      %s273 = smul.addr %s272, 4
      %s274 = scalar_lea.vmem %s5, %s273
      %v276 = vld [vmem:[%s254] sm:$0xf]
      %v277 = vld [vmem:[%s258] sm:$0xf]
      %v278 = vld [vmem:[%s262] sm:$0xf]
      %v279 = vunpack.c.l.bf16 %v276
      %v280 = vmul.f32 %v279, 0.35355338
      %v281 = vpack.c.bf16 %v280, %v280
      %v283 = vunpack.c.l.b16 %v276
      %v284 = vpack.c.b16 %v283, %v283
      %285 = vrot.lane.b32.xlu0 %v284, 112
      %v286 = vpop.permute.xlu0 %285
      %vm287 = vcmask 64512
      %v289 = vsel %vm287, %v281, 0
      %v292 = vsel %vm287, %v286, 0
      %294 = vmatprep.subr.bf16.mxu0 0
      %295 = vmatpush1.bf16.xpose.msra.mxu0 0
      %296 = vmatprep.subr.bf16.mxu0 0
      %297 = vmatpush1.bf16.xpose.msra.mxu0 0
      %298 = vmatprep.subr.bf16.mxu0 0
      %299 = vmatpush1.bf16.xpose.msra.mxu0 0
      %300 = vmatprep.subr.bf16.mxu0 0
      %301 = vmatpush1.bf16.xpose.msra.mxu0 0
      %302 = vmatprep.subr.bf16.mxu0 0
      %303 = vmatpush1.bf16.xpose.msra.mxu0 0
      %304 = vmatprep.subr.bf16.mxu0 0
      %305 = vmatpush1.bf16.xpose.msra.mxu0 0
      %306 = vmatprep.subr.bf16.mxu0 0
      %307 = vmatpush1.bf16.xpose.msra.mxu0 0
      %308 = vmatprep.subr.bf16.mxu0 0
      %309 = vmatpush1.bf16.xpose.msra.mxu0 %v292
      %310 = vmatprep.subr.bf16.mxu0 0
      %311 = vmatpush2.bf16.xpose.msra.mxu0 0
      %312 = vmatprep.subr.bf16.mxu0 0
      %313 = vmatpush2.bf16.xpose.msra.mxu0 0
      %314 = vmatprep.subr.bf16.mxu0 0
      %315 = vmatpush2.bf16.xpose.msra.mxu0 0
      %316 = vmatprep.subr.bf16.mxu0 0
      %317 = vmatpush2.bf16.xpose.msra.mxu0 0
      %318 = vmatprep.subr.bf16.mxu0 0
      %319 = vmatpush2.bf16.xpose.msra.mxu0 0
      %320 = vmatprep.subr.bf16.mxu0 0
      %321 = vmatpush2.bf16.xpose.msra.mxu0 0
      %322 = vmatprep.subr.bf16.mxu0 0
      %323 = vmatpush2.bf16.xpose.msra.mxu0 0
      %324 = vmatprep.subr.bf16.mxu0 0
      %325 = vmatpush2.bf16.xpose.msra.mxu0 0
      %326 = vmatprep.mubr.bf16.mxu0 0
      %327 = vmatmul.mubr.bf16.gmra.mxu0 %v289
      %v328 = vpop.f32.mrf.mxu0
      %v329 = vadd.f32 0.0, %v328
      %v330 = vpop.f32.mrf.mxu0
      %v331 = vpop.f32.mrf.mxu0
      %v332 = vpop.f32.mrf.mxu0
      %333 = vdwg.mxu0
      %v334 = vsel %vm287, %v329, -inf
      %335 = vmax.xlane.f32.xlu0 %v334
      %v336 = vpop.xlane.xlu0 %335
      %v337 = vsub.f32 %v329, %v336
      %v338 = vmul.f32 %v337, 1.442695
      %v339 = vpow.pop %v338
      %v340 = vsel %vm287, %v339, 0.0
      %341 = vadd.xlane.f32.xlu0 %v340
      %v342 = vpop.xlane.xlu0 %341
      %v343 = vrcp.pop %v342
      %v344 = vmul.f32 %v339, %v343
      %v345 = vmul.f32 %v342, %v343
      %v346 = vunpack.c.l.bf16 %v277
      %v347 = vmul.f32 %v346, 0.35355338
      %v348 = vpack.c.bf16 %v347, %v347
      %v350 = vunpack.c.l.b16 %v277
      %v351 = vpack.c.b16 %v350, %v350
      %352 = vrot.lane.b32.xlu0 %v351, 112
      %v353 = vpop.permute.xlu0 %352
      %v355 = vsel %vm287, %v348, 0
      %v358 = vsel %vm287, %v353, 0
      %360 = vmatprep.subr.bf16.mxu0 0
      %361 = vmatpush1.bf16.xpose.msra.mxu0 0
      %362 = vmatprep.subr.bf16.mxu0 0
      %363 = vmatpush1.bf16.xpose.msra.mxu0 0
      %364 = vmatprep.subr.bf16.mxu0 0
      %365 = vmatpush1.bf16.xpose.msra.mxu0 0
      %366 = vmatprep.subr.bf16.mxu0 0
      %367 = vmatpush1.bf16.xpose.msra.mxu0 0
      %368 = vmatprep.subr.bf16.mxu0 0
      %369 = vmatpush1.bf16.xpose.msra.mxu0 0
      %370 = vmatprep.subr.bf16.mxu0 0
      %371 = vmatpush1.bf16.xpose.msra.mxu0 0
      %372 = vmatprep.subr.bf16.mxu0 0
      %373 = vmatpush1.bf16.xpose.msra.mxu0 0
      %374 = vmatprep.subr.bf16.mxu0 0
      %375 = vmatpush1.bf16.xpose.msra.mxu0 %v358
      %376 = vmatprep.subr.bf16.mxu0 0
      %377 = vmatpush2.bf16.xpose.msra.mxu0 0
      %378 = vmatprep.subr.bf16.mxu0 0
      %379 = vmatpush2.bf16.xpose.msra.mxu0 0
      %380 = vmatprep.subr.bf16.mxu0 0
      %381 = vmatpush2.bf16.xpose.msra.mxu0 0
      %382 = vmatprep.subr.bf16.mxu0 0
      %383 = vmatpush2.bf16.xpose.msra.mxu0 0
      %384 = vmatprep.subr.bf16.mxu0 0
      %385 = vmatpush2.bf16.xpose.msra.mxu0 0
      %386 = vmatprep.subr.bf16.mxu0 0
      %387 = vmatpush2.bf16.xpose.msra.mxu0 0
      %388 = vmatprep.subr.bf16.mxu0 0
      %389 = vmatpush2.bf16.xpose.msra.mxu0 0
      %390 = vmatprep.subr.bf16.mxu0 0
      %391 = vmatpush2.bf16.xpose.msra.mxu0 0
      %392 = vmatprep.mubr.bf16.mxu0 0
      %393 = vmatmul.mubr.bf16.gmra.mxu0 %v355
      %v394 = vpop.f32.mrf.mxu0
      %v395 = vadd.f32 0.0, %v394
      %v396 = vpop.f32.mrf.mxu0
      %v397 = vpop.f32.mrf.mxu0
      %v398 = vpop.f32.mrf.mxu0
      %399 = vdwg.mxu0
      %v400 = vsel %vm287, %v395, -inf
      %401 = vmax.xlane.f32.xlu0 %v400
      %v402 = vpop.xlane.xlu0 %401
      %v403 = vsub.f32 %v395, %v402
      %v404 = vmul.f32 %v403, 1.442695
      %v405 = vpow.pop %v404
      %v406 = vsel %vm287, %v405, 0.0
      %407 = vadd.xlane.f32.xlu0 %v406
      %v408 = vpop.xlane.xlu0 %407
      %v409 = vrcp.pop %v408
      %v410 = vmul.f32 %v405, %v409
      %v411 = vmul.f32 %v408, %v409
      %v412 = vunpack.c.l.bf16 %v278
      %v413 = vmul.f32 %v412, 0.35355338
      %v414 = vpack.c.bf16 %v413, %v413
      %v416 = vunpack.c.l.b16 %v278
      %v417 = vpack.c.b16 %v416, %v416
      %418 = vrot.lane.b32.xlu0 %v417, 112
      %v419 = vpop.permute.xlu0 %418
      %v421 = vsel %vm287, %v414, 0
      %v424 = vsel %vm287, %v419, 0
      %426 = vmatprep.subr.bf16.mxu0 0
      %427 = vmatpush1.bf16.xpose.msra.mxu0 0
      %428 = vmatprep.subr.bf16.mxu0 0
      %429 = vmatpush1.bf16.xpose.msra.mxu0 0
      %430 = vmatprep.subr.bf16.mxu0 0
      %431 = vmatpush1.bf16.xpose.msra.mxu0 0
      %432 = vmatprep.subr.bf16.mxu0 0
      %433 = vmatpush1.bf16.xpose.msra.mxu0 0
      %434 = vmatprep.subr.bf16.mxu0 0
      %435 = vmatpush1.bf16.xpose.msra.mxu0 0
      %436 = vmatprep.subr.bf16.mxu0 0
      %437 = vmatpush1.bf16.xpose.msra.mxu0 0
      %438 = vmatprep.subr.bf16.mxu0 0
      %439 = vmatpush1.bf16.xpose.msra.mxu0 0
      %440 = vmatprep.subr.bf16.mxu0 0
      %441 = vmatpush1.bf16.xpose.msra.mxu0 %v424
      %442 = vmatprep.subr.bf16.mxu0 0
      %443 = vmatpush2.bf16.xpose.msra.mxu0 0
      %444 = vmatprep.subr.bf16.mxu0 0
      %445 = vmatpush2.bf16.xpose.msra.mxu0 0
      %446 = vmatprep.subr.bf16.mxu0 0
      %447 = vmatpush2.bf16.xpose.msra.mxu0 0
      %448 = vmatprep.subr.bf16.mxu0 0
      %449 = vmatpush2.bf16.xpose.msra.mxu0 0
      %450 = vmatprep.subr.bf16.mxu0 0
      %451 = vmatpush2.bf16.xpose.msra.mxu0 0
      %452 = vmatprep.subr.bf16.mxu0 0
      %453 = vmatpush2.bf16.xpose.msra.mxu0 0
      %454 = vmatprep.subr.bf16.mxu0 0
      %455 = vmatpush2.bf16.xpose.msra.mxu0 0
      %456 = vmatprep.subr.bf16.mxu0 0
      %457 = vmatpush2.bf16.xpose.msra.mxu0 0
      %458 = vmatprep.mubr.bf16.mxu0 0
      %459 = vmatmul.mubr.bf16.gmra.mxu0 %v421
      %v460 = vpop.f32.mrf.mxu0
      %v461 = vadd.f32 0.0, %v460
      %v462 = vpop.f32.mrf.mxu0
      %v463 = vpop.f32.mrf.mxu0
      %v464 = vpop.f32.mrf.mxu0
      %465 = vdwg.mxu0
      %v466 = vsel %vm287, %v461, -inf
      %467 = vmax.xlane.f32.xlu0 %v466
      %v468 = vpop.xlane.xlu0 %467
      %v469 = vsub.f32 %v461, %v468
      %v470 = vmul.f32 %v469, 1.442695
      %v471 = vpow.pop %v470
      %v472 = vsel %vm287, %v471, 0.0
      %473 = vadd.xlane.f32.xlu0 %v472
      %v474 = vpop.xlane.xlu0 %473
      %v475 = vrcp.pop %v474
      %v476 = vmul.f32 %v471, %v475
      %v477 = vpack.c.bf16 %v344, %v344
      %v478 = vpack.c.bf16 %v410, %v410
      %v479 = vpack.c.bf16 %v476, %v476
      %v480 = vrsqrt.pop %v345
      %v481 = vrsqrt.pop %v411
      %482 = vrot.lane.b32.xlu0 %v284, 96
      %v483 = vpop.permute.xlu0 %482
      %v485 = vsel %vm287, %v477, 0
      %vm487 = vcmask 1043456
      %v489 = vsel %vm487, %v483, 0
      %491 = vmatprep.subr.bf16.mxu0 0
      %492 = vmatpush1.bf16.msra.mxu0 0
      %493 = vmatprep.subr.bf16.mxu0 0
      %494 = vmatpush1.bf16.msra.mxu0 0
      %495 = vmatprep.subr.bf16.mxu0 0
      %496 = vmatpush1.bf16.msra.mxu0 0
      %497 = vmatprep.subr.bf16.mxu0 0
      %498 = vmatpush1.bf16.msra.mxu0 0
      %499 = vmatprep.subr.bf16.mxu0 0
      %500 = vmatpush1.bf16.msra.mxu0 0
      %501 = vmatprep.subr.bf16.mxu0 0
      %502 = vmatpush1.bf16.msra.mxu0 0
      %503 = vmatprep.subr.bf16.mxu0 0
      %504 = vmatpush1.bf16.msra.mxu0 0
      %505 = vmatprep.subr.bf16.mxu0 0
      %506 = vmatpush1.bf16.msra.mxu0 %v489
      %507 = vmatprep.subr.bf16.mxu0 0
      %508 = vmatpush2.bf16.msra.mxu0 0
      %509 = vmatprep.subr.bf16.mxu0 0
      %510 = vmatpush2.bf16.msra.mxu0 0
      %511 = vmatprep.subr.bf16.mxu0 0
      %512 = vmatpush2.bf16.msra.mxu0 0
      %513 = vmatprep.subr.bf16.mxu0 0
      %514 = vmatpush2.bf16.msra.mxu0 0
      %515 = vmatprep.subr.bf16.mxu0 0
      %516 = vmatpush2.bf16.msra.mxu0 0
      %517 = vmatprep.subr.bf16.mxu0 0
      %518 = vmatpush2.bf16.msra.mxu0 0
      %519 = vmatprep.subr.bf16.mxu0 0
      %520 = vmatpush2.bf16.msra.mxu0 0
      %521 = vmatprep.subr.bf16.mxu0 0
      %522 = vmatpush2.bf16.msra.mxu0 0
      %523 = vmatprep.mubr.bf16.mxu0 0
      %524 = vmatmul.mubr.bf16.gmra.mxu0 %v485
      %v525 = vpop.f32.mrf.mxu0
      %v526 = vadd.f32 0.0, %v525
      %v527 = vpop.f32.mrf.mxu0
      %v528 = vpop.f32.mrf.mxu0
      %v529 = vpop.f32.mrf.mxu0
      %530 = vdwg.mxu0
      %531 = vrot.lane.b32.xlu0 %v351, 96
      %v532 = vpop.permute.xlu0 %531
      %v534 = vsel %vm287, %v478, 0
      %v537 = vsel %vm487, %v532, 0
      %539 = vmatprep.subr.bf16.mxu0 0
      %540 = vmatpush1.bf16.msra.mxu0 0
      %541 = vmatprep.subr.bf16.mxu0 0
      %542 = vmatpush1.bf16.msra.mxu0 0
      %543 = vmatprep.subr.bf16.mxu0 0
      %544 = vmatpush1.bf16.msra.mxu0 0
      %545 = vmatprep.subr.bf16.mxu0 0
      %546 = vmatpush1.bf16.msra.mxu0 0
      %547 = vmatprep.subr.bf16.mxu0 0
      %548 = vmatpush1.bf16.msra.mxu0 0
      %549 = vmatprep.subr.bf16.mxu0 0
      %550 = vmatpush1.bf16.msra.mxu0 0
      %551 = vmatprep.subr.bf16.mxu0 0
      %552 = vmatpush1.bf16.msra.mxu0 0
      %553 = vmatprep.subr.bf16.mxu0 0
      %554 = vmatpush1.bf16.msra.mxu0 %v537
      %555 = vmatprep.subr.bf16.mxu0 0
      %556 = vmatpush2.bf16.msra.mxu0 0
      %557 = vmatprep.subr.bf16.mxu0 0
      %558 = vmatpush2.bf16.msra.mxu0 0
      %559 = vmatprep.subr.bf16.mxu0 0
      %560 = vmatpush2.bf16.msra.mxu0 0
      %561 = vmatprep.subr.bf16.mxu0 0
      %562 = vmatpush2.bf16.msra.mxu0 0
      %563 = vmatprep.subr.bf16.mxu0 0
      %564 = vmatpush2.bf16.msra.mxu0 0
      %565 = vmatprep.subr.bf16.mxu0 0
      %566 = vmatpush2.bf16.msra.mxu0 0
      %567 = vmatprep.subr.bf16.mxu0 0
      %568 = vmatpush2.bf16.msra.mxu0 0
      %569 = vmatprep.subr.bf16.mxu0 0
      %570 = vmatpush2.bf16.msra.mxu0 0
      %571 = vmatprep.mubr.bf16.mxu0 0
      %572 = vmatmul.mubr.bf16.gmra.mxu0 %v534
      %v573 = vpop.f32.mrf.mxu0
      %v574 = vadd.f32 0.0, %v573
      %v575 = vpop.f32.mrf.mxu0
      %v576 = vpop.f32.mrf.mxu0
      %v577 = vpop.f32.mrf.mxu0
      %578 = vdwg.mxu0
      %579 = vrot.lane.b32.xlu0 %v417, 96
      %v580 = vpop.permute.xlu0 %579
      %v582 = vsel %vm287, %v479, 0
      %v585 = vsel %vm487, %v580, 0
      %587 = vmatprep.subr.bf16.mxu0 0
      %588 = vmatpush1.bf16.msra.mxu0 0
      %589 = vmatprep.subr.bf16.mxu0 0
      %590 = vmatpush1.bf16.msra.mxu0 0
      %591 = vmatprep.subr.bf16.mxu0 0
      %592 = vmatpush1.bf16.msra.mxu0 0
      %593 = vmatprep.subr.bf16.mxu0 0
      %594 = vmatpush1.bf16.msra.mxu0 0
      %595 = vmatprep.subr.bf16.mxu0 0
      %596 = vmatpush1.bf16.msra.mxu0 0
      %597 = vmatprep.subr.bf16.mxu0 0
      %598 = vmatpush1.bf16.msra.mxu0 0
      %599 = vmatprep.subr.bf16.mxu0 0
      %600 = vmatpush1.bf16.msra.mxu0 0
      %601 = vmatprep.subr.bf16.mxu0 0
      %602 = vmatpush1.bf16.msra.mxu0 %v585
      %603 = vmatprep.subr.bf16.mxu0 0
      %604 = vmatpush2.bf16.msra.mxu0 0
      %605 = vmatprep.subr.bf16.mxu0 0
      %606 = vmatpush2.bf16.msra.mxu0 0
      %607 = vmatprep.subr.bf16.mxu0 0
      %608 = vmatpush2.bf16.msra.mxu0 0
      %609 = vmatprep.subr.bf16.mxu0 0
      %610 = vmatpush2.bf16.msra.mxu0 0
      %611 = vmatprep.subr.bf16.mxu0 0
      %612 = vmatpush2.bf16.msra.mxu0 0
      %613 = vmatprep.subr.bf16.mxu0 0
      %614 = vmatpush2.bf16.msra.mxu0 0
      %615 = vmatprep.subr.bf16.mxu0 0
      %616 = vmatpush2.bf16.msra.mxu0 0
      %617 = vmatprep.subr.bf16.mxu0 0
      %618 = vmatpush2.bf16.msra.mxu0 0
      %619 = vmatprep.mubr.bf16.mxu0 0
      %620 = vmatmul.mubr.bf16.gmra.mxu0 %v582
      %v621 = vpop.f32.mrf.mxu0
      %v622 = vadd.f32 0.0, %v621
      %v623 = vpop.f32.mrf.mxu0
      %v624 = vpop.f32.mrf.mxu0
      %v625 = vpop.f32.mrf.mxu0
      %626 = vdwg.mxu0
      %627 = vmatprep.subr.bf16.mxu0 0
      %628 = vmatpush1.bf16.msra.mxu0 0
      %629 = vmatprep.subr.bf16.mxu0 0
      %630 = vmatpush1.bf16.msra.mxu0 0
      %631 = vmatprep.subr.bf16.mxu0 0
      %632 = vmatpush1.bf16.msra.mxu0 0
      %633 = vmatprep.subr.bf16.mxu0 0
      %634 = vmatpush1.bf16.msra.mxu0 0
      %635 = vmatprep.subr.bf16.mxu0 0
      %636 = vmatpush1.bf16.msra.mxu0 0
      %637 = vmatprep.subr.bf16.mxu0 0
      %638 = vmatpush1.bf16.msra.mxu0 0
      %639 = vmatprep.subr.bf16.mxu0 0
      %640 = vmatpush1.bf16.msra.mxu0 0
      %641 = vmatprep.subr.bf16.mxu0 0
      %642 = vmatpush1.bf16.msra.mxu0 %v537
      %643 = vmatprep.subr.bf16.mxu0 0
      %644 = vmatpush2.bf16.msra.mxu0 0
      %645 = vmatprep.subr.bf16.mxu0 0
      %646 = vmatpush2.bf16.msra.mxu0 0
      %647 = vmatprep.subr.bf16.mxu0 0
      %648 = vmatpush2.bf16.msra.mxu0 0
      %649 = vmatprep.subr.bf16.mxu0 0
      %650 = vmatpush2.bf16.msra.mxu0 0
      %651 = vmatprep.subr.bf16.mxu0 0
      %652 = vmatpush2.bf16.msra.mxu0 0
      %653 = vmatprep.subr.bf16.mxu0 0
      %654 = vmatpush2.bf16.msra.mxu0 0
      %655 = vmatprep.subr.bf16.mxu0 0
      %656 = vmatpush2.bf16.msra.mxu0 0
      %657 = vmatprep.subr.bf16.mxu0 0
      %658 = vmatpush2.bf16.msra.mxu0 0
      %659 = vmatprep.mubr.bf16.mxu0 0
      %660 = vmatmul.mubr.bf16.gmra.mxu0 %v485
      %v661 = vpop.f32.mrf.mxu0
      %v662 = vadd.f32 %v574, %v661
      %v663 = vpop.f32.mrf.mxu0
      %v664 = vpop.f32.mrf.mxu0
      %v665 = vpop.f32.mrf.mxu0
      %666 = vdwg.mxu0
      %667 = vmatprep.subr.bf16.mxu0 0
      %668 = vmatpush1.bf16.msra.mxu0 0
      %669 = vmatprep.subr.bf16.mxu0 0
      %670 = vmatpush1.bf16.msra.mxu0 0
      %671 = vmatprep.subr.bf16.mxu0 0
      %672 = vmatpush1.bf16.msra.mxu0 0
      %673 = vmatprep.subr.bf16.mxu0 0
      %674 = vmatpush1.bf16.msra.mxu0 0
      %675 = vmatprep.subr.bf16.mxu0 0
      %676 = vmatpush1.bf16.msra.mxu0 0
      %677 = vmatprep.subr.bf16.mxu0 0
      %678 = vmatpush1.bf16.msra.mxu0 0
      %679 = vmatprep.subr.bf16.mxu0 0
      %680 = vmatpush1.bf16.msra.mxu0 0
      %681 = vmatprep.subr.bf16.mxu0 0
      %682 = vmatpush1.bf16.msra.mxu0 %v489
      %683 = vmatprep.subr.bf16.mxu0 0
      %684 = vmatpush2.bf16.msra.mxu0 0
      %685 = vmatprep.subr.bf16.mxu0 0
      %686 = vmatpush2.bf16.msra.mxu0 0
      %687 = vmatprep.subr.bf16.mxu0 0
      %688 = vmatpush2.bf16.msra.mxu0 0
      %689 = vmatprep.subr.bf16.mxu0 0
      %690 = vmatpush2.bf16.msra.mxu0 0
      %691 = vmatprep.subr.bf16.mxu0 0
      %692 = vmatpush2.bf16.msra.mxu0 0
      %693 = vmatprep.subr.bf16.mxu0 0
      %694 = vmatpush2.bf16.msra.mxu0 0
      %695 = vmatprep.subr.bf16.mxu0 0
      %696 = vmatpush2.bf16.msra.mxu0 0
      %697 = vmatprep.subr.bf16.mxu0 0
      %698 = vmatpush2.bf16.msra.mxu0 0
      %699 = vmatprep.mubr.bf16.mxu0 0
      %700 = vmatmul.mubr.bf16.gmra.mxu0 %v534
      %v701 = vpop.f32.mrf.mxu0
      %v702 = vadd.f32 0.0, %v701
      %v703 = vpop.f32.mrf.mxu0
      %v704 = vpop.f32.mrf.mxu0
      %v705 = vpop.f32.mrf.mxu0
      %706 = vdwg.mxu0
      %v707 = vadd.f32 %v526, %v702
      %v708 = vmul.f32 %v481, %v346
      %v709 = vpack.c.bf16 %v708, %v708
      %711 = vrot.lane.b32.xlu0 %v709, 96
      %v712 = vpop.permute.xlu0 %711
      %v714 = vsel %vm487, %v712, 0
      %716 = vmatprep.subr.bf16.mxu0 0
      %717 = vmatpush1.bf16.msra.mxu0 0
      %718 = vmatprep.subr.bf16.mxu0 0
      %719 = vmatpush1.bf16.msra.mxu0 0
      %720 = vmatprep.subr.bf16.mxu0 0
      %721 = vmatpush1.bf16.msra.mxu0 0
      %722 = vmatprep.subr.bf16.mxu0 0
      %723 = vmatpush1.bf16.msra.mxu0 0
      %724 = vmatprep.subr.bf16.mxu0 0
      %725 = vmatpush1.bf16.msra.mxu0 0
      %726 = vmatprep.subr.bf16.mxu0 0
      %727 = vmatpush1.bf16.msra.mxu0 0
      %728 = vmatprep.subr.bf16.mxu0 0
      %729 = vmatpush1.bf16.msra.mxu0 0
      %730 = vmatprep.subr.bf16.mxu0 0
      %731 = vmatpush1.bf16.msra.mxu0 %v714
      %732 = vmatprep.subr.bf16.mxu0 0
      %733 = vmatpush2.bf16.msra.mxu0 0
      %734 = vmatprep.subr.bf16.mxu0 0
      %735 = vmatpush2.bf16.msra.mxu0 0
      %736 = vmatprep.subr.bf16.mxu0 0
      %737 = vmatpush2.bf16.msra.mxu0 0
      %738 = vmatprep.subr.bf16.mxu0 0
      %739 = vmatpush2.bf16.msra.mxu0 0
      %740 = vmatprep.subr.bf16.mxu0 0
      %741 = vmatpush2.bf16.msra.mxu0 0
      %742 = vmatprep.subr.bf16.mxu0 0
      %743 = vmatpush2.bf16.msra.mxu0 0
      %744 = vmatprep.subr.bf16.mxu0 0
      %745 = vmatpush2.bf16.msra.mxu0 0
      %746 = vmatprep.subr.bf16.mxu0 0
      %747 = vmatpush2.bf16.msra.mxu0 0
      %748 = vmatprep.mubr.bf16.mxu0 0
      %749 = vmatmul.mubr.bf16.gmra.mxu0 %v534
      %v750 = vpop.f32.mrf.mxu0
      %v751 = vadd.f32 0.0, %v750
      %v752 = vpop.f32.mrf.mxu0
      %v753 = vpop.f32.mrf.mxu0
      %v754 = vpop.f32.mrf.mxu0
      %755 = vdwg.mxu0
      %v756 = vmul.f32 %v481, %v751
      %v757 = vmul.f32 %v480, %v756
      %v758 = vpack.c.bf16 %v757, %v757
      %759 = vxpose.xlu0.c.b16.start [1/8] %v477, 128
      %760 = vxpose.xlu0.c.b16.cont [2/8] 0, 128
      %761 = vxpose.xlu0.c.b16.cont [3/8] 0, 128
      %762 = vxpose.xlu0.c.b16.cont [4/8] 0, 128
      %763 = vxpose.xlu0.c.b16.cont [5/8] 0, 128
      %764 = vxpose.xlu0.c.b16.cont [6/8] 0, 128
      %765 = vxpose.xlu0.c.b16.cont [7/8] 0, 128
      %766 = vxpose.xlu0.c.b16.end [8/8] 0, 128
      %v767 = vpop.trf.xlu0
      %v768 = vpop.trf.xlu0
      %v769 = vpop.trf.xlu0
      %v770 = vpop.trf.xlu0
      %v771 = vpop.trf.xlu0
      %v772 = vpop.trf.xlu0
      %v773 = vpop.trf.xlu0
      %v774 = vpop.trf.xlu0
      %v776 = vsel %vm287, %v767, 0
      %v779 = vsel %vm487, %v758, 0
      %781 = vmatprep.subr.bf16.mxu0 0
      %782 = vmatpush1.bf16.msra.mxu0 0
      %783 = vmatprep.subr.bf16.mxu0 0
      %784 = vmatpush1.bf16.msra.mxu0 0
      %785 = vmatprep.subr.bf16.mxu0 0
      %786 = vmatpush1.bf16.msra.mxu0 0
      %787 = vmatprep.subr.bf16.mxu0 0
      %788 = vmatpush1.bf16.msra.mxu0 0
      %789 = vmatprep.subr.bf16.mxu0 0
      %790 = vmatpush1.bf16.msra.mxu0 0
      %791 = vmatprep.subr.bf16.mxu0 0
      %792 = vmatpush1.bf16.msra.mxu0 0
      %793 = vmatprep.subr.bf16.mxu0 0
      %794 = vmatpush1.bf16.msra.mxu0 0
      %795 = vmatprep.subr.bf16.mxu0 0
      %796 = vmatpush1.bf16.msra.mxu0 %v779
      %797 = vmatprep.subr.bf16.mxu0 0
      %798 = vmatpush2.bf16.msra.mxu0 0
      %799 = vmatprep.subr.bf16.mxu0 0
      %800 = vmatpush2.bf16.msra.mxu0 0
      %801 = vmatprep.subr.bf16.mxu0 0
      %802 = vmatpush2.bf16.msra.mxu0 0
      %803 = vmatprep.subr.bf16.mxu0 0
      %804 = vmatpush2.bf16.msra.mxu0 0
      %805 = vmatprep.subr.bf16.mxu0 0
      %806 = vmatpush2.bf16.msra.mxu0 0
      %807 = vmatprep.subr.bf16.mxu0 0
      %808 = vmatpush2.bf16.msra.mxu0 0
      %809 = vmatprep.subr.bf16.mxu0 0
      %810 = vmatpush2.bf16.msra.mxu0 0
      %811 = vmatprep.subr.bf16.mxu0 0
      %812 = vmatpush2.bf16.msra.mxu0 0
      %813 = vmatprep.mubr.bf16.mxu0 0
      %814 = vmatmul.mubr.bf16.gmra.mxu0 %v776
      %v815 = vpop.f32.mrf.mxu0
      %v816 = vadd.f32 0.0, %v815
      %v817 = vpop.f32.mrf.mxu0
      %v818 = vpop.f32.mrf.mxu0
      %v819 = vpop.f32.mrf.mxu0
      %820 = vdwg.mxu0
      %v821 = vmul.f32 %v480, %v816
      %v822 = vmul.f32 %v821, 0.6
      %v823 = vmul.f32 %v662, 0.4
      %v824 = vadd.f32 %v822, %v823
      %v825 = vmul.f32 %v480, %v279
      %v826 = vpack.c.bf16 %v825, %v825
      %828 = vrot.lane.b32.xlu0 %v826, 96
      %v829 = vpop.permute.xlu0 %828
      %v831 = vsel %vm487, %v829, 0
      %833 = vmatprep.subr.bf16.mxu0 0
      %834 = vmatpush1.bf16.msra.mxu0 0
      %835 = vmatprep.subr.bf16.mxu0 0
      %836 = vmatpush1.bf16.msra.mxu0 0
      %837 = vmatprep.subr.bf16.mxu0 0
      %838 = vmatpush1.bf16.msra.mxu0 0
      %839 = vmatprep.subr.bf16.mxu0 0
      %840 = vmatpush1.bf16.msra.mxu0 0
      %841 = vmatprep.subr.bf16.mxu0 0
      %842 = vmatpush1.bf16.msra.mxu0 0
      %843 = vmatprep.subr.bf16.mxu0 0
      %844 = vmatpush1.bf16.msra.mxu0 0
      %845 = vmatprep.subr.bf16.mxu0 0
      %846 = vmatpush1.bf16.msra.mxu0 0
      %847 = vmatprep.subr.bf16.mxu0 0
      %848 = vmatpush1.bf16.msra.mxu0 %v831
      %849 = vmatprep.subr.bf16.mxu0 0
      %850 = vmatpush2.bf16.msra.mxu0 0
      %851 = vmatprep.subr.bf16.mxu0 0
      %852 = vmatpush2.bf16.msra.mxu0 0
      %853 = vmatprep.subr.bf16.mxu0 0
      %854 = vmatpush2.bf16.msra.mxu0 0
      %855 = vmatprep.subr.bf16.mxu0 0
      %856 = vmatpush2.bf16.msra.mxu0 0
      %857 = vmatprep.subr.bf16.mxu0 0
      %858 = vmatpush2.bf16.msra.mxu0 0
      %859 = vmatprep.subr.bf16.mxu0 0
      %860 = vmatpush2.bf16.msra.mxu0 0
      %861 = vmatprep.subr.bf16.mxu0 0
      %862 = vmatpush2.bf16.msra.mxu0 0
      %863 = vmatprep.subr.bf16.mxu0 0
      %864 = vmatpush2.bf16.msra.mxu0 0
      %865 = vmatprep.mubr.bf16.mxu0 0
      %866 = vmatmul.mubr.bf16.gmra.mxu0 %v485
      %v867 = vpop.f32.mrf.mxu0
      %v868 = vadd.f32 0.0, %v867
      %v869 = vpop.f32.mrf.mxu0
      %v870 = vpop.f32.mrf.mxu0
      %v871 = vpop.f32.mrf.mxu0
      %872 = vdwg.mxu0
      %v873 = vmul.f32 %v480, %v868
      %v874 = vmul.f32 %v481, %v873
      %v875 = vpack.c.bf16 %v874, %v874
      %876 = vxpose.xlu0.c.b16.start [1/8] %v478, 128
      %877 = vxpose.xlu0.c.b16.cont [2/8] 0, 128
      %878 = vxpose.xlu0.c.b16.cont [3/8] 0, 128
      %879 = vxpose.xlu0.c.b16.cont [4/8] 0, 128
      %880 = vxpose.xlu0.c.b16.cont [5/8] 0, 128
      %881 = vxpose.xlu0.c.b16.cont [6/8] 0, 128
      %882 = vxpose.xlu0.c.b16.cont [7/8] 0, 128
      %883 = vxpose.xlu0.c.b16.end [8/8] 0, 128
      %v884 = vpop.trf.xlu0
      %v885 = vpop.trf.xlu0
      %v886 = vpop.trf.xlu0
      %v887 = vpop.trf.xlu0
      %v888 = vpop.trf.xlu0
      %v889 = vpop.trf.xlu0
      %v890 = vpop.trf.xlu0
      %v891 = vpop.trf.xlu0
      %v893 = vsel %vm287, %v884, 0
      %v896 = vsel %vm487, %v875, 0
      %898 = vmatprep.subr.bf16.mxu0 0
      %899 = vmatpush1.bf16.msra.mxu0 0
      %900 = vmatprep.subr.bf16.mxu0 0
      %901 = vmatpush1.bf16.msra.mxu0 0
      %902 = vmatprep.subr.bf16.mxu0 0
      %903 = vmatpush1.bf16.msra.mxu0 0
      %904 = vmatprep.subr.bf16.mxu0 0
      %905 = vmatpush1.bf16.msra.mxu0 0
      %906 = vmatprep.subr.bf16.mxu0 0
      %907 = vmatpush1.bf16.msra.mxu0 0
      %908 = vmatprep.subr.bf16.mxu0 0
      %909 = vmatpush1.bf16.msra.mxu0 0
      %910 = vmatprep.subr.bf16.mxu0 0
      %911 = vmatpush1.bf16.msra.mxu0 0
      %912 = vmatprep.subr.bf16.mxu0 0
      %913 = vmatpush1.bf16.msra.mxu0 %v896
      %914 = vmatprep.subr.bf16.mxu0 0
      %915 = vmatpush2.bf16.msra.mxu0 0
      %916 = vmatprep.subr.bf16.mxu0 0
      %917 = vmatpush2.bf16.msra.mxu0 0
      %918 = vmatprep.subr.bf16.mxu0 0
      %919 = vmatpush2.bf16.msra.mxu0 0
      %920 = vmatprep.subr.bf16.mxu0 0
      %921 = vmatpush2.bf16.msra.mxu0 0
      %922 = vmatprep.subr.bf16.mxu0 0
      %923 = vmatpush2.bf16.msra.mxu0 0
      %924 = vmatprep.subr.bf16.mxu0 0
      %925 = vmatpush2.bf16.msra.mxu0 0
      %926 = vmatprep.subr.bf16.mxu0 0
      %927 = vmatpush2.bf16.msra.mxu0 0
      %928 = vmatprep.subr.bf16.mxu0 0
      %929 = vmatpush2.bf16.msra.mxu0 0
      %930 = vmatprep.mubr.bf16.mxu0 0
      %931 = vmatmul.mubr.bf16.gmra.mxu0 %v893
      %v932 = vpop.f32.mrf.mxu0
      %v933 = vadd.f32 0.0, %v932
      %v934 = vpop.f32.mrf.mxu0
      %v935 = vpop.f32.mrf.mxu0
      %v936 = vpop.f32.mrf.mxu0
      %937 = vdwg.mxu0
      %v938 = vmul.f32 %v481, %v933
      %v939 = vmul.f32 %v938, 0.6
      %v940 = vmul.f32 %v707, 0.4
      %v941 = vadd.f32 %v939, %v940
      %943 = vrot.lane.b32.xlu0 %v281, 120
      %v944 = vpop.permute.xlu0 %943
      %945 = vrot.lane.b32.xlu0 %v284, 104
      %v946 = vpop.permute.xlu0 %945
      %v948 = vsel %vm287, %v944, 0
      %v951 = vsel %vm287, %v946, 0
      %953 = vmatprep.subr.bf16.mxu0 0
      %954 = vmatpush1.bf16.xpose.msra.mxu0 0
      %955 = vmatprep.subr.bf16.mxu0 0
      %956 = vmatpush1.bf16.xpose.msra.mxu0 0
      %957 = vmatprep.subr.bf16.mxu0 0
      %958 = vmatpush1.bf16.xpose.msra.mxu0 0
      %959 = vmatprep.subr.bf16.mxu0 0
      %960 = vmatpush1.bf16.xpose.msra.mxu0 0
      %961 = vmatprep.subr.bf16.mxu0 0
      %962 = vmatpush1.bf16.xpose.msra.mxu0 0
      %963 = vmatprep.subr.bf16.mxu0 0
      %964 = vmatpush1.bf16.xpose.msra.mxu0 0
      %965 = vmatprep.subr.bf16.mxu0 0
      %966 = vmatpush1.bf16.xpose.msra.mxu0 0
      %967 = vmatprep.subr.bf16.mxu0 0
      %968 = vmatpush1.bf16.xpose.msra.mxu0 %v951
      %969 = vmatprep.subr.bf16.mxu0 0
      %970 = vmatpush2.bf16.xpose.msra.mxu0 0
      %971 = vmatprep.subr.bf16.mxu0 0
      %972 = vmatpush2.bf16.xpose.msra.mxu0 0
      %973 = vmatprep.subr.bf16.mxu0 0
      %974 = vmatpush2.bf16.xpose.msra.mxu0 0
      %975 = vmatprep.subr.bf16.mxu0 0
      %976 = vmatpush2.bf16.xpose.msra.mxu0 0
      %977 = vmatprep.subr.bf16.mxu0 0
      %978 = vmatpush2.bf16.xpose.msra.mxu0 0
      %979 = vmatprep.subr.bf16.mxu0 0
      %980 = vmatpush2.bf16.xpose.msra.mxu0 0
      %981 = vmatprep.subr.bf16.mxu0 0
      %982 = vmatpush2.bf16.xpose.msra.mxu0 0
      %983 = vmatprep.subr.bf16.mxu0 0
      %984 = vmatpush2.bf16.xpose.msra.mxu0 0
      %985 = vmatprep.mubr.bf16.mxu0 0
      %986 = vmatmul.mubr.bf16.gmra.mxu0 %v948
      %v987 = vpop.f32.mrf.mxu0
      %v988 = vadd.f32 0.0, %v987
      %v989 = vpop.f32.mrf.mxu0
      %v990 = vpop.f32.mrf.mxu0
      %v991 = vpop.f32.mrf.mxu0
      %992 = vdwg.mxu0
      %v993 = vsel %vm287, %v988, -inf
      %994 = vmax.xlane.f32.xlu0 %v993
      %v995 = vpop.xlane.xlu0 %994
      %v996 = vsub.f32 %v988, %v995
      %v997 = vmul.f32 %v996, 1.442695
      %v998 = vpow.pop %v997
      %v999 = vsel %vm287, %v998, 0.0
      %1000 = vadd.xlane.f32.xlu0 %v999
      %v1001 = vpop.xlane.xlu0 %1000
      %v1002 = vrcp.pop %v1001
      %v1003 = vmul.f32 %v998, %v1002
      %v1004 = vmul.f32 %v1001, %v1002
      %1006 = vrot.lane.b32.xlu0 %v348, 120
      %v1007 = vpop.permute.xlu0 %1006
      %1008 = vrot.lane.b32.xlu0 %v351, 104
      %v1009 = vpop.permute.xlu0 %1008
      %v1011 = vsel %vm287, %v1007, 0
      %v1014 = vsel %vm287, %v1009, 0
      %1016 = vmatprep.subr.bf16.mxu0 0
      %1017 = vmatpush1.bf16.xpose.msra.mxu0 0
      %1018 = vmatprep.subr.bf16.mxu0 0
      %1019 = vmatpush1.bf16.xpose.msra.mxu0 0
      %1020 = vmatprep.subr.bf16.mxu0 0
      %1021 = vmatpush1.bf16.xpose.msra.mxu0 0
      %1022 = vmatprep.subr.bf16.mxu0 0
      %1023 = vmatpush1.bf16.xpose.msra.mxu0 0
      %1024 = vmatprep.subr.bf16.mxu0 0
      %1025 = vmatpush1.bf16.xpose.msra.mxu0 0
      %1026 = vmatprep.subr.bf16.mxu0 0
      %1027 = vmatpush1.bf16.xpose.msra.mxu0 0
      %1028 = vmatprep.subr.bf16.mxu0 0
      %1029 = vmatpush1.bf16.xpose.msra.mxu0 0
      %1030 = vmatprep.subr.bf16.mxu0 0
      %1031 = vmatpush1.bf16.xpose.msra.mxu0 %v1014
      %1032 = vmatprep.subr.bf16.mxu0 0
      %1033 = vmatpush2.bf16.xpose.msra.mxu0 0
      %1034 = vmatprep.subr.bf16.mxu0 0
      %1035 = vmatpush2.bf16.xpose.msra.mxu0 0
      %1036 = vmatprep.subr.bf16.mxu0 0
      %1037 = vmatpush2.bf16.xpose.msra.mxu0 0
      %1038 = vmatprep.subr.bf16.mxu0 0
      %1039 = vmatpush2.bf16.xpose.msra.mxu0 0
      %1040 = vmatprep.subr.bf16.mxu0 0
      %1041 = vmatpush2.bf16.xpose.msra.mxu0 0
      %1042 = vmatprep.subr.bf16.mxu0 0
      %1043 = vmatpush2.bf16.xpose.msra.mxu0 0
      %1044 = vmatprep.subr.bf16.mxu0 0
      %1045 = vmatpush2.bf16.xpose.msra.mxu0 0
      %1046 = vmatprep.subr.bf16.mxu0 0
      %1047 = vmatpush2.bf16.xpose.msra.mxu0 0
      %1048 = vmatprep.mubr.bf16.mxu0 0
      %1049 = vmatmul.mubr.bf16.gmra.mxu0 %v1011
      %v1050 = vpop.f32.mrf.mxu0
      %v1051 = vadd.f32 0.0, %v1050
      %v1052 = vpop.f32.mrf.mxu0
      %v1053 = vpop.f32.mrf.mxu0
      %v1054 = vpop.f32.mrf.mxu0
      %1055 = vdwg.mxu0
      %v1056 = vsel %vm287, %v1051, -inf
      %1057 = vmax.xlane.f32.xlu0 %v1056
      %v1058 = vpop.xlane.xlu0 %1057
      %v1059 = vsub.f32 %v1051, %v1058
      %v1060 = vmul.f32 %v1059, 1.442695
      %v1061 = vpow.pop %v1060
      %v1062 = vsel %vm287, %v1061, 0.0
      %1063 = vadd.xlane.f32.xlu0 %v1062
      %v1064 = vpop.xlane.xlu0 %1063
      %v1065 = vrcp.pop %v1064
      %v1066 = vmul.f32 %v1061, %v1065
      %v1067 = vmul.f32 %v1064, %v1065
      %1069 = vrot.lane.b32.xlu0 %v414, 120
      %v1070 = vpop.permute.xlu0 %1069
      %1071 = vrot.lane.b32.xlu0 %v417, 104
      %v1072 = vpop.permute.xlu0 %1071
      %v1074 = vsel %vm287, %v1070, 0
      %v1077 = vsel %vm287, %v1072, 0
      %1079 = vmatprep.subr.bf16.mxu0 0
      %1080 = vmatpush1.bf16.xpose.msra.mxu0 0
      %1081 = vmatprep.subr.bf16.mxu0 0
      %1082 = vmatpush1.bf16.xpose.msra.mxu0 0
      %1083 = vmatprep.subr.bf16.mxu0 0
      %1084 = vmatpush1.bf16.xpose.msra.mxu0 0
      %1085 = vmatprep.subr.bf16.mxu0 0
      %1086 = vmatpush1.bf16.xpose.msra.mxu0 0
      %1087 = vmatprep.subr.bf16.mxu0 0
      %1088 = vmatpush1.bf16.xpose.msra.mxu0 0
      %1089 = vmatprep.subr.bf16.mxu0 0
      %1090 = vmatpush1.bf16.xpose.msra.mxu0 0
      %1091 = vmatprep.subr.bf16.mxu0 0
      %1092 = vmatpush1.bf16.xpose.msra.mxu0 0
      %1093 = vmatprep.subr.bf16.mxu0 0
      %1094 = vmatpush1.bf16.xpose.msra.mxu0 %v1077
      %1095 = vmatprep.subr.bf16.mxu0 0
      %1096 = vmatpush2.bf16.xpose.msra.mxu0 0
      %1097 = vmatprep.subr.bf16.mxu0 0
      %1098 = vmatpush2.bf16.xpose.msra.mxu0 0
      %1099 = vmatprep.subr.bf16.mxu0 0
      %1100 = vmatpush2.bf16.xpose.msra.mxu0 0
      %1101 = vmatprep.subr.bf16.mxu0 0
      %1102 = vmatpush2.bf16.xpose.msra.mxu0 0
      %1103 = vmatprep.subr.bf16.mxu0 0
      %1104 = vmatpush2.bf16.xpose.msra.mxu0 0
      %1105 = vmatprep.subr.bf16.mxu0 0
      %1106 = vmatpush2.bf16.xpose.msra.mxu0 0
      %1107 = vmatprep.subr.bf16.mxu0 0
      %1108 = vmatpush2.bf16.xpose.msra.mxu0 0
      %1109 = vmatprep.subr.bf16.mxu0 0
      %1110 = vmatpush2.bf16.xpose.msra.mxu0 0
      %1111 = vmatprep.mubr.bf16.mxu0 0
      %1112 = vmatmul.mubr.bf16.gmra.mxu0 %v1074
      %v1113 = vpop.f32.mrf.mxu0
      %v1114 = vadd.f32 0.0, %v1113
      %v1115 = vpop.f32.mrf.mxu0
      %v1116 = vpop.f32.mrf.mxu0
      %v1117 = vpop.f32.mrf.mxu0
      %1118 = vdwg.mxu0
      %v1119 = vsel %vm287, %v1114, -inf
      %1120 = vmax.xlane.f32.xlu0 %v1119
      %v1121 = vpop.xlane.xlu0 %1120
      %v1122 = vsub.f32 %v1114, %v1121
      %v1123 = vmul.f32 %v1122, 1.442695
      %v1124 = vpow.pop %v1123
      %v1125 = vsel %vm287, %v1124, 0.0
      %1126 = vadd.xlane.f32.xlu0 %v1125
      %v1127 = vpop.xlane.xlu0 %1126
      %v1128 = vrcp.pop %v1127
      %v1129 = vmul.f32 %v1124, %v1128
      %v1130 = vpack.c.bf16 %v1003, %v1003
      %v1131 = vpack.c.bf16 %v1066, %v1066
      %v1132 = vpack.c.bf16 %v1129, %v1129
      %v1133 = vrsqrt.pop %v1004
      %v1134 = vrsqrt.pop %v1067
      %1135 = vrot.lane.b32.xlu0 %v284, 88
      %v1136 = vpop.permute.xlu0 %1135
      %v1138 = vsel %vm287, %v1130, 0
      %v1141 = vsel %vm487, %v1136, 0
      %1143 = vmatprep.subr.bf16.mxu0 0
      %1144 = vmatpush1.bf16.msra.mxu0 0
      %1145 = vmatprep.subr.bf16.mxu0 0
      %1146 = vmatpush1.bf16.msra.mxu0 0
      %1147 = vmatprep.subr.bf16.mxu0 0
      %1148 = vmatpush1.bf16.msra.mxu0 0
      %1149 = vmatprep.subr.bf16.mxu0 0
      %1150 = vmatpush1.bf16.msra.mxu0 0
      %1151 = vmatprep.subr.bf16.mxu0 0
      %1152 = vmatpush1.bf16.msra.mxu0 0
      %1153 = vmatprep.subr.bf16.mxu0 0
      %1154 = vmatpush1.bf16.msra.mxu0 0
      %1155 = vmatprep.subr.bf16.mxu0 0
      %1156 = vmatpush1.bf16.msra.mxu0 0
      %1157 = vmatprep.subr.bf16.mxu0 0
      %1158 = vmatpush1.bf16.msra.mxu0 %v1141
      %1159 = vmatprep.subr.bf16.mxu0 0
      %1160 = vmatpush2.bf16.msra.mxu0 0
      %1161 = vmatprep.subr.bf16.mxu0 0
      %1162 = vmatpush2.bf16.msra.mxu0 0
      %1163 = vmatprep.subr.bf16.mxu0 0
      %1164 = vmatpush2.bf16.msra.mxu0 0
      %1165 = vmatprep.subr.bf16.mxu0 0
      %1166 = vmatpush2.bf16.msra.mxu0 0
      %1167 = vmatprep.subr.bf16.mxu0 0
      %1168 = vmatpush2.bf16.msra.mxu0 0
      %1169 = vmatprep.subr.bf16.mxu0 0
      %1170 = vmatpush2.bf16.msra.mxu0 0
      %1171 = vmatprep.subr.bf16.mxu0 0
      %1172 = vmatpush2.bf16.msra.mxu0 0
      %1173 = vmatprep.subr.bf16.mxu0 0
      %1174 = vmatpush2.bf16.msra.mxu0 0
      %1175 = vmatprep.mubr.bf16.mxu0 0
      %1176 = vmatmul.mubr.bf16.gmra.mxu0 %v1138
      %v1177 = vpop.f32.mrf.mxu0
      %v1178 = vadd.f32 0.0, %v1177
      %v1179 = vpop.f32.mrf.mxu0
      %v1180 = vpop.f32.mrf.mxu0
      %v1181 = vpop.f32.mrf.mxu0
      %1182 = vdwg.mxu0
      %1183 = vrot.lane.b32.xlu0 %v351, 88
      %v1184 = vpop.permute.xlu0 %1183
      %v1186 = vsel %vm287, %v1131, 0
      %v1189 = vsel %vm487, %v1184, 0
      %1191 = vmatprep.subr.bf16.mxu0 0
      %1192 = vmatpush1.bf16.msra.mxu0 0
      %1193 = vmatprep.subr.bf16.mxu0 0
      %1194 = vmatpush1.bf16.msra.mxu0 0
      %1195 = vmatprep.subr.bf16.mxu0 0
      %1196 = vmatpush1.bf16.msra.mxu0 0
      %1197 = vmatprep.subr.bf16.mxu0 0
      %1198 = vmatpush1.bf16.msra.mxu0 0
      %1199 = vmatprep.subr.bf16.mxu0 0
      %1200 = vmatpush1.bf16.msra.mxu0 0
      %1201 = vmatprep.subr.bf16.mxu0 0
      %1202 = vmatpush1.bf16.msra.mxu0 0
      %1203 = vmatprep.subr.bf16.mxu0 0
      %1204 = vmatpush1.bf16.msra.mxu0 0
      %1205 = vmatprep.subr.bf16.mxu0 0
      %1206 = vmatpush1.bf16.msra.mxu0 %v1189
      %1207 = vmatprep.subr.bf16.mxu0 0
      %1208 = vmatpush2.bf16.msra.mxu0 0
      %1209 = vmatprep.subr.bf16.mxu0 0
      %1210 = vmatpush2.bf16.msra.mxu0 0
      %1211 = vmatprep.subr.bf16.mxu0 0
      %1212 = vmatpush2.bf16.msra.mxu0 0
      %1213 = vmatprep.subr.bf16.mxu0 0
      %1214 = vmatpush2.bf16.msra.mxu0 0
      %1215 = vmatprep.subr.bf16.mxu0 0
      %1216 = vmatpush2.bf16.msra.mxu0 0
      %1217 = vmatprep.subr.bf16.mxu0 0
      %1218 = vmatpush2.bf16.msra.mxu0 0
      %1219 = vmatprep.subr.bf16.mxu0 0
      %1220 = vmatpush2.bf16.msra.mxu0 0
      %1221 = vmatprep.subr.bf16.mxu0 0
      %1222 = vmatpush2.bf16.msra.mxu0 0
      %1223 = vmatprep.mubr.bf16.mxu0 0
      %1224 = vmatmul.mubr.bf16.gmra.mxu0 %v1186
      %v1225 = vpop.f32.mrf.mxu0
      %v1226 = vadd.f32 0.0, %v1225
      %v1227 = vpop.f32.mrf.mxu0
      %v1228 = vpop.f32.mrf.mxu0
      %v1229 = vpop.f32.mrf.mxu0
      %1230 = vdwg.mxu0
      %1231 = vrot.lane.b32.xlu0 %v417, 88
      %v1232 = vpop.permute.xlu0 %1231
      %v1234 = vsel %vm287, %v1132, 0
      %v1237 = vsel %vm487, %v1232, 0
      %1239 = vmatprep.subr.bf16.mxu0 0
      %1240 = vmatpush1.bf16.msra.mxu0 0
      %1241 = vmatprep.subr.bf16.mxu0 0
      %1242 = vmatpush1.bf16.msra.mxu0 0
      %1243 = vmatprep.subr.bf16.mxu0 0
      %1244 = vmatpush1.bf16.msra.mxu0 0
      %1245 = vmatprep.subr.bf16.mxu0 0
      %1246 = vmatpush1.bf16.msra.mxu0 0
      %1247 = vmatprep.subr.bf16.mxu0 0
      %1248 = vmatpush1.bf16.msra.mxu0 0
      %1249 = vmatprep.subr.bf16.mxu0 0
      %1250 = vmatpush1.bf16.msra.mxu0 0
      %1251 = vmatprep.subr.bf16.mxu0 0
      %1252 = vmatpush1.bf16.msra.mxu0 0
      %1253 = vmatprep.subr.bf16.mxu0 0
      %1254 = vmatpush1.bf16.msra.mxu0 %v1237
      %1255 = vmatprep.subr.bf16.mxu0 0
      %1256 = vmatpush2.bf16.msra.mxu0 0
      %1257 = vmatprep.subr.bf16.mxu0 0
      %1258 = vmatpush2.bf16.msra.mxu0 0
      %1259 = vmatprep.subr.bf16.mxu0 0
      %1260 = vmatpush2.bf16.msra.mxu0 0
      %1261 = vmatprep.subr.bf16.mxu0 0
      %1262 = vmatpush2.bf16.msra.mxu0 0
      %1263 = vmatprep.subr.bf16.mxu0 0
      %1264 = vmatpush2.bf16.msra.mxu0 0
      %1265 = vmatprep.subr.bf16.mxu0 0
      %1266 = vmatpush2.bf16.msra.mxu0 0
      %1267 = vmatprep.subr.bf16.mxu0 0
      %1268 = vmatpush2.bf16.msra.mxu0 0
      %1269 = vmatprep.subr.bf16.mxu0 0
      %1270 = vmatpush2.bf16.msra.mxu0 0
      %1271 = vmatprep.mubr.bf16.mxu0 0
      %1272 = vmatmul.mubr.bf16.gmra.mxu0 %v1234
      %v1273 = vpop.f32.mrf.mxu0
      %v1274 = vadd.f32 0.0, %v1273
      %v1275 = vpop.f32.mrf.mxu0
      %v1276 = vpop.f32.mrf.mxu0
      %v1277 = vpop.f32.mrf.mxu0
      %1278 = vdwg.mxu0
      %1279 = vmatprep.subr.bf16.mxu0 0
      %1280 = vmatpush1.bf16.msra.mxu0 0
      %1281 = vmatprep.subr.bf16.mxu0 0
      %1282 = vmatpush1.bf16.msra.mxu0 0
      %1283 = vmatprep.subr.bf16.mxu0 0
      %1284 = vmatpush1.bf16.msra.mxu0 0
      %1285 = vmatprep.subr.bf16.mxu0 0
      %1286 = vmatpush1.bf16.msra.mxu0 0
      %1287 = vmatprep.subr.bf16.mxu0 0
      %1288 = vmatpush1.bf16.msra.mxu0 0
      %1289 = vmatprep.subr.bf16.mxu0 0
      %1290 = vmatpush1.bf16.msra.mxu0 0
      %1291 = vmatprep.subr.bf16.mxu0 0
      %1292 = vmatpush1.bf16.msra.mxu0 0
      %1293 = vmatprep.subr.bf16.mxu0 0
      %1294 = vmatpush1.bf16.msra.mxu0 %v1189
      %1295 = vmatprep.subr.bf16.mxu0 0
      %1296 = vmatpush2.bf16.msra.mxu0 0
      %1297 = vmatprep.subr.bf16.mxu0 0
      %1298 = vmatpush2.bf16.msra.mxu0 0
      %1299 = vmatprep.subr.bf16.mxu0 0
      %1300 = vmatpush2.bf16.msra.mxu0 0
      %1301 = vmatprep.subr.bf16.mxu0 0
      %1302 = vmatpush2.bf16.msra.mxu0 0
      %1303 = vmatprep.subr.bf16.mxu0 0
      %1304 = vmatpush2.bf16.msra.mxu0 0
      %1305 = vmatprep.subr.bf16.mxu0 0
      %1306 = vmatpush2.bf16.msra.mxu0 0
      %1307 = vmatprep.subr.bf16.mxu0 0
      %1308 = vmatpush2.bf16.msra.mxu0 0
      %1309 = vmatprep.subr.bf16.mxu0 0
      %1310 = vmatpush2.bf16.msra.mxu0 0
      %1311 = vmatprep.mubr.bf16.mxu0 0
      %1312 = vmatmul.mubr.bf16.gmra.mxu0 %v1138
      %v1313 = vpop.f32.mrf.mxu0
      %v1314 = vadd.f32 %v1226, %v1313
      %v1315 = vpop.f32.mrf.mxu0
      %v1316 = vpop.f32.mrf.mxu0
      %v1317 = vpop.f32.mrf.mxu0
      %1318 = vdwg.mxu0
      %1319 = vmatprep.subr.bf16.mxu0 0
      %1320 = vmatpush1.bf16.msra.mxu0 0
      %1321 = vmatprep.subr.bf16.mxu0 0
      %1322 = vmatpush1.bf16.msra.mxu0 0
      %1323 = vmatprep.subr.bf16.mxu0 0
      %1324 = vmatpush1.bf16.msra.mxu0 0
      %1325 = vmatprep.subr.bf16.mxu0 0
      %1326 = vmatpush1.bf16.msra.mxu0 0
      %1327 = vmatprep.subr.bf16.mxu0 0
      %1328 = vmatpush1.bf16.msra.mxu0 0
      %1329 = vmatprep.subr.bf16.mxu0 0
      %1330 = vmatpush1.bf16.msra.mxu0 0
      %1331 = vmatprep.subr.bf16.mxu0 0
      %1332 = vmatpush1.bf16.msra.mxu0 0
      %1333 = vmatprep.subr.bf16.mxu0 0
      %1334 = vmatpush1.bf16.msra.mxu0 %v1141
      %1335 = vmatprep.subr.bf16.mxu0 0
      %1336 = vmatpush2.bf16.msra.mxu0 0
      %1337 = vmatprep.subr.bf16.mxu0 0
      %1338 = vmatpush2.bf16.msra.mxu0 0
      %1339 = vmatprep.subr.bf16.mxu0 0
      %1340 = vmatpush2.bf16.msra.mxu0 0
      %1341 = vmatprep.subr.bf16.mxu0 0
      %1342 = vmatpush2.bf16.msra.mxu0 0
      %1343 = vmatprep.subr.bf16.mxu0 0
      %1344 = vmatpush2.bf16.msra.mxu0 0
      %1345 = vmatprep.subr.bf16.mxu0 0
      %1346 = vmatpush2.bf16.msra.mxu0 0
      %1347 = vmatprep.subr.bf16.mxu0 0
      %1348 = vmatpush2.bf16.msra.mxu0 0
      %1349 = vmatprep.subr.bf16.mxu0 0
      %1350 = vmatpush2.bf16.msra.mxu0 0
      %1351 = vmatprep.mubr.bf16.mxu0 0
      %1352 = vmatmul.mubr.bf16.gmra.mxu0 %v1186
      %v1353 = vpop.f32.mrf.mxu0
      %v1354 = vadd.f32 0.0, %v1353
      %v1355 = vpop.f32.mrf.mxu0
      %v1356 = vpop.f32.mrf.mxu0
      %v1357 = vpop.f32.mrf.mxu0
      %1358 = vdwg.mxu0
      %v1359 = vadd.f32 %v1178, %v1354
      %v1360 = vmul.f32 %v1134, %v346
      %v1361 = vpack.c.bf16 %v1360, %v1360
      %1363 = vrot.lane.b32.xlu0 %v1361, 88
      %v1364 = vpop.permute.xlu0 %1363
      %v1366 = vsel %vm487, %v1364, 0
      %1368 = vmatprep.subr.bf16.mxu0 0
      %1369 = vmatpush1.bf16.msra.mxu0 0
      %1370 = vmatprep.subr.bf16.mxu0 0
      %1371 = vmatpush1.bf16.msra.mxu0 0
      %1372 = vmatprep.subr.bf16.mxu0 0
      %1373 = vmatpush1.bf16.msra.mxu0 0
      %1374 = vmatprep.subr.bf16.mxu0 0
      %1375 = vmatpush1.bf16.msra.mxu0 0
      %1376 = vmatprep.subr.bf16.mxu0 0
      %1377 = vmatpush1.bf16.msra.mxu0 0
      %1378 = vmatprep.subr.bf16.mxu0 0
      %1379 = vmatpush1.bf16.msra.mxu0 0
      %1380 = vmatprep.subr.bf16.mxu0 0
      %1381 = vmatpush1.bf16.msra.mxu0 0
      %1382 = vmatprep.subr.bf16.mxu0 0
      %1383 = vmatpush1.bf16.msra.mxu0 %v1366
      %1384 = vmatprep.subr.bf16.mxu0 0
      %1385 = vmatpush2.bf16.msra.mxu0 0
      %1386 = vmatprep.subr.bf16.mxu0 0
      %1387 = vmatpush2.bf16.msra.mxu0 0
      %1388 = vmatprep.subr.bf16.mxu0 0
      %1389 = vmatpush2.bf16.msra.mxu0 0
      %1390 = vmatprep.subr.bf16.mxu0 0
      %1391 = vmatpush2.bf16.msra.mxu0 0
      %1392 = vmatprep.subr.bf16.mxu0 0
      %1393 = vmatpush2.bf16.msra.mxu0 0
      %1394 = vmatprep.subr.bf16.mxu0 0
      %1395 = vmatpush2.bf16.msra.mxu0 0
      %1396 = vmatprep.subr.bf16.mxu0 0
      %1397 = vmatpush2.bf16.msra.mxu0 0
      %1398 = vmatprep.subr.bf16.mxu0 0
      %1399 = vmatpush2.bf16.msra.mxu0 0
      %1400 = vmatprep.mubr.bf16.mxu0 0
      %1401 = vmatmul.mubr.bf16.gmra.mxu0 %v1186
      %v1402 = vpop.f32.mrf.mxu0
      %v1403 = vadd.f32 0.0, %v1402
      %v1404 = vpop.f32.mrf.mxu0
      %v1405 = vpop.f32.mrf.mxu0
      %v1406 = vpop.f32.mrf.mxu0
      %1407 = vdwg.mxu0
      %v1408 = vmul.f32 %v1134, %v1403
      %v1409 = vmul.f32 %v1133, %v1408
      %v1410 = vpack.c.bf16 %v1409, %v1409
      %1411 = vxpose.xlu0.c.b16.start [1/8] %v1130, 128
      %1412 = vxpose.xlu0.c.b16.cont [2/8] 0, 128
      %1413 = vxpose.xlu0.c.b16.cont [3/8] 0, 128
      %1414 = vxpose.xlu0.c.b16.cont [4/8] 0, 128
      %1415 = vxpose.xlu0.c.b16.cont [5/8] 0, 128
      %1416 = vxpose.xlu0.c.b16.cont [6/8] 0, 128
      %1417 = vxpose.xlu0.c.b16.cont [7/8] 0, 128
      %1418 = vxpose.xlu0.c.b16.end [8/8] 0, 128
      %v1419 = vpop.trf.xlu0
      %v1420 = vpop.trf.xlu0
      %v1421 = vpop.trf.xlu0
      %v1422 = vpop.trf.xlu0
      %v1423 = vpop.trf.xlu0
      %v1424 = vpop.trf.xlu0
      %v1425 = vpop.trf.xlu0
      %v1426 = vpop.trf.xlu0
      %v1428 = vsel %vm287, %v1419, 0
      %v1431 = vsel %vm487, %v1410, 0
      %1433 = vmatprep.subr.bf16.mxu0 0
      %1434 = vmatpush1.bf16.msra.mxu0 0
      %1435 = vmatprep.subr.bf16.mxu0 0
      %1436 = vmatpush1.bf16.msra.mxu0 0
      %1437 = vmatprep.subr.bf16.mxu0 0
      %1438 = vmatpush1.bf16.msra.mxu0 0
      %1439 = vmatprep.subr.bf16.mxu0 0
      %1440 = vmatpush1.bf16.msra.mxu0 0
      %1441 = vmatprep.subr.bf16.mxu0 0
      %1442 = vmatpush1.bf16.msra.mxu0 0
      %1443 = vmatprep.subr.bf16.mxu0 0
      %1444 = vmatpush1.bf16.msra.mxu0 0
      %1445 = vmatprep.subr.bf16.mxu0 0
      %1446 = vmatpush1.bf16.msra.mxu0 0
      %1447 = vmatprep.subr.bf16.mxu0 0
      %1448 = vmatpush1.bf16.msra.mxu0 %v1431
      %1449 = vmatprep.subr.bf16.mxu0 0
      %1450 = vmatpush2.bf16.msra.mxu0 0
      %1451 = vmatprep.subr.bf16.mxu0 0
      %1452 = vmatpush2.bf16.msra.mxu0 0
      %1453 = vmatprep.subr.bf16.mxu0 0
      %1454 = vmatpush2.bf16.msra.mxu0 0
      %1455 = vmatprep.subr.bf16.mxu0 0
      %1456 = vmatpush2.bf16.msra.mxu0 0
      %1457 = vmatprep.subr.bf16.mxu0 0
      %1458 = vmatpush2.bf16.msra.mxu0 0
      %1459 = vmatprep.subr.bf16.mxu0 0
      %1460 = vmatpush2.bf16.msra.mxu0 0
      %1461 = vmatprep.subr.bf16.mxu0 0
      %1462 = vmatpush2.bf16.msra.mxu0 0
      %1463 = vmatprep.subr.bf16.mxu0 0
      %1464 = vmatpush2.bf16.msra.mxu0 0
      %1465 = vmatprep.mubr.bf16.mxu0 0
      %1466 = vmatmul.mubr.bf16.gmra.mxu0 %v1428
      %v1467 = vpop.f32.mrf.mxu0
      %v1468 = vadd.f32 0.0, %v1467
      %v1469 = vpop.f32.mrf.mxu0
      %v1470 = vpop.f32.mrf.mxu0
      %v1471 = vpop.f32.mrf.mxu0
      %1472 = vdwg.mxu0
      %v1473 = vmul.f32 %v1133, %v1468
      %v1474 = vmul.f32 %v1473, 0.6
      %v1475 = vmul.f32 %v1314, 0.4
      %v1476 = vadd.f32 %v1474, %v1475
      %v1477 = vmul.f32 %v1133, %v279
      %v1478 = vpack.c.bf16 %v1477, %v1477
      %1480 = vrot.lane.b32.xlu0 %v1478, 88
      %v1481 = vpop.permute.xlu0 %1480
      %v1483 = vsel %vm487, %v1481, 0
      %1485 = vmatprep.subr.bf16.mxu0 0
      %1486 = vmatpush1.bf16.msra.mxu0 0
      %1487 = vmatprep.subr.bf16.mxu0 0
      %1488 = vmatpush1.bf16.msra.mxu0 0
      %1489 = vmatprep.subr.bf16.mxu0 0
      %1490 = vmatpush1.bf16.msra.mxu0 0
      %1491 = vmatprep.subr.bf16.mxu0 0
      %1492 = vmatpush1.bf16.msra.mxu0 0
      %1493 = vmatprep.subr.bf16.mxu0 0
      %1494 = vmatpush1.bf16.msra.mxu0 0
      %1495 = vmatprep.subr.bf16.mxu0 0
      %1496 = vmatpush1.bf16.msra.mxu0 0
      %1497 = vmatprep.subr.bf16.mxu0 0
      %1498 = vmatpush1.bf16.msra.mxu0 0
      %1499 = vmatprep.subr.bf16.mxu0 0
      %1500 = vmatpush1.bf16.msra.mxu0 %v1483
      %1501 = vmatprep.subr.bf16.mxu0 0
      %1502 = vmatpush2.bf16.msra.mxu0 0
      %1503 = vmatprep.subr.bf16.mxu0 0
      %1504 = vmatpush2.bf16.msra.mxu0 0
      %1505 = vmatprep.subr.bf16.mxu0 0
      %1506 = vmatpush2.bf16.msra.mxu0 0
      %1507 = vmatprep.subr.bf16.mxu0 0
      %1508 = vmatpush2.bf16.msra.mxu0 0
      %1509 = vmatprep.subr.bf16.mxu0 0
      %1510 = vmatpush2.bf16.msra.mxu0 0
      %1511 = vmatprep.subr.bf16.mxu0 0
      %1512 = vmatpush2.bf16.msra.mxu0 0
      %1513 = vmatprep.subr.bf16.mxu0 0
      %1514 = vmatpush2.bf16.msra.mxu0 0
      %1515 = vmatprep.subr.bf16.mxu0 0
      %1516 = vmatpush2.bf16.msra.mxu0 0
      %1517 = vmatprep.mubr.bf16.mxu0 0
      %1518 = vmatmul.mubr.bf16.gmra.mxu0 %v1138
      %v1519 = vpop.f32.mrf.mxu0
      %v1520 = vadd.f32 0.0, %v1519
      %v1521 = vpop.f32.mrf.mxu0
      %v1522 = vpop.f32.mrf.mxu0
      %v1523 = vpop.f32.mrf.mxu0
      %1524 = vdwg.mxu0
      %v1525 = vmul.f32 %v1133, %v1520
      %v1526 = vmul.f32 %v1134, %v1525
      %v1527 = vpack.c.bf16 %v1526, %v1526
      %1528 = vxpose.xlu0.c.b16.start [1/8] %v1131, 128
      %1529 = vxpose.xlu0.c.b16.cont [2/8] 0, 128
      %1530 = vxpose.xlu0.c.b16.cont [3/8] 0, 128
      %1531 = vxpose.xlu0.c.b16.cont [4/8] 0, 128
      %1532 = vxpose.xlu0.c.b16.cont [5/8] 0, 128
      %1533 = vxpose.xlu0.c.b16.cont [6/8] 0, 128
      %1534 = vxpose.xlu0.c.b16.cont [7/8] 0, 128
      %1535 = vxpose.xlu0.c.b16.end [8/8] 0, 128
      %v1536 = vpop.trf.xlu0
      %v1537 = vpop.trf.xlu0
      %v1538 = vpop.trf.xlu0
      %v1539 = vpop.trf.xlu0
      %v1540 = vpop.trf.xlu0
      %v1541 = vpop.trf.xlu0
      %v1542 = vpop.trf.xlu0
      %v1543 = vpop.trf.xlu0
      %v1545 = vsel %vm287, %v1536, 0
      %v1548 = vsel %vm487, %v1527, 0
      %1550 = vmatprep.subr.bf16.mxu0 0
      %1551 = vmatpush1.bf16.msra.mxu0 0
      %1552 = vmatprep.subr.bf16.mxu0 0
      %1553 = vmatpush1.bf16.msra.mxu0 0
      %1554 = vmatprep.subr.bf16.mxu0 0
      %1555 = vmatpush1.bf16.msra.mxu0 0
      %1556 = vmatprep.subr.bf16.mxu0 0
      %1557 = vmatpush1.bf16.msra.mxu0 0
      %1558 = vmatprep.subr.bf16.mxu0 0
      %1559 = vmatpush1.bf16.msra.mxu0 0
      %1560 = vmatprep.subr.bf16.mxu0 0
      %1561 = vmatpush1.bf16.msra.mxu0 0
      %1562 = vmatprep.subr.bf16.mxu0 0
      %1563 = vmatpush1.bf16.msra.mxu0 0
      %1564 = vmatprep.subr.bf16.mxu0 0
      %1565 = vmatpush1.bf16.msra.mxu0 %v1548
      %1566 = vmatprep.subr.bf16.mxu0 0
      %1567 = vmatpush2.bf16.msra.mxu0 0
      %1568 = vmatprep.subr.bf16.mxu0 0
      %1569 = vmatpush2.bf16.msra.mxu0 0
      %1570 = vmatprep.subr.bf16.mxu0 0
      %1571 = vmatpush2.bf16.msra.mxu0 0
      %1572 = vmatprep.subr.bf16.mxu0 0
      %1573 = vmatpush2.bf16.msra.mxu0 0
      %1574 = vmatprep.subr.bf16.mxu0 0
      %1575 = vmatpush2.bf16.msra.mxu0 0
      %1576 = vmatprep.subr.bf16.mxu0 0
      %1577 = vmatpush2.bf16.msra.mxu0 0
      %1578 = vmatprep.subr.bf16.mxu0 0
      %1579 = vmatpush2.bf16.msra.mxu0 0
      %1580 = vmatprep.subr.bf16.mxu0 0
      %1581 = vmatpush2.bf16.msra.mxu0 0
      %1582 = vmatprep.mubr.bf16.mxu0 0
      %1583 = vmatmul.mubr.bf16.gmra.mxu0 %v1545
      %v1584 = vpop.f32.mrf.mxu0
      %v1585 = vadd.f32 0.0, %v1584
      %v1586 = vpop.f32.mrf.mxu0
      %v1587 = vpop.f32.mrf.mxu0
      %v1588 = vpop.f32.mrf.mxu0
      %1589 = vdwg.mxu0
      %v1590 = vmul.f32 %v1134, %v1585
      %v1591 = vmul.f32 %v1590, 0.6
      %v1592 = vmul.f32 %v1359, 0.4
      %v1593 = vadd.f32 %v1591, %v1592
      %1595 = vrot.lane.b32.xlu0 %v1178, 8
      %v1596 = vpop.permute.xlu0 %1595
      %1599 = vrot.lane.b32.xlu0 %v824, 16
      %v1600 = vpop.permute.xlu0 %1599
      %1603 = vrot.lane.b32.xlu0 %v1476, 24
      %v1604 = vpop.permute.xlu0 %1603
      %v1606 = vsel %vm287, %v526, %v1596
      %vm1607 = vcmask 130048
      %v1608 = vsel %vm1607, %v1606, %v1600
      %vm1609 = vcmask 195584
      %v1610 = vsel %vm1609, %v1608, %v1604
      %v1611 = vpack.c.bf16 %v1610, %v1610
      %vm1612 = vcmask 257024
      %1613 = vst.msk [vmem:[%s266] sm:$0xf] %vm1612, %v1611
      %1615 = vrot.lane.b32.xlu0 %v1226, 8
      %v1616 = vpop.permute.xlu0 %1615
      %1619 = vrot.lane.b32.xlu0 %v941, 16
      %v1620 = vpop.permute.xlu0 %1619
      %1623 = vrot.lane.b32.xlu0 %v1593, 24
      %v1624 = vpop.permute.xlu0 %1623
      %v1626 = vsel %vm287, %v574, %v1616
      %v1627 = vsel %vm1607, %v1626, %v1620
      %v1628 = vsel %vm1609, %v1627, %v1624
      %v1629 = vpack.c.bf16 %v1628, %v1628
      %1630 = vst.msk [vmem:[%s270] sm:$0xf] %vm1612, %v1629
      %1632 = vrot.lane.b32.xlu0 %v1274, 8
      %v1633 = vpop.permute.xlu0 %1632
      %v1635 = vsel %vm287, %v622, %v1633
      %v1636 = vpack.c.bf16 %v1635, %v1635
      %vm1637 = vcmask 125952
      %1638 = vst.msk [vmem:[%s274] sm:$0xf] %vm1637, %v1636
      %p1639 = scmp.lt.s32.totalorder %s17, 1
      %s1640 = scalar_select %p1639, %s17, 1
      %s1641 = smul.addr %s1640, 4
      %s1642 = scalar_lea.vmem %s3, %s1641
      %p1643 = scmp.lt.s32.totalorder %s17, 1
      %s1644 = scalar_select %p1643, %s17, 1
      %s1645 = smul.addr %s1644, 4
      %s1646 = scalar_lea.vmem %s4, %s1645
      %p1647 = scmp.lt.s32.totalorder %s17, 1
      %s1648 = scalar_select %p1647, %s17, 1
      %s1649 = smul.addr %s1648, 4
      %s1650 = scalar_lea.vmem %s5, %s1649
      // Predicated region
      $region33: #{multi_attention_forward.4} parent=31 // pred_check
        %p1651 = pneg %p113
      $region34: #{multi_attention_forward.4} parent=31 // pred_check_branch
        %1653 = sbr.rel (%p1651) target = $region36
      $region35: #{multi_attention_forward.4} parent=31 // pred_region
        _
      $region36: #{multi_attention_forward.4} parent=31 // pred_fallthru
        _
      // Predicated region
      $region37: #{multi_attention_forward.4} parent=31 // pred_check
        %p1654 = pneg %p139
      $region38: #{multi_attention_forward.4} parent=31 // pred_check_branch
        %1656 = sbr.rel (%p1654) target = $region40
      $region39: #{multi_attention_forward.4} parent=31 // pred_region
        _
      $region40: #{multi_attention_forward.4} parent=31 // pred_fallthru
        _
      // Predicated region
      $region41: #{multi_attention_forward.4} parent=31 // pred_check
        %p1657 = pneg %p165
      $region42: #{multi_attention_forward.4} parent=31 // pred_check_branch
        %1659 = sbr.rel (%p1657) target = $region44
      $region43: #{multi_attention_forward.4} parent=31 // pred_region
        _
      $region44: #{multi_attention_forward.4} parent=31 // pred_fallthru
        _
    $region32: #{multi_attention_forward.4} parent=5 // pred_fallthru
      _
    %p1660 = scmp.le.s32.totalorder 2, %s12
    // Predicated region
    $region45: #{multi_attention_forward.4} parent=5 // pred_check
      %p1661 = pneg %p1660
    $region46: #{multi_attention_forward.4} parent=5 // pred_check_branch
      %1663 = sbr.rel (%p1661) target = $region48
    $region47: #{multi_attention_forward.4} parent=5 // pred_region
      %s1664 = ssub.s32 %s12, 2
      // Predicated region
      $region49: #{multi_attention_forward.4} parent=47 // pred_check
        %p1665 = pneg %p119
      $region50: #{multi_attention_forward.4} parent=47 // pred_check_branch
        %1667 = sbr.rel (%p1665) target = $region52
      $region51: #{multi_attention_forward.4} parent=47 // pred_region
        %p1668 = scmp.lt.s32.totalorder %s18, 1
        %s1669 = scalar_select %p1668, %s18, 1
        %s1670 = smul.addr %s1669, 4
        %s1671 = scalar_lea.vmem %s3, %s1670
      $region52: #{multi_attention_forward.4} parent=47 // pred_fallthru
        _
      // Predicated region
      $region53: #{multi_attention_forward.4} parent=47 // pred_check
        %p1672 = pneg %p145
      $region54: #{multi_attention_forward.4} parent=47 // pred_check_branch
        %1674 = sbr.rel (%p1672) target = $region56
      $region55: #{multi_attention_forward.4} parent=47 // pred_region
        %p1675 = scmp.lt.s32.totalorder %s18, 1
        %s1676 = scalar_select %p1675, %s18, 1
        %s1677 = smul.addr %s1676, 4
        %s1678 = scalar_lea.vmem %s4, %s1677
      $region56: #{multi_attention_forward.4} parent=47 // pred_fallthru
        _
      // Predicated region
      $region57: #{multi_attention_forward.4} parent=47 // pred_check
        %p1679 = pneg %p171
      $region58: #{multi_attention_forward.4} parent=47 // pred_check_branch
        %1681 = sbr.rel (%p1679) target = $region60
      $region59: #{multi_attention_forward.4} parent=47 // pred_region
        %p1682 = scmp.lt.s32.totalorder %s18, 1
        %s1683 = scalar_select %p1682, %s18, 1
        %s1684 = smul.addr %s1683, 4
        %s1685 = scalar_lea.vmem %s5, %s1684
      $region60: #{multi_attention_forward.4} parent=47 // pred_fallthru
        _
    $region48: #{multi_attention_forward.4} parent=5 // pred_fallthru
      _
  $region6: #{multi_attention_forward.4} parent=0 // loop_footer
    %s16 = sadd.s32 1, %s12
  $region7: #{multi_attention_forward.4} parent=0 // loop_footer_branch
    %11 = sbr.rel target = $region3
  $region8: #{multi_attention_forward.4} parent=0 // loop_exit
    _

</llo_original>
